<compile_context>
chip_gen: v5e
topology: v5e:2x2
jax: 0.10.0
libtpu: 0.0.40
codegen_flags: <defaults>
</compile_context>

<pallas_src>
import jax
import jax.numpy as jnp
from jax.experimental import pallas as pl
from jax.experimental.pallas import tpu as pltpu


def resblock_kernel(x_ref, w1_ref, w2_ref, s1_ref, b1_ref, s2_ref, b2_ref,
                    out_ref, pad_ref, patch_ref):
    # One grid step processes one image of the batch, fully in VMEM.
    _, H, W, C = x_ref.shape
    Cout = out_ref.shape[-1]
    K9 = 9 * C
    pdt = pad_ref.dtype        # matmul dtype (bf16 on the perf path, f32 otherwise)

    # ---- zero only the 1-px halo strips of the shared padded scratch ------
    # (interior is fully overwritten below; re-zeroed every step because the
    #  'parallel' batch axis may be sharded across TensorCores, each with its
    #  own scratch instance)
    pad_ref[0:1, :, :] = jnp.zeros((1, W + 2, C), pdt)
    pad_ref[H + 1:H + 2, :, :] = jnp.zeros((1, W + 2, C), pdt)
    pad_ref[1:H + 1, 0:1, :] = jnp.zeros((H, 1, C), pdt)
    pad_ref[1:H + 1, W + 1:W + 2, :] = jnp.zeros((H, 1, C), pdt)

    # Single HBM read of x per image; cast to the matmul dtype exactly once.
    pad_ref[1:H + 1, 1:W + 1, :] = x_ref[0].astype(pdt)

    def conv3x3(w_ref):
        # im2col into a VMEM scratch; taps stay 3-D so no per-tap relayout.
        for k in range(9):
            dy, dx = k // 3, k % 3
            patch_ref[:, :, k * C:(k + 1) * C] = pad_ref[dy:dy + H,
                                                         dx:dx + W, :]
        # Free leading-dim collapse (W is a multiple of the sublane tile),
        # then ONE MXU matmul with K = 9*C, f32 accumulation.
        patch = patch_ref[...].reshape(H * W, K9)
        return jnp.dot(patch, w_ref[...], preferred_element_type=jnp.float32)

    # ---- conv1 -> bn1 (folded scale/shift) -> relu -------------------------
    h = jnp.maximum(conv3x3(w1_ref) * s1_ref[...] + b1_ref[...], 0.0)

    # Reuse the same padded scratch (halo still zero) for conv2's input;
    # single f32 -> matmul-dtype cast of 1x the image data.
    pad_ref[1:H + 1, 1:W + 1, :] = h.reshape(H, W, Cout).astype(pdt)

    # ---- conv2 -> bn2 -> + identity -> relu --------------------------------
    o = conv3x3(w2_ref) * s2_ref[...] + b2_ref[...]
    # Residual: re-read the VMEM-resident x block here instead of keeping it
    # live across both matmuls (bounds vreg pressure at realistic shapes).
    o = o + x_ref[0].reshape(H * W, C).astype(jnp.float32)
    o = jnp.maximum(o, 0.0)
    out_ref[0] = o.reshape(H, W, Cout).astype(out_ref.dtype)


def _fold_bn(bn, eps):
    gamma, beta, mean, var = bn
    scale = gamma / jnp.sqrt(var + eps)
    shift = beta - mean * scale
    return (scale.reshape(1, -1).astype(jnp.float32),
            shift.reshape(1, -1).astype(jnp.float32))


def _vmem_limit_bytes(H, W, C, Cout, in_dtype, out_dtype, matmul_dtype):
    """Size the scoped VMEM limit from the actual blocks/scratches + margin."""
    xb = jnp.dtype(in_dtype).itemsize
    ob = jnp.dtype(out_dtype).itemsize
    mb = jnp.dtype(matmul_dtype).itemsize
    need = 0
    need += 2 * H * W * C * xb                            # x block (double-buffered)
    need += 2 * H * W * Cout * ob                         # out block (double-buffered)
    need += 2 * (9 * C * Cout + 9 * Cout * Cout) * mb     # conv weights
    need += 2 * 4 * Cout * 4                              # folded BN scale/shift
    need += (H + 2) * (W + 2) * C * mb                    # shared padded scratch
    need += H * W * 9 * C * mb                            # im2col scratch
    try:
        cap = int(pltpu.get_tpu_info().vmem_capacity_bytes)
    except Exception:
        cap = 64 << 20                                    # v7x per-core VMEM (smallest gen)
    limit = int(need * 1.25) + (1 << 20)
    return max(32 << 20, min(limit, cap - (4 << 20)))


def resblock_forward_nhwc(x_nhwc, w1, w2, bn1, bn2, eps=1e-5,
                          matmul_dtype=jnp.bfloat16):
    """Primary entry point (NHWC, channels on lanes).

    w1, w2 are HWIO (3, 3, Cin, Cout); bn* = (gamma, beta, mean, var).
    For layout-free in-kernel reshapes W should be a multiple of 8 (f32 path)
    or 16 (bf16 path); realistic SiamCRNN feature maps satisfy this.
    """
    N, H, W, C = x_nhwc.shape
    Cout = w1.shape[-1]
    assert C == Cout, "downsample=None / stride=1 requires in==out channels"

    # HWIO (3,3,C,Cout) -> (9*C, Cout); row index = (dy*3+dx)*C + ci matches
    # the im2col column order built in the kernel.
    w1r = w1.reshape(9 * C, Cout).astype(matmul_dtype)
    w2r = w2.reshape(9 * Cout, Cout).astype(matmul_dtype)
    s1, b1 = _fold_bn(bn1, eps)
    s2, b2 = _fold_bn(bn2, eps)

    return pl.pallas_call(
        resblock_kernel,
        out_shape=jax.ShapeDtypeStruct((N, H, W, Cout), x_nhwc.dtype),
        grid_spec=pltpu.PrefetchScalarGridSpec(
            num_scalar_prefetch=0,
            grid=(N,),
            in_specs=[
                pl.BlockSpec((1, H, W, C), lambda n: (n, 0, 0, 0)),
                pl.BlockSpec((9 * C, Cout), lambda n: (0, 0)),
                pl.BlockSpec((9 * Cout, Cout), lambda n: (0, 0)),
                pl.BlockSpec((1, Cout), lambda n: (0, 0)),
                pl.BlockSpec((1, Cout), lambda n: (0, 0)),
                pl.BlockSpec((1, Cout), lambda n: (0, 0)),
                pl.BlockSpec((1, Cout), lambda n: (0, 0)),
            ],
            out_specs=pl.BlockSpec((1, H, W, Cout), lambda n: (n, 0, 0, 0)),
            scratch_shapes=[
                pltpu.VMEM((H + 2, W + 2, C), matmul_dtype),   # shared pad buf
                pltpu.VMEM((H, W, 9 * C), matmul_dtype),       # im2col patch
            ],
        ),
        compiler_params=pltpu.CompilerParams(
            dimension_semantics=("parallel",),
            vmem_limit_bytes=_vmem_limit_bytes(H, W, C, Cout, x_nhwc.dtype,
                                               x_nhwc.dtype, matmul_dtype),
        ),
    )(x_nhwc, w1r, w2r, s1, b1, s2, b2)


def resblock_forward(x_nchw, w1, w2, bn1, bn2, eps=1e-5,
                     matmul_dtype=jnp.bfloat16):
    """PyTorch-parity wrapper (NCHW in/out). In an NHWC model use
    resblock_forward_nhwc directly and skip these transpose HBM round-trips."""
    x = jnp.transpose(x_nchw, (0, 2, 3, 1))                 # NCHW -> NHWC
    out = resblock_forward_nhwc(x, w1, w2, bn1, bn2, eps=eps,
                                matmul_dtype=matmul_dtype)
    return jnp.transpose(out, (0, 3, 1, 2))                 # NHWC -> NCHW


def resblock_reference(x_nchw, w1, w2, bn1, bn2, eps=1e-5):
    """Pure-JAX reference (same eval-mode BN semantics)."""
    x = jnp.transpose(x_nchw, (0, 2, 3, 1))
    dn = ('NHWC', 'HWIO', 'NHWC')

    def conv(v, w):
        return jax.lax.conv_general_dilated(v, w, (1, 1), 'SAME',
                                            dimension_numbers=dn)

    def bn(v, p):
        gamma, beta, mean, var = p
        return (v - mean) / jnp.sqrt(var + eps) * gamma + beta

    h = jax.nn.relu(bn(conv(x, w1), bn1))
    o = jax.nn.relu(bn(conv(h, w2), bn2) + x)
    return jnp.transpose(o, (0, 3, 1, 2))


if __name__ == "__main__":
    def make_params(key, C, wscale):
        ks = jax.random.split(key, 10)
        w1 = wscale * jax.random.normal(ks[0], (3, 3, C, C), jnp.float32)
        w2 = wscale * jax.random.normal(ks[1], (3, 3, C, C), jnp.float32)
        bn1 = (1.0 + 0.1 * jax.random.normal(ks[2], (C,), jnp.float32),
               0.1 * jax.random.normal(ks[3], (C,), jnp.float32),
               0.1 * jax.random.normal(ks[4], (C,), jnp.float32),
               1.0 + 0.1 * jnp.abs(jax.random.normal(ks[5], (C,), jnp.float32)))
        bn2 = (1.0 + 0.1 * jax.random.normal(ks[6], (C,), jnp.float32),
               0.1 * jax.random.normal(ks[7], (C,), jnp.float32),
               0.1 * jax.random.normal(ks[8], (C,), jnp.float32),
               1.0 + 0.1 * jnp.abs(jax.random.normal(ks[9], (C,), jnp.float32)))
        return w1, w2, bn1, bn2

    key = jax.random.PRNGKey(0)
    kx1, kp1, kx2, kp2 = jax.random.split(key, 4)

    # --- config 1: tiny PyTorch-parity check (NCHW in/out), C = 8 -----------
    N, C, H, W = 2, 8, 16, 16
    x = jax.random.normal(kx1, (N, C, H, W), jnp.float32)
    w1, w2, bn1, bn2 = make_params(kp1, C, 0.1)
    ref = resblock_reference(x, w1, w2, bn1, bn2)

    out_f32 = jax.block_until_ready(
        resblock_forward(x, w1, w2, bn1, bn2, matmul_dtype=jnp.float32))
    err = float(jnp.max(jnp.abs(out_f32 - ref)))
    assert out_f32.shape == (N, C, H, W)
    assert err < 1e-4, f"f32 C=8 max abs error {err}"

    out_bf16 = jax.block_until_ready(
        resblock_forward(x, w1, w2, bn1, bn2, matmul_dtype=jnp.bfloat16))
    err = float(jnp.max(jnp.abs(out_bf16 - ref)))
    assert out_bf16.shape == (N, C, H, W)
    assert err < 1e-1, f"bf16 C=8 max abs error {err}"

    # --- config 2: lane-dense layout (C = 128, realistic SiamCRNN width) ----
    N2, C2, H2, W2 = 1, 128, 16, 16
    x2 = jax.random.normal(kx2, (N2, C2, H2, W2), jnp.float32)
    w1b, w2b, bn1b, bn2b = make_params(kp2, C2, 0.05)
    ref2 = resblock_reference(x2, w1b, w2b, bn1b, bn2b)

    out2_f32 = jax.block_until_ready(
        resblock_forward(x2, w1b, w2b, bn1b, bn2b, matmul_dtype=jnp.float32))
    err = float(jnp.max(jnp.abs(out2_f32 - ref2)))
    assert out2_f32.shape == (N2, C2, H2, W2)
    assert err < 5e-3, f"f32 C=128 max abs error {err}"

    out2_bf16 = jax.block_until_ready(
        resblock_forward(x2, w1b, w2b, bn1b, bn2b, matmul_dtype=jnp.bfloat16))
    err = float(jnp.max(jnp.abs(out2_bf16 - ref2)))
    assert err < 5e-1, f"bf16 C=128 max abs error {err}"

    print("KERNEL_OK")
</pallas_src>

<mosaic_0001>
module attributes {stable_mosaic.version = 11 : i64} {
  func.func @resblock_kernel(%arg0: i32, %arg1: memref<1x16x16x8xf32, #tpu.memory_space<vmem>>, %arg2: memref<72x8xf32, #tpu.memory_space<vmem>>, %arg3: memref<72x8xf32, #tpu.memory_space<vmem>>, %arg4: memref<1x8xf32, #tpu.memory_space<vmem>>, %arg5: memref<1x8xf32, #tpu.memory_space<vmem>>, %arg6: memref<1x8xf32, #tpu.memory_space<vmem>>, %arg7: memref<1x8xf32, #tpu.memory_space<vmem>>, %arg8: memref<1x16x16x8xf32, #tpu.memory_space<vmem>>, %arg9: memref<18x18x8xf32, #tpu.memory_space<vmem>>, %arg10: memref<16x16x72xf32, #tpu.memory_space<vmem>>) attributes {dimension_semantics = [#tpu.dimension_semantics<parallel>], iteration_bounds = array<i64: 2>, scalar_prefetch = 0 : i64, scratch_operands = 2 : i64, tpu.core_type = #tpu.core_type<tc>, window_params = [{transform_indices = @transform_0, window_bounds = array<i64: 1, 16, 16, 8>}, {pipeline_mode = #tpu.pipeline_mode<synchronous>, transform_indices = @transform_1, window_bounds = array<i64: 72, 8>}, {pipeline_mode = #tpu.pipeline_mode<synchronous>, transform_indices = @transform_2, window_bounds = array<i64: 72, 8>}, {pipeline_mode = #tpu.pipeline_mode<synchronous>, transform_indices = @transform_3, window_bounds = array<i64: 1, 8>}, {pipeline_mode = #tpu.pipeline_mode<synchronous>, transform_indices = @transform_4, window_bounds = array<i64: 1, 8>}, {pipeline_mode = #tpu.pipeline_mode<synchronous>, transform_indices = @transform_5, window_bounds = array<i64: 1, 8>}, {pipeline_mode = #tpu.pipeline_mode<synchronous>, transform_indices = @transform_6, window_bounds = array<i64: 1, 8>}, {transform_indices = @transform_7, window_bounds = array<i64: 1, 16, 16, 8>}]} {
    %cst = arith.constant 0.000000e+00 : f32
    %0 = vector.broadcast %cst : f32 to vector<1x18x8xf32>
    %c0 = arith.constant 0 : index
    %c0_0 = arith.constant 0 : index
    %c0_1 = arith.constant 0 : index
    %1 = vector.load %arg9[%c0, %c0_0, %c0_1] : memref<18x18x8xf32, #tpu.memory_space<vmem>>, vector<1x18x8xf32>
    tpu.vector_store %arg9[%c0, %c0_0, %c0_1], %0 {strides = array<i32>} : memref<18x18x8xf32, #tpu.memory_space<vmem>>, vector<1x18x8xf32>,
    %cst_2 = arith.constant 0.000000e+00 : f32
    %2 = vector.broadcast %cst_2 : f32 to vector<1x18x8xf32>
    %c17 = arith.constant 17 : index
    %c0_3 = arith.constant 0 : index
    %c0_4 = arith.constant 0 : index
    %3 = vector.load %arg9[%c17, %c0_3, %c0_4] : memref<18x18x8xf32, #tpu.memory_space<vmem>>, vector<1x18x8xf32>
    tpu.vector_store %arg9[%c17, %c0_3, %c0_4], %2 {strides = array<i32>} : memref<18x18x8xf32, #tpu.memory_space<vmem>>, vector<1x18x8xf32>,
    %cst_5 = arith.constant 0.000000e+00 : f32
    %4 = vector.broadcast %cst_5 : f32 to vector<16x1x8xf32>
    %c1 = arith.constant 1 : index
    %c0_6 = arith.constant 0 : index
    %c0_7 = arith.constant 0 : index
    %5 = vector.load %arg9[%c1, %c0_6, %c0_7] : memref<18x18x8xf32, #tpu.memory_space<vmem>>, vector<16x1x8xf32>
    tpu.vector_store %arg9[%c1, %c0_6, %c0_7], %4 {strides = array<i32>} : memref<18x18x8xf32, #tpu.memory_space<vmem>>, vector<16x1x8xf32>,
    %cst_8 = arith.constant 0.000000e+00 : f32
    %6 = vector.broadcast %cst_8 : f32 to vector<16x1x8xf32>
    %c1_9 = arith.constant 1 : index
    %c17_10 = arith.constant 17 : index
    %c0_11 = arith.constant 0 : index
    %7 = vector.load %arg9[%c1_9, %c17_10, %c0_11] : memref<18x18x8xf32, #tpu.memory_space<vmem>>, vector<16x1x8xf32>
    tpu.vector_store %arg9[%c1_9, %c17_10, %c0_11], %6 {strides = array<i32>} : memref<18x18x8xf32, #tpu.memory_space<vmem>>, vector<16x1x8xf32>,
    %c0_12 = arith.constant 0 : index
    %c0_13 = arith.constant 0 : index
    %c0_14 = arith.constant 0 : index
    %c0_15 = arith.constant 0 : index
    %8 = vector.load %arg1[%c0_12, %c0_13, %c0_14, %c0_15] : memref<1x16x16x8xf32, #tpu.memory_space<vmem>>, vector<1x16x16x8xf32>
    %9 = vector.shape_cast %8 : vector<1x16x16x8xf32> to vector<16x16x8xf32>
    %c1_16 = arith.constant 1 : index
    %c1_17 = arith.constant 1 : index
    %c0_18 = arith.constant 0 : index
    %10 = vector.load %arg9[%c1_16, %c1_17, %c0_18] : memref<18x18x8xf32, #tpu.memory_space<vmem>>, vector<16x16x8xf32>
    tpu.vector_store %arg9[%c1_16, %c1_17, %c0_18], %9 {strides = array<i32>} : memref<18x18x8xf32, #tpu.memory_space<vmem>>, vector<16x16x8xf32>,
    %c0_19 = arith.constant 0 : index
    %c0_20 = arith.constant 0 : index
    %c0_21 = arith.constant 0 : index
    %11 = vector.load %arg9[%c0_19, %c0_20, %c0_21] : memref<18x18x8xf32, #tpu.memory_space<vmem>>, vector<16x16x8xf32>
    %c0_22 = arith.constant 0 : index
    %c0_23 = arith.constant 0 : index
    %c0_24 = arith.constant 0 : index
    %12 = vector.load %arg10[%c0_22, %c0_23, %c0_24] : memref<16x16x72xf32, #tpu.memory_space<vmem>>, vector<16x16x8xf32>
    tpu.vector_store %arg10[%c0_22, %c0_23, %c0_24], %11 {strides = array<i32>} : memref<16x16x72xf32, #tpu.memory_space<vmem>>, vector<16x16x8xf32>,
    %c0_25 = arith.constant 0 : index
    %c1_26 = arith.constant 1 : index
    %c0_27 = arith.constant 0 : index
    %13 = vector.load %arg9[%c0_25, %c1_26, %c0_27] : memref<18x18x8xf32, #tpu.memory_space<vmem>>, vector<16x16x8xf32>
    %c0_28 = arith.constant 0 : index
    %c0_29 = arith.constant 0 : index
    %c8 = arith.constant 8 : index
    %14 = vector.load %arg10[%c0_28, %c0_29, %c8] : memref<16x16x72xf32, #tpu.memory_space<vmem>>, vector<16x16x8xf32>
    tpu.vector_store %arg10[%c0_28, %c0_29, %c8], %13 {strides = array<i32>} : memref<16x16x72xf32, #tpu.memory_space<vmem>>, vector<16x16x8xf32>,
    %c0_30 = arith.constant 0 : index
    %c2 = arith.constant 2 : index
    %c0_31 = arith.constant 0 : index
    %15 = vector.load %arg9[%c0_30, %c2, %c0_31] : memref<18x18x8xf32, #tpu.memory_space<vmem>>, vector<16x16x8xf32>
    %c0_32 = arith.constant 0 : index
    %c0_33 = arith.constant 0 : index
    %c16 = arith.constant 16 : index
    %16 = vector.load %arg10[%c0_32, %c0_33, %c16] : memref<16x16x72xf32, #tpu.memory_space<vmem>>, vector<16x16x8xf32>
    tpu.vector_store %arg10[%c0_32, %c0_33, %c16], %15 {strides = array<i32>} : memref<16x16x72xf32, #tpu.memory_space<vmem>>, vector<16x16x8xf32>,
    %c1_34 = arith.constant 1 : index
    %c0_35 = arith.constant 0 : index
    %c0_36 = arith.constant 0 : index
    %17 = vector.load %arg9[%c1_34, %c0_35, %c0_36] : memref<18x18x8xf32, #tpu.memory_space<vmem>>, vector<16x16x8xf32>
    %c0_37 = arith.constant 0 : index
    %c0_38 = arith.constant 0 : index
    %c24 = arith.constant 24 : index
    %18 = vector.load %arg10[%c0_37, %c0_38, %c24] : memref<16x16x72xf32, #tpu.memory_space<vmem>>, vector<16x16x8xf32>
    tpu.vector_store %arg10[%c0_37, %c0_38, %c24], %17 {strides = array<i32>} : memref<16x16x72xf32, #tpu.memory_space<vmem>>, vector<16x16x8xf32>,
    %c1_39 = arith.constant 1 : index
    %c1_40 = arith.constant 1 : index
    %c0_41 = arith.constant 0 : index
    %19 = vector.load %arg9[%c1_39, %c1_40, %c0_41] : memref<18x18x8xf32, #tpu.memory_space<vmem>>, vector<16x16x8xf32>
    %c0_42 = arith.constant 0 : index
    %c0_43 = arith.constant 0 : index
    %c32 = arith.constant 32 : index
    %20 = vector.load %arg10[%c0_42, %c0_43, %c32] : memref<16x16x72xf32, #tpu.memory_space<vmem>>, vector<16x16x8xf32>
    tpu.vector_store %arg10[%c0_42, %c0_43, %c32], %19 {strides = array<i32>} : memref<16x16x72xf32, #tpu.memory_space<vmem>>, vector<16x16x8xf32>,
    %c1_44 = arith.constant 1 : index
    %c2_45 = arith.constant 2 : index
    %c0_46 = arith.constant 0 : index
    %21 = vector.load %arg9[%c1_44, %c2_45, %c0_46] : memref<18x18x8xf32, #tpu.memory_space<vmem>>, vector<16x16x8xf32>
    %c0_47 = arith.constant 0 : index
    %c0_48 = arith.constant 0 : index
    %c40 = arith.constant 40 : index
    %22 = vector.load %arg10[%c0_47, %c0_48, %c40] : memref<16x16x72xf32, #tpu.memory_space<vmem>>, vector<16x16x8xf32>
    tpu.vector_store %arg10[%c0_47, %c0_48, %c40], %21 {strides = array<i32>} : memref<16x16x72xf32, #tpu.memory_space<vmem>>, vector<16x16x8xf32>,
    %c2_49 = arith.constant 2 : index
    %c0_50 = arith.constant 0 : index
    %c0_51 = arith.constant 0 : index
    %23 = vector.load %arg9[%c2_49, %c0_50, %c0_51] : memref<18x18x8xf32, #tpu.memory_space<vmem>>, vector<16x16x8xf32>
    %c0_52 = arith.constant 0 : index
    %c0_53 = arith.constant 0 : index
    %c48 = arith.constant 48 : index
    %24 = vector.load %arg10[%c0_52, %c0_53, %c48] : memref<16x16x72xf32, #tpu.memory_space<vmem>>, vector<16x16x8xf32>
    tpu.vector_store %arg10[%c0_52, %c0_53, %c48], %23 {strides = array<i32>} : memref<16x16x72xf32, #tpu.memory_space<vmem>>, vector<16x16x8xf32>,
    %c2_54 = arith.constant 2 : index
    %c1_55 = arith.constant 1 : index
    %c0_56 = arith.constant 0 : index
    %25 = vector.load %arg9[%c2_54, %c1_55, %c0_56] : memref<18x18x8xf32, #tpu.memory_space<vmem>>, vector<16x16x8xf32>
    %c0_57 = arith.constant 0 : index
    %c0_58 = arith.constant 0 : index
    %c56 = arith.constant 56 : index
    %26 = vector.load %arg10[%c0_57, %c0_58, %c56] : memref<16x16x72xf32, #tpu.memory_space<vmem>>, vector<16x16x8xf32>
    tpu.vector_store %arg10[%c0_57, %c0_58, %c56], %25 {strides = array<i32>} : memref<16x16x72xf32, #tpu.memory_space<vmem>>, vector<16x16x8xf32>,
    %c2_59 = arith.constant 2 : index
    %c2_60 = arith.constant 2 : index
    %c0_61 = arith.constant 0 : index
    %27 = vector.load %arg9[%c2_59, %c2_60, %c0_61] : memref<18x18x8xf32, #tpu.memory_space<vmem>>, vector<16x16x8xf32>
    %c0_62 = arith.constant 0 : index
    %c0_63 = arith.constant 0 : index
    %c64 = arith.constant 64 : index
    %28 = vector.load %arg10[%c0_62, %c0_63, %c64] : memref<16x16x72xf32, #tpu.memory_space<vmem>>, vector<16x16x8xf32>
    tpu.vector_store %arg10[%c0_62, %c0_63, %c64], %27 {strides = array<i32>} : memref<16x16x72xf32, #tpu.memory_space<vmem>>, vector<16x16x8xf32>,
    %c0_64 = arith.constant 0 : index
    %c0_65 = arith.constant 0 : index
    %c0_66 = arith.constant 0 : index
    %29 = vector.load %arg10[%c0_64, %c0_65, %c0_66] : memref<16x16x72xf32, #tpu.memory_space<vmem>>, vector<16x16x72xf32>
    %30 = vector.shape_cast %29 : vector<16x16x72xf32> to vector<256x72xf32>
    %c0_67 = arith.constant 0 : index
    %c0_68 = arith.constant 0 : index
    %31 = vector.load %arg2[%c0_67, %c0_68] : memref<72x8xf32, #tpu.memory_space<vmem>>, vector<72x8xf32>
    %cst_69 = arith.constant dense<0.000000e+00> : vector<256x8xf32>
    %32 = tpu.matmul %30, %31, %cst_69 {dimension_numbers = #tpu.dot_dimension_numbers<[1], [0], [0], [1], [0, 0, 1, 1], [], []>} : vector<256x72xf32>, vector<72x8xf32>, vector<256x8xf32> -> vector<256x8xf32>
    %c0_70 = arith.constant 0 : index
    %c0_71 = arith.constant 0 : index
    %33 = vector.load %arg4[%c0_70, %c0_71] : memref<1x8xf32, #tpu.memory_space<vmem>>, vector<1x8xf32>
    %34 = vector.broadcast %33 : vector<1x8xf32> to vector<256x8xf32>
    %35 = arith.mulf %32, %34 : vector<256x8xf32>
    %c0_72 = arith.constant 0 : index
    %c0_73 = arith.constant 0 : index
    %36 = vector.load %arg5[%c0_72, %c0_73] : memref<1x8xf32, #tpu.memory_space<vmem>>, vector<1x8xf32>
    %37 = vector.broadcast %36 : vector<1x8xf32> to vector<256x8xf32>
    %38 = arith.addf %35, %37 : vector<256x8xf32>
    %cst_74 = arith.constant 0.000000e+00 : f32
    %39 = vector.broadcast %cst_74 : f32 to vector<256x8xf32>
    %40 = arith.maximumf %38, %39 : vector<256x8xf32>
    %41 = vector.shape_cast %40 : vector<256x8xf32> to vector<16x16x8xf32>
    %c1_75 = arith.constant 1 : index
    %c1_76 = arith.constant 1 : index
    %c0_77 = arith.constant 0 : index
    %42 = vector.load %arg9[%c1_75, %c1_76, %c0_77] : memref<18x18x8xf32, #tpu.memory_space<vmem>>, vector<16x16x8xf32>
    tpu.vector_store %arg9[%c1_75, %c1_76, %c0_77], %41 {strides = array<i32>} : memref<18x18x8xf32, #tpu.memory_space<vmem>>, vector<16x16x8xf32>,
    %c0_78 = arith.constant 0 : index
    %c0_79 = arith.constant 0 : index
    %c0_80 = arith.constant 0 : index
    %43 = vector.load %arg9[%c0_78, %c0_79, %c0_80] : memref<18x18x8xf32, #tpu.memory_space<vmem>>, vector<16x16x8xf32>
    %c0_81 = arith.constant 0 : index
    %c0_82 = arith.constant 0 : index
    %c0_83 = arith.constant 0 : index
    %44 = vector.load %arg10[%c0_81, %c0_82, %c0_83] : memref<16x16x72xf32, #tpu.memory_space<vmem>>, vector<16x16x8xf32>
    tpu.vector_store %arg10[%c0_81, %c0_82, %c0_83], %43 {strides = array<i32>} : memref<16x16x72xf32, #tpu.memory_space<vmem>>, vector<16x16x8xf32>,
    %c0_84 = arith.constant 0 : index
    %c1_85 = arith.constant 1 : index
    %c0_86 = arith.constant 0 : index
    %45 = vector.load %arg9[%c0_84, %c1_85, %c0_86] : memref<18x18x8xf32, #tpu.memory_space<vmem>>, vector<16x16x8xf32>
    %c0_87 = arith.constant 0 : index
    %c0_88 = arith.constant 0 : index
    %c8_89 = arith.constant 8 : index
    %46 = vector.load %arg10[%c0_87, %c0_88, %c8_89] : memref<16x16x72xf32, #tpu.memory_space<vmem>>, vector<16x16x8xf32>
    tpu.vector_store %arg10[%c0_87, %c0_88, %c8_89], %45 {strides = array<i32>} : memref<16x16x72xf32, #tpu.memory_space<vmem>>, vector<16x16x8xf32>,
    %c0_90 = arith.constant 0 : index
    %c2_91 = arith.constant 2 : index
    %c0_92 = arith.constant 0 : index
    %47 = vector.load %arg9[%c0_90, %c2_91, %c0_92] : memref<18x18x8xf32, #tpu.memory_space<vmem>>, vector<16x16x8xf32>
    %c0_93 = arith.constant 0 : index
    %c0_94 = arith.constant 0 : index
    %c16_95 = arith.constant 16 : index
    %48 = vector.load %arg10[%c0_93, %c0_94, %c16_95] : memref<16x16x72xf32, #tpu.memory_space<vmem>>, vector<16x16x8xf32>
    tpu.vector_store %arg10[%c0_93, %c0_94, %c16_95], %47 {strides = array<i32>} : memref<16x16x72xf32, #tpu.memory_space<vmem>>, vector<16x16x8xf32>,
    %c1_96 = arith.constant 1 : index
    %c0_97 = arith.constant 0 : index
    %c0_98 = arith.constant 0 : index
    %49 = vector.load %arg9[%c1_96, %c0_97, %c0_98] : memref<18x18x8xf32, #tpu.memory_space<vmem>>, vector<16x16x8xf32>
    %c0_99 = arith.constant 0 : index
    %c0_100 = arith.constant 0 : index
    %c24_101 = arith.constant 24 : index
    %50 = vector.load %arg10[%c0_99, %c0_100, %c24_101] : memref<16x16x72xf32, #tpu.memory_space<vmem>>, vector<16x16x8xf32>
    tpu.vector_store %arg10[%c0_99, %c0_100, %c24_101], %49 {strides = array<i32>} : memref<16x16x72xf32, #tpu.memory_space<vmem>>, vector<16x16x8xf32>,
    %c1_102 = arith.constant 1 : index
    %c1_103 = arith.constant 1 : index
    %c0_104 = arith.constant 0 : index
    %51 = vector.load %arg9[%c1_102, %c1_103, %c0_104] : memref<18x18x8xf32, #tpu.memory_space<vmem>>, vector<16x16x8xf32>
    %c0_105 = arith.constant 0 : index
    %c0_106 = arith.constant 0 : index
    %c32_107 = arith.constant 32 : index
    %52 = vector.load %arg10[%c0_105, %c0_106, %c32_107] : memref<16x16x72xf32, #tpu.memory_space<vmem>>, vector<16x16x8xf32>
    tpu.vector_store %arg10[%c0_105, %c0_106, %c32_107], %51 {strides = array<i32>} : memref<16x16x72xf32, #tpu.memory_space<vmem>>, vector<16x16x8xf32>,
    %c1_108 = arith.constant 1 : index
    %c2_109 = arith.constant 2 : index
    %c0_110 = arith.constant 0 : index
    %53 = vector.load %arg9[%c1_108, %c2_109, %c0_110] : memref<18x18x8xf32, #tpu.memory_space<vmem>>, vector<16x16x8xf32>
    %c0_111 = arith.constant 0 : index
    %c0_112 = arith.constant 0 : index
    %c40_113 = arith.constant 40 : index
    %54 = vector.load %arg10[%c0_111, %c0_112, %c40_113] : memref<16x16x72xf32, #tpu.memory_space<vmem>>, vector<16x16x8xf32>
    tpu.vector_store %arg10[%c0_111, %c0_112, %c40_113], %53 {strides = array<i32>} : memref<16x16x72xf32, #tpu.memory_space<vmem>>, vector<16x16x8xf32>,
    %c2_114 = arith.constant 2 : index
    %c0_115 = arith.constant 0 : index
    %c0_116 = arith.constant 0 : index
    %55 = vector.load %arg9[%c2_114, %c0_115, %c0_116] : memref<18x18x8xf32, #tpu.memory_space<vmem>>, vector<16x16x8xf32>
    %c0_117 = arith.constant 0 : index
    %c0_118 = arith.constant 0 : index
    %c48_119 = arith.constant 48 : index
    %56 = vector.load %arg10[%c0_117, %c0_118, %c48_119] : memref<16x16x72xf32, #tpu.memory_space<vmem>>, vector<16x16x8xf32>
    tpu.vector_store %arg10[%c0_117, %c0_118, %c48_119], %55 {strides = array<i32>} : memref<16x16x72xf32, #tpu.memory_space<vmem>>, vector<16x16x8xf32>,
    %c2_120 = arith.constant 2 : index
    %c1_121 = arith.constant 1 : index
    %c0_122 = arith.constant 0 : index
    %57 = vector.load %arg9[%c2_120, %c1_121, %c0_122] : memref<18x18x8xf32, #tpu.memory_space<vmem>>, vector<16x16x8xf32>
    %c0_123 = arith.constant 0 : index
    %c0_124 = arith.constant 0 : index
    %c56_125 = arith.constant 56 : index
    %58 = vector.load %arg10[%c0_123, %c0_124, %c56_125] : memref<16x16x72xf32, #tpu.memory_space<vmem>>, vector<16x16x8xf32>
    tpu.vector_store %arg10[%c0_123, %c0_124, %c56_125], %57 {strides = array<i32>} : memref<16x16x72xf32, #tpu.memory_space<vmem>>, vector<16x16x8xf32>,
    %c2_126 = arith.constant 2 : index
    %c2_127 = arith.constant 2 : index
    %c0_128 = arith.constant 0 : index
    %59 = vector.load %arg9[%c2_126, %c2_127, %c0_128] : memref<18x18x8xf32, #tpu.memory_space<vmem>>, vector<16x16x8xf32>
    %c0_129 = arith.constant 0 : index
    %c0_130 = arith.constant 0 : index
    %c64_131 = arith.constant 64 : index
    %60 = vector.load %arg10[%c0_129, %c0_130, %c64_131] : memref<16x16x72xf32, #tpu.memory_space<vmem>>, vector<16x16x8xf32>
    tpu.vector_store %arg10[%c0_129, %c0_130, %c64_131], %59 {strides = array<i32>} : memref<16x16x72xf32, #tpu.memory_space<vmem>>, vector<16x16x8xf32>,
    %c0_132 = arith.constant 0 : index
    %c0_133 = arith.constant 0 : index
    %c0_134 = arith.constant 0 : index
    %61 = vector.load %arg10[%c0_132, %c0_133, %c0_134] : memref<16x16x72xf32, #tpu.memory_space<vmem>>, vector<16x16x72xf32>
    %62 = vector.shape_cast %61 : vector<16x16x72xf32> to vector<256x72xf32>
    %c0_135 = arith.constant 0 : index
    %c0_136 = arith.constant 0 : index
    %63 = vector.load %arg3[%c0_135, %c0_136] : memref<72x8xf32, #tpu.memory_space<vmem>>, vector<72x8xf32>
    %cst_137 = arith.constant dense<0.000000e+00> : vector<256x8xf32>
    %64 = tpu.matmul %62, %63, %cst_137 {dimension_numbers = #tpu.dot_dimension_numbers<[1], [0], [0], [1], [0, 0, 1, 1], [], []>} : vector<256x72xf32>, vector<72x8xf32>, vector<256x8xf32> -> vector<256x8xf32>
    %c0_138 = arith.constant 0 : index
    %c0_139 = arith.constant 0 : index
    %65 = vector.load %arg6[%c0_138, %c0_139] : memref<1x8xf32, #tpu.memory_space<vmem>>, vector<1x8xf32>
    %66 = vector.broadcast %65 : vector<1x8xf32> to vector<256x8xf32>
    %67 = arith.mulf %64, %66 : vector<256x8xf32>
    %c0_140 = arith.constant 0 : index
    %c0_141 = arith.constant 0 : index
    %68 = vector.load %arg7[%c0_140, %c0_141] : memref<1x8xf32, #tpu.memory_space<vmem>>, vector<1x8xf32>
    %69 = vector.broadcast %68 : vector<1x8xf32> to vector<256x8xf32>
    %70 = arith.addf %67, %69 : vector<256x8xf32>
    %c0_142 = arith.constant 0 : index
    %c0_143 = arith.constant 0 : index
    %c0_144 = arith.constant 0 : index
    %c0_145 = arith.constant 0 : index
    %71 = vector.load %arg1[%c0_142, %c0_143, %c0_144, %c0_145] : memref<1x16x16x8xf32, #tpu.memory_space<vmem>>, vector<1x16x16x8xf32>
    %72 = vector.shape_cast %71 : vector<1x16x16x8xf32> to vector<16x16x8xf32>
    %73 = vector.shape_cast %72 : vector<16x16x8xf32> to vector<256x8xf32>
    %74 = arith.addf %70, %73 : vector<256x8xf32>
    %cst_146 = arith.constant 0.000000e+00 : f32
    %75 = vector.broadcast %cst_146 : f32 to vector<256x8xf32>
    %76 = arith.maximumf %74, %75 : vector<256x8xf32>
    %77 = vector.shape_cast %76 : vector<256x8xf32> to vector<16x16x8xf32>
    %c0_147 = arith.constant 0 : index
    %c0_148 = arith.constant 0 : index
    %c0_149 = arith.constant 0 : index
    %c0_150 = arith.constant 0 : index
    %78 = vector.load %arg8[%c0_147, %c0_148, %c0_149, %c0_150] : memref<1x16x16x8xf32, #tpu.memory_space<vmem>>, vector<1x16x16x8xf32>
    %79 = vector.shape_cast %78 : vector<1x16x16x8xf32> to vector<16x16x8xf32>
    %80 = vector.shape_cast %77 : vector<16x16x8xf32> to vector<1x16x16x8xf32>
    tpu.vector_store %arg8[%c0_147, %c0_148, %c0_149, %c0_150], %80 {strides = array<i32>} : memref<1x16x16x8xf32, #tpu.memory_space<vmem>>, vector<1x16x16x8xf32>,
    return
  }
  func.func @transform_0(%arg0: i32) -> (i32, i32, i32, i32) {
    %c0_i32 = arith.constant 0 : i32
    %c0_i32_0 = arith.constant 0 : i32
    %c0_i32_1 = arith.constant 0 : i32
    %c0_i32_2 = arith.constant 0 : i32
    return %arg0, %c0_i32, %c0_i32_0, %c0_i32_1 : i32, i32, i32, i32
  }
  func.func @transform_1(%arg0: i32) -> (i32, i32) {
    %c0_i32 = arith.constant 0 : i32
    %c0_i32_0 = arith.constant 0 : i32
    %c0_i32_1 = arith.constant 0 : i32
    return %c0_i32, %c0_i32_0 : i32, i32
  }
  func.func @transform_2(%arg0: i32) -> (i32, i32) {
    %c0_i32 = arith.constant 0 : i32
    %c0_i32_0 = arith.constant 0 : i32
    %c0_i32_1 = arith.constant 0 : i32
    return %c0_i32, %c0_i32_0 : i32, i32
  }
  func.func @transform_3(%arg0: i32) -> (i32, i32) {
    %c0_i32 = arith.constant 0 : i32
    %c0_i32_0 = arith.constant 0 : i32
    %c0_i32_1 = arith.constant 0 : i32
    return %c0_i32, %c0_i32_0 : i32, i32
  }
  func.func @transform_4(%arg0: i32) -> (i32, i32) {
    %c0_i32 = arith.constant 0 : i32
    %c0_i32_0 = arith.constant 0 : i32
    %c0_i32_1 = arith.constant 0 : i32
    return %c0_i32, %c0_i32_0 : i32, i32
  }
  func.func @transform_5(%arg0: i32) -> (i32, i32) {
    %c0_i32 = arith.constant 0 : i32
    %c0_i32_0 = arith.constant 0 : i32
    %c0_i32_1 = arith.constant 0 : i32
    return %c0_i32, %c0_i32_0 : i32, i32
  }
  func.func @transform_6(%arg0: i32) -> (i32, i32) {
    %c0_i32 = arith.constant 0 : i32
    %c0_i32_0 = arith.constant 0 : i32
    %c0_i32_1 = arith.constant 0 : i32
    return %c0_i32, %c0_i32_0 : i32, i32
  }
  func.func @transform_7(%arg0: i32) -> (i32, i32, i32, i32) {
    %c0_i32 = arith.constant 0 : i32
    %c0_i32_0 = arith.constant 0 : i32
    %c0_i32_1 = arith.constant 0 : i32
    %c0_i32_2 = arith.constant 0 : i32
    return %arg0, %c0_i32, %c0_i32_0, %c0_i32_1 : i32, i32, i32, i32
  }
}

</mosaic_0001>

<llo_original>
// kernel: tpu_custom_call.1
$region0: #{tpu_custom_call.1}
  #allocation0 [shape = 'u32[]', space=smem, size = 0x4, offset = 0x4, fixed_abs, tag = 'smem constant byte address 0x4 - core index']
  #allocation1 [shape = 'u32[72,128]{1,0:T(1,128)}', space=vmem, size = 0x9000, scoped, tag = 'internal scratch']
  #allocation2 [shape = 'f32[18,18,8]{2,1,0:T(8,128)}', space=vmem, size = 0x36000, scoped, tag = 'scratch operand']
  #allocation3 [shape = 'f32[16,16,72]{2,1,0:T(8,128)}', space=vmem, size = 0x20000, scoped, tag = 'scratch operand']
  %s0 = inlined_call_operand.vmem [shape: f32[2,16,16,8], index: 0, kind: input, shape index: {}]
  %s1 = inlined_call_operand.vmem [shape: f32[72,8], index: 1, kind: input, shape index: {}]
  %s2 = inlined_call_operand.vmem [shape: f32[72,8], index: 2, kind: input, shape index: {}]
  %s3 = inlined_call_operand.vmem [shape: f32[1,8], index: 3, kind: input, shape index: {}]
  %s4 = inlined_call_operand.vmem [shape: f32[1,8], index: 4, kind: input, shape index: {}]
  %s5 = inlined_call_operand.vmem [shape: f32[1,8], index: 5, kind: input, shape index: {}]
  %s6 = inlined_call_operand.vmem [shape: f32[1,8], index: 6, kind: input, shape index: {}]
  %s7 = inlined_call_operand.vmem [shape: f32[2,16,16,8], index: 7, kind: output, shape index: {}]
  %s8 = sld [smem:[#allocation0]]
  $region61: #{tpu_custom_call.1} parent=0
    _
  %s10 = ssub.s32 1, %s8
  %s11 = scalar_select 0, %s10, %s8
  loop: start=0, step=1, limit=4
  $region2: #{tpu_custom_call.1} parent=0 // loop_pre_header
    _
  $region3: #{tpu_custom_call.1} parent=0 // loop_header
    %s13 = sphi 0, %s17
    %p14 = scmp.ge.s32.totalorder %s13, 4
    %s23 = sphi 0, %s25
    %s26 = sphi 0, %s23
    %s27 = sphi 0, %s26
    %s43 = sphi 0, %s27
    %s47 = sphi 0, %s47
    %s49 = sphi 0, %s47
    %s50 = sphi 0, %s49
    %s64 = sphi 0, %s50
    %s68 = sphi 0, %s68
    %s70 = sphi 0, %s68
    %s71 = sphi 0, %s70
    %s85 = sphi 0, %s71
    %s89 = sphi 0, %s89
    %s91 = sphi 0, %s89
    %s92 = sphi 0, %s91
    %s106 = sphi 0, %s92
    %s110 = sphi 0, %s110
    %s112 = sphi 0, %s110
    %s113 = sphi 0, %s112
    %s127 = sphi 0, %s113
    %s131 = sphi 0, %s131
    %s133 = sphi 0, %s131
    %s134 = sphi 0, %s133
    %s148 = sphi 0, %s134
    %s152 = sphi 0, %s152
    %s154 = sphi 0, %s152
    %s155 = sphi 0, %s154
    %s169 = sphi 0, %s155
    %s175 = sphi 0, %s177
    %s178 = sphi 0, %s175
    %s179 = sphi 0, %s178
    %s195 = sphi 0, %s179
  $region4: #{tpu_custom_call.1} parent=0 // loop_header_branch
    %16 = sbr.rel (%p14) target = $region8
  $region5: #{tpu_custom_call.1} parent=0 // loop_body
    %s18 = ssub.s32 %s13, 1
    %s19 = ssub.s32 %s13, 2
    %s20 = sadd.s32 %s13, 1
    %s21 = ssub.s32 %s13, %s20
    %p22 = scmp.eq.s32.totalorder %s21, 0
    %s24 = sadd.s32 %s23, 1
    %s25 = scalar_select %p22, %s23, %s24
    %p28 = pneg %p22
    %p29 = scmp.eq.s32.totalorder %s13, 1
    %p30 = por %p28, %p29
    %p31 = scmp.ne.s32.totalorder %s23, %s26
    %p32 = scmp.eq.s32.totalorder %s13, 0
    %p33 = por %p31, %p32
    %p34 = scmp.ne.s32.totalorder %s23, %s26
    %p35 = scmp.eq.s32.totalorder %s18, 1
    %p36 = por %p34, %p35
    %p37 = scmp.ne.s32.totalorder %s26, %s27
    %p38 = scmp.eq.s32.totalorder %s18, 0
    %p39 = por %p37, %p38
    %p40 = scmp.ne.s32.totalorder %s26, %s27
    %p41 = scmp.eq.s32.totalorder %s19, 1
    %p42 = por %p40, %p41
    %p44 = scmp.ne.s32.totalorder %s27, %s43
    %p45 = scmp.eq.s32.totalorder %s19, 0
    %p46 = por %p44, %p45
    %s48 = sadd.s32 %s47, 1
    %p51 = scmp.eq.s32.totalorder %s13, 1
    %p52 = scmp.ne.s32.totalorder %s47, %s49
    %p53 = scmp.eq.s32.totalorder %s13, 0
    %p54 = por %p52, %p53
    %p55 = scmp.ne.s32.totalorder %s47, %s49
    %p56 = scmp.eq.s32.totalorder %s18, 1
    %p57 = por %p55, %p56
    %p58 = scmp.ne.s32.totalorder %s49, %s50
    %p59 = scmp.eq.s32.totalorder %s18, 0
    %p60 = por %p58, %p59
    %p61 = scmp.ne.s32.totalorder %s49, %s50
    %p62 = scmp.eq.s32.totalorder %s19, 1
    %p63 = por %p61, %p62
    %p65 = scmp.ne.s32.totalorder %s50, %s64
    %p66 = scmp.eq.s32.totalorder %s19, 0
    %p67 = por %p65, %p66
    %s69 = sadd.s32 %s68, 1
    %p72 = scmp.eq.s32.totalorder %s13, 1
    %p73 = scmp.ne.s32.totalorder %s68, %s70
    %p74 = scmp.eq.s32.totalorder %s13, 0
    %p75 = por %p73, %p74
    %p76 = scmp.ne.s32.totalorder %s68, %s70
    %p77 = scmp.eq.s32.totalorder %s18, 1
    %p78 = por %p76, %p77
    %p79 = scmp.ne.s32.totalorder %s70, %s71
    %p80 = scmp.eq.s32.totalorder %s18, 0
    %p81 = por %p79, %p80
    %p82 = scmp.ne.s32.totalorder %s70, %s71
    %p83 = scmp.eq.s32.totalorder %s19, 1
    %p84 = por %p82, %p83
    %p86 = scmp.ne.s32.totalorder %s71, %s85
    %p87 = scmp.eq.s32.totalorder %s19, 0
    %p88 = por %p86, %p87
    %s90 = sadd.s32 %s89, 1
    %p93 = scmp.eq.s32.totalorder %s13, 1
    %p94 = scmp.ne.s32.totalorder %s89, %s91
    %p95 = scmp.eq.s32.totalorder %s13, 0
    %p96 = por %p94, %p95
    %p97 = scmp.ne.s32.totalorder %s89, %s91
    %p98 = scmp.eq.s32.totalorder %s18, 1
    %p99 = por %p97, %p98
    %p100 = scmp.ne.s32.totalorder %s91, %s92
    %p101 = scmp.eq.s32.totalorder %s18, 0
    %p102 = por %p100, %p101
    %p103 = scmp.ne.s32.totalorder %s91, %s92
    %p104 = scmp.eq.s32.totalorder %s19, 1
    %p105 = por %p103, %p104
    %p107 = scmp.ne.s32.totalorder %s92, %s106
    %p108 = scmp.eq.s32.totalorder %s19, 0
    %p109 = por %p107, %p108
    %s111 = sadd.s32 %s110, 1
    %p114 = scmp.eq.s32.totalorder %s13, 1
    %p115 = scmp.ne.s32.totalorder %s110, %s112
    %p116 = scmp.eq.s32.totalorder %s13, 0
    %p117 = por %p115, %p116
    %p118 = scmp.ne.s32.totalorder %s110, %s112
    %p119 = scmp.eq.s32.totalorder %s18, 1
    %p120 = por %p118, %p119
    %p121 = scmp.ne.s32.totalorder %s112, %s113
    %p122 = scmp.eq.s32.totalorder %s18, 0
    %p123 = por %p121, %p122
    %p124 = scmp.ne.s32.totalorder %s112, %s113
    %p125 = scmp.eq.s32.totalorder %s19, 1
    %p126 = por %p124, %p125
    %p128 = scmp.ne.s32.totalorder %s113, %s127
    %p129 = scmp.eq.s32.totalorder %s19, 0
    %p130 = por %p128, %p129
    %s132 = sadd.s32 %s131, 1
    %p135 = scmp.eq.s32.totalorder %s13, 1
    %p136 = scmp.ne.s32.totalorder %s131, %s133
    %p137 = scmp.eq.s32.totalorder %s13, 0
    %p138 = por %p136, %p137
    %p139 = scmp.ne.s32.totalorder %s131, %s133
    %p140 = scmp.eq.s32.totalorder %s18, 1
    %p141 = por %p139, %p140
    %p142 = scmp.ne.s32.totalorder %s133, %s134
    %p143 = scmp.eq.s32.totalorder %s18, 0
    %p144 = por %p142, %p143
    %p145 = scmp.ne.s32.totalorder %s133, %s134
    %p146 = scmp.eq.s32.totalorder %s19, 1
    %p147 = por %p145, %p146
    %p149 = scmp.ne.s32.totalorder %s134, %s148
    %p150 = scmp.eq.s32.totalorder %s19, 0
    %p151 = por %p149, %p150
    %s153 = sadd.s32 %s152, 1
    %p156 = scmp.eq.s32.totalorder %s13, 1
    %p157 = scmp.ne.s32.totalorder %s152, %s154
    %p158 = scmp.eq.s32.totalorder %s13, 0
    %p159 = por %p157, %p158
    %p160 = scmp.ne.s32.totalorder %s152, %s154
    %p161 = scmp.eq.s32.totalorder %s18, 1
    %p162 = por %p160, %p161
    %p163 = scmp.ne.s32.totalorder %s154, %s155
    %p164 = scmp.eq.s32.totalorder %s18, 0
    %p165 = por %p163, %p164
    %p166 = scmp.ne.s32.totalorder %s154, %s155
    %p167 = scmp.eq.s32.totalorder %s19, 1
    %p168 = por %p166, %p167
    %p170 = scmp.ne.s32.totalorder %s155, %s169
    %p171 = scmp.eq.s32.totalorder %s19, 0
    %p172 = por %p170, %p171
    %s173 = ssub.s32 %s13, %s20
    %p174 = scmp.eq.s32.totalorder %s173, 0
    %s176 = sadd.s32 %s175, 1
    %s177 = scalar_select %p174, %s175, %s176
    %p180 = pneg %p174
    %p181 = scmp.eq.s32.totalorder %s13, 1
    %p182 = por %p180, %p181
    %p183 = scmp.ne.s32.totalorder %s175, %s178
    %p184 = scmp.eq.s32.totalorder %s13, 0
    %p185 = por %p183, %p184
    %p186 = scmp.ne.s32.totalorder %s175, %s178
    %p187 = scmp.eq.s32.totalorder %s18, 1
    %p188 = por %p186, %p187
    %p189 = scmp.ne.s32.totalorder %s178, %s179
    %p190 = scmp.eq.s32.totalorder %s18, 0
    %p191 = por %p189, %p190
    %p192 = scmp.ne.s32.totalorder %s178, %s179
    %p193 = scmp.eq.s32.totalorder %s19, 1
    %p194 = por %p192, %p193
    %p196 = scmp.ne.s32.totalorder %s179, %s195
    %p197 = scmp.eq.s32.totalorder %s19, 0
    %p198 = por %p196, %p197
    %p199 = scmp.le.s32.totalorder 1, %s13
    %p200 = scmp.lt.s32.totalorder %s13, 3
    %p201 = pnand %p199, %p200
    %p202 = pneg %p201
    // Predicated region
    $region9: #{tpu_custom_call.1} parent=5 // pred_check
      _
    $region10: #{tpu_custom_call.1} parent=5 // pred_check_branch
      %204 = sbr.rel (%p201) target = $region12
    $region11: #{tpu_custom_call.1} parent=5 // pred_region
      %s205 = ssub.s32 %s13, 1
      // Predicated region
      $region13: #{tpu_custom_call.1} parent=11 // pred_check
        %p206 = pneg %p60
      $region14: #{tpu_custom_call.1} parent=11 // pred_check_branch
        %208 = sbr.rel (%p206) target = $region16
      $region15: #{tpu_custom_call.1} parent=11 // pred_region
        _
      $region16: #{tpu_custom_call.1} parent=11 // pred_fallthru
        _
      // Predicated region
      $region17: #{tpu_custom_call.1} parent=11 // pred_check
        %p209 = pneg %p81
      $region18: #{tpu_custom_call.1} parent=11 // pred_check_branch
        %211 = sbr.rel (%p209) target = $region20
      $region19: #{tpu_custom_call.1} parent=11 // pred_region
        _
      $region20: #{tpu_custom_call.1} parent=11 // pred_fallthru
        _
      // Predicated region
      $region21: #{tpu_custom_call.1} parent=11 // pred_check
        %p212 = pneg %p102
      $region22: #{tpu_custom_call.1} parent=11 // pred_check_branch
        %214 = sbr.rel (%p212) target = $region24
      $region23: #{tpu_custom_call.1} parent=11 // pred_region
        _
      $region24: #{tpu_custom_call.1} parent=11 // pred_fallthru
        _
      // Predicated region
      $region25: #{tpu_custom_call.1} parent=11 // pred_check
        %p215 = pneg %p123
      $region26: #{tpu_custom_call.1} parent=11 // pred_check_branch
        %217 = sbr.rel (%p215) target = $region28
      $region27: #{tpu_custom_call.1} parent=11 // pred_region
        _
      $region28: #{tpu_custom_call.1} parent=11 // pred_fallthru
        _
      // Predicated region
      $region29: #{tpu_custom_call.1} parent=11 // pred_check
        %p218 = pneg %p144
      $region30: #{tpu_custom_call.1} parent=11 // pred_check_branch
        %220 = sbr.rel (%p218) target = $region32
      $region31: #{tpu_custom_call.1} parent=11 // pred_region
        _
      $region32: #{tpu_custom_call.1} parent=11 // pred_fallthru
        _
      // Predicated region
      $region33: #{tpu_custom_call.1} parent=11 // pred_check
        %p221 = pneg %p165
      $region34: #{tpu_custom_call.1} parent=11 // pred_check_branch
        %223 = sbr.rel (%p221) target = $region36
      $region35: #{tpu_custom_call.1} parent=11 // pred_region
        _
      $region36: #{tpu_custom_call.1} parent=11 // pred_fallthru
        _
    $region12: #{tpu_custom_call.1} parent=5 // pred_fallthru
      _
    %p224 = scmp.lt.s32.totalorder %s13, 2
    // Predicated region
    $region37: #{tpu_custom_call.1} parent=5 // pred_check
      %p225 = pneg %p224
    $region38: #{tpu_custom_call.1} parent=5 // pred_check_branch
      %227 = sbr.rel (%p225) target = $region40
    $region39: #{tpu_custom_call.1} parent=5 // pred_region
      // Predicated region
      $region41: #{tpu_custom_call.1} parent=39 // pred_check
        %p228 = pneg %p33
      $region42: #{tpu_custom_call.1} parent=39 // pred_check_branch
        %230 = sbr.rel (%p228) target = $region44
      $region43: #{tpu_custom_call.1} parent=39 // pred_region
        %p231 = scmp.lt.s32.totalorder %s13, 1
        %s232 = scalar_select %p231, %s13, 1
        %s233 = smul.addr %s232, 32
        %s234 = smul.addr %s233, 8
        %s235 = scalar_lea.vmem %s0, %s234
      $region44: #{tpu_custom_call.1} parent=39 // pred_fallthru
        _
    $region40: #{tpu_custom_call.1} parent=5 // pred_fallthru
      _
    %p236 = scmp.le.s32.totalorder 1, %s13
    %p237 = scmp.lt.s32.totalorder %s13, 3
    %p238 = pnand %p236, %p237
    %p239 = pneg %p238
    // Predicated region
    $region45: #{tpu_custom_call.1} parent=5 // pred_check
      _
    $region46: #{tpu_custom_call.1} parent=5 // pred_check_branch
      %241 = sbr.rel (%p238) target = $region48
    $region47: #{tpu_custom_call.1} parent=5 // pred_region
      %s242 = ssub.s32 %s13, 1
      %p243 = scmp.lt.s32.totalorder %s18, 1
      %s244 = scalar_select %p243, %s18, 1
      %s245 = smul.addr %s244, 32
      %s246 = smul.addr %s245, 8
      %s247 = scalar_lea.vmem %s0, %s246
      %p248 = pneg %p39
      %p249 = pneg %p36
      %p250 = pneg %p60
      %p251 = pneg %p57
      %p252 = pneg %p81
      %p253 = pneg %p78
      %p254 = pneg %p102
      %p255 = pneg %p99
      %p256 = pneg %p123
      %p257 = pneg %p120
      %p258 = pneg %p144
      %p259 = pneg %p141
      %p260 = pneg %p165
      %p261 = pneg %p162
      %p262 = pneg %p191
      %p263 = pneg %p188
      %p264 = scmp.lt.s32.totalorder %s18, 1
      %s265 = scalar_select %p264, %s18, 1
      %s266 = smul.addr %s265, 32
      %s267 = smul.addr %s266, 8
      %s268 = scalar_lea.vmem %s7, %s267
      %p269 = scmp.lt.s32.totalorder %s18, 1
      %s270 = scalar_select %p269, %s18, 1
      %s271 = smul.addr %s270, 32
      %s272 = smul.addr %s271, 8
      %s273 = scalar_lea.vmem %s0, %s272
      %p274 = scmp.lt.s32.totalorder %s18, 1
      %s275 = scalar_select %p274, %s18, 1
      %s276 = smul.addr %s275, 32
      %s277 = smul.addr %s276, 8
      %s278 = scalar_lea.vmem %s7, %s277
      %vm279 = vcmask 64512
      %280 = vst.msk [vmem:[#allocation2] sm:$0xff] %vm279, 0.0
      %281 = vst.msk [vmem:[#allocation2 + $0x8] sm:$0xff] %vm279, 0.0
      %vm282 = vcmask 58368
      %283 = vst.msk [vmem:[#allocation2 + $0x10] sm:$0x3] %vm282, 0.0
      %s284 = scalar_lea.vmem [#allocation2], 408
      %285 = vst.msk [vmem:[%s284] sm:$0xff] %vm279, 0.0
      %286 = vst.msk [vmem:[%s284 + $0x8] sm:$0xff] %vm279, 0.0
      %287 = vst.msk [vmem:[%s284 + $0x10] sm:$0x3] %vm282, 0.0
      %s288 = scalar_lea.vmem [#allocation2], 24
      %vm289 = vcmask 57344
      %290 = vst.msk [vmem:[%s288] sm:$0x1] %vm289, 0.0
      %291 = vst.msk [vmem:[%s288 + $0x18] sm:$0x1] %vm289, 0.0
      %292 = vst.msk [vmem:[%s288 + $0x30] sm:$0x1] %vm289, 0.0
      %293 = vst.msk [vmem:[%s288 + $0x48] sm:$0x1] %vm289, 0.0
      %294 = vst.msk [vmem:[%s288 + $0x60] sm:$0x1] %vm289, 0.0
      %295 = vst.msk [vmem:[%s288 + $0x78] sm:$0x1] %vm289, 0.0
      %296 = vst.msk [vmem:[%s288 + $0x90] sm:$0x1] %vm289, 0.0
      %297 = vst.msk [vmem:[%s288 + $0xa8] sm:$0x1] %vm289, 0.0
      %298 = vst.msk [vmem:[%s288 + $0xc0] sm:$0x1] %vm289, 0.0
      %299 = vst.msk [vmem:[%s288 + $0xd8] sm:$0x1] %vm289, 0.0
      %300 = vst.msk [vmem:[%s288 + $0xf0] sm:$0x1] %vm289, 0.0
      %301 = vst.msk [vmem:[%s288 + $0x108] sm:$0x1] %vm289, 0.0
      %302 = vst.msk [vmem:[%s288 + $0x120] sm:$0x1] %vm289, 0.0
      %303 = vst.msk [vmem:[%s288 + $0x138] sm:$0x1] %vm289, 0.0
      %304 = vst.msk [vmem:[%s288 + $0x150] sm:$0x1] %vm289, 0.0
      %305 = vst.msk [vmem:[%s288 + $0x168] sm:$0x1] %vm289, 0.0
      %306 = vst.msk [vmem:[%s288 + $0x11] sm:$0x1] %vm289, 0.0
      %307 = vst.msk [vmem:[%s288 + $0x29] sm:$0x1] %vm289, 0.0
      %308 = vst.msk [vmem:[%s288 + $0x41] sm:$0x1] %vm289, 0.0
      %309 = vst.msk [vmem:[%s288 + $0x59] sm:$0x1] %vm289, 0.0
      %310 = vst.msk [vmem:[%s288 + $0x71] sm:$0x1] %vm289, 0.0
      %311 = vst.msk [vmem:[%s288 + $0x89] sm:$0x1] %vm289, 0.0
      %312 = vst.msk [vmem:[%s288 + $0xa1] sm:$0x1] %vm289, 0.0
      %313 = vst.msk [vmem:[%s288 + $0xb9] sm:$0x1] %vm289, 0.0
      %314 = vst.msk [vmem:[%s288 + $0xd1] sm:$0x1] %vm289, 0.0
      %315 = vst.msk [vmem:[%s288 + $0xe9] sm:$0x1] %vm289, 0.0
      %316 = vst.msk [vmem:[%s288 + $0x101] sm:$0x1] %vm289, 0.0
      %317 = vst.msk [vmem:[%s288 + $0x119] sm:$0x1] %vm289, 0.0
      %318 = vst.msk [vmem:[%s288 + $0x131] sm:$0x1] %vm289, 0.0
      %319 = vst.msk [vmem:[%s288 + $0x149] sm:$0x1] %vm289, 0.0
      %320 = vst.msk [vmem:[%s288 + $0x161] sm:$0x1] %vm289, 0.0
      %321 = vst.msk [vmem:[%s288 + $0x179] sm:$0x1] %vm289, 0.0
      %v322 = vld [vmem:[%s273] sm:$0xff]
      %v323 = vld [vmem:[%s273 + $0x8] sm:$0xff]
      %v324 = vld [vmem:[%s273 + $0x10] sm:$0xff]
      %v325 = vld [vmem:[%s273 + $0x18] sm:$0xff]
      %v326 = vld [vmem:[%s273 + $0x20] sm:$0xff]
      %v327 = vld [vmem:[%s273 + $0x28] sm:$0xff]
      %v328 = vld [vmem:[%s273 + $0x30] sm:$0xff]
      %v329 = vld [vmem:[%s273 + $0x38] sm:$0xff]
      %v330 = vld [vmem:[%s273 + $0x40] sm:$0xff]
      %v331 = vld [vmem:[%s273 + $0x48] sm:$0xff]
      %v332 = vld [vmem:[%s273 + $0x50] sm:$0xff]
      %v333 = vld [vmem:[%s273 + $0x58] sm:$0xff]
      %v334 = vld [vmem:[%s273 + $0x60] sm:$0xff]
      %v335 = vld [vmem:[%s273 + $0x68] sm:$0xff]
      %v336 = vld [vmem:[%s273 + $0x70] sm:$0xff]
      %v337 = vld [vmem:[%s273 + $0x78] sm:$0xff]
      %v338 = vld [vmem:[%s273 + $0x80] sm:$0xff]
      %v339 = vld [vmem:[%s273 + $0x88] sm:$0xff]
      %v340 = vld [vmem:[%s273 + $0x90] sm:$0xff]
      %v341 = vld [vmem:[%s273 + $0x98] sm:$0xff]
      %v342 = vld [vmem:[%s273 + $0xa0] sm:$0xff]
      %v343 = vld [vmem:[%s273 + $0xa8] sm:$0xff]
      %v344 = vld [vmem:[%s273 + $0xb0] sm:$0xff]
      %v345 = vld [vmem:[%s273 + $0xb8] sm:$0xff]
      %v346 = vld [vmem:[%s273 + $0xc0] sm:$0xff]
      %v347 = vld [vmem:[%s273 + $0xc8] sm:$0xff]
      %v348 = vld [vmem:[%s273 + $0xd0] sm:$0xff]
      %v349 = vld [vmem:[%s273 + $0xd8] sm:$0xff]
      %v350 = vld [vmem:[%s273 + $0xe0] sm:$0xff]
      %v351 = vld [vmem:[%s273 + $0xe8] sm:$0xff]
      %v352 = vld [vmem:[%s273 + $0xf0] sm:$0xff]
      %v353 = vld [vmem:[%s273 + $0xf8] sm:$0xff]
      %354 = vst.msk [vmem:[%s288 + $0x1] sm:$0xff] %vm279, %v322
      %355 = vst.msk [vmem:[%s288 + $0x9] sm:$0xff] %vm279, %v323
      %356 = vst.msk [vmem:[%s288 + $0x19] sm:$0xff] %vm279, %v324
      %357 = vst.msk [vmem:[%s288 + $0x21] sm:$0xff] %vm279, %v325
      %358 = vst.msk [vmem:[%s288 + $0x31] sm:$0xff] %vm279, %v326
      %359 = vst.msk [vmem:[%s288 + $0x39] sm:$0xff] %vm279, %v327
      %360 = vst.msk [vmem:[%s288 + $0x49] sm:$0xff] %vm279, %v328
      %361 = vst.msk [vmem:[%s288 + $0x51] sm:$0xff] %vm279, %v329
      %362 = vst.msk [vmem:[%s288 + $0x61] sm:$0xff] %vm279, %v330
      %363 = vst.msk [vmem:[%s288 + $0x69] sm:$0xff] %vm279, %v331
      %364 = vst.msk [vmem:[%s288 + $0x79] sm:$0xff] %vm279, %v332
      %365 = vst.msk [vmem:[%s288 + $0x81] sm:$0xff] %vm279, %v333
      %366 = vst.msk [vmem:[%s288 + $0x91] sm:$0xff] %vm279, %v334
      %367 = vst.msk [vmem:[%s288 + $0x99] sm:$0xff] %vm279, %v335
      %368 = vst.msk [vmem:[%s288 + $0xa9] sm:$0xff] %vm279, %v336
      %369 = vst.msk [vmem:[%s288 + $0xb1] sm:$0xff] %vm279, %v337
      %370 = vst.msk [vmem:[%s288 + $0xc1] sm:$0xff] %vm279, %v338
      %371 = vst.msk [vmem:[%s288 + $0xc9] sm:$0xff] %vm279, %v339
      %372 = vst.msk [vmem:[%s288 + $0xd9] sm:$0xff] %vm279, %v340
      %373 = vst.msk [vmem:[%s288 + $0xe1] sm:$0xff] %vm279, %v341
      %374 = vst.msk [vmem:[%s288 + $0xf1] sm:$0xff] %vm279, %v342
      %375 = vst.msk [vmem:[%s288 + $0xf9] sm:$0xff] %vm279, %v343
      %376 = vst.msk [vmem:[%s288 + $0x109] sm:$0xff] %vm279, %v344
      %377 = vst.msk [vmem:[%s288 + $0x111] sm:$0xff] %vm279, %v345
      %378 = vst.msk [vmem:[%s288 + $0x121] sm:$0xff] %vm279, %v346
      %379 = vst.msk [vmem:[%s288 + $0x129] sm:$0xff] %vm279, %v347
      %380 = vst.msk [vmem:[%s288 + $0x139] sm:$0xff] %vm279, %v348
      %381 = vst.msk [vmem:[%s288 + $0x141] sm:$0xff] %vm279, %v349
      %382 = vst.msk [vmem:[%s288 + $0x151] sm:$0xff] %vm279, %v350
      %383 = vst.msk [vmem:[%s288 + $0x159] sm:$0xff] %vm279, %v351
      %384 = vst.msk [vmem:[%s288 + $0x169] sm:$0xff] %vm279, %v352
      %385 = vst.msk [vmem:[%s288 + $0x171] sm:$0xff] %vm279, %v353
      %v386 = vld [vmem:[#allocation2] sm:$0xff]
      %v387 = vld [vmem:[#allocation2 + $0x8] sm:$0xff]
      %v388 = vld [vmem:[#allocation2 + $0x18] sm:$0xff]
      %v389 = vld [vmem:[#allocation2 + $0x20] sm:$0xff]
      %v390 = vld [vmem:[#allocation2 + $0x30] sm:$0xff]
      %v391 = vld [vmem:[#allocation2 + $0x38] sm:$0xff]
      %v392 = vld [vmem:[#allocation2 + $0x48] sm:$0xff]
      %v393 = vld [vmem:[#allocation2 + $0x50] sm:$0xff]
      %v394 = vld [vmem:[#allocation2 + $0x60] sm:$0xff]
      %v395 = vld [vmem:[#allocation2 + $0x68] sm:$0xff]
      %v396 = vld [vmem:[#allocation2 + $0x78] sm:$0xff]
      %v397 = vld [vmem:[#allocation2 + $0x80] sm:$0xff]
      %v398 = vld [vmem:[#allocation2 + $0x90] sm:$0xff]
      %v399 = vld [vmem:[#allocation2 + $0x98] sm:$0xff]
      %v400 = vld [vmem:[#allocation2 + $0xa8] sm:$0xff]
      %v401 = vld [vmem:[#allocation2 + $0xb0] sm:$0xff]
      %v402 = vld [vmem:[#allocation2 + $0xc0] sm:$0xff]
      %v403 = vld [vmem:[#allocation2 + $0xc8] sm:$0xff]
      %v404 = vld [vmem:[#allocation2 + $0xd8] sm:$0xff]
      %v405 = vld [vmem:[#allocation2 + $0xe0] sm:$0xff]
      %v406 = vld [vmem:[#allocation2 + $0xf0] sm:$0xff]
      %v407 = vld [vmem:[#allocation2 + $0xf8] sm:$0xff]
      %v408 = vld [vmem:[#allocation2 + $0x108] sm:$0xff]
      %v409 = vld [vmem:[#allocation2 + $0x110] sm:$0xff]
      %v410 = vld [vmem:[#allocation2 + $0x120] sm:$0xff]
      %v411 = vld [vmem:[#allocation2 + $0x128] sm:$0xff]
      %v412 = vld [vmem:[#allocation2 + $0x138] sm:$0xff]
      %v413 = vld [vmem:[#allocation2 + $0x140] sm:$0xff]
      %v414 = vld [vmem:[#allocation2 + $0x150] sm:$0xff]
      %v415 = vld [vmem:[#allocation2 + $0x158] sm:$0xff]
      %v416 = vld [vmem:[#allocation2 + $0x168] sm:$0xff]
      %v417 = vld [vmem:[#allocation2 + $0x170] sm:$0xff]
      %418 = vst.msk [vmem:[#allocation3] sm:$0xff] %vm279, %v386
      %419 = vst.msk [vmem:[#allocation3 + $0x8] sm:$0xff] %vm279, %v387
      %420 = vst.msk [vmem:[#allocation3 + $0x10] sm:$0xff] %vm279, %v388
      %421 = vst.msk [vmem:[#allocation3 + $0x18] sm:$0xff] %vm279, %v389
      %422 = vst.msk [vmem:[#allocation3 + $0x20] sm:$0xff] %vm279, %v390
      %423 = vst.msk [vmem:[#allocation3 + $0x28] sm:$0xff] %vm279, %v391
      %424 = vst.msk [vmem:[#allocation3 + $0x30] sm:$0xff] %vm279, %v392
      %425 = vst.msk [vmem:[#allocation3 + $0x38] sm:$0xff] %vm279, %v393
      %426 = vst.msk [vmem:[#allocation3 + $0x40] sm:$0xff] %vm279, %v394
      %427 = vst.msk [vmem:[#allocation3 + $0x48] sm:$0xff] %vm279, %v395
      %428 = vst.msk [vmem:[#allocation3 + $0x50] sm:$0xff] %vm279, %v396
      %429 = vst.msk [vmem:[#allocation3 + $0x58] sm:$0xff] %vm279, %v397
      %430 = vst.msk [vmem:[#allocation3 + $0x60] sm:$0xff] %vm279, %v398
      %431 = vst.msk [vmem:[#allocation3 + $0x68] sm:$0xff] %vm279, %v399
      %432 = vst.msk [vmem:[#allocation3 + $0x70] sm:$0xff] %vm279, %v400
      %433 = vst.msk [vmem:[#allocation3 + $0x78] sm:$0xff] %vm279, %v401
      %434 = vst.msk [vmem:[#allocation3 + $0x80] sm:$0xff] %vm279, %v402
      %435 = vst.msk [vmem:[#allocation3 + $0x88] sm:$0xff] %vm279, %v403
      %436 = vst.msk [vmem:[#allocation3 + $0x90] sm:$0xff] %vm279, %v404
      %437 = vst.msk [vmem:[#allocation3 + $0x98] sm:$0xff] %vm279, %v405
      %438 = vst.msk [vmem:[#allocation3 + $0xa0] sm:$0xff] %vm279, %v406
      %439 = vst.msk [vmem:[#allocation3 + $0xa8] sm:$0xff] %vm279, %v407
      %440 = vst.msk [vmem:[#allocation3 + $0xb0] sm:$0xff] %vm279, %v408
      %441 = vst.msk [vmem:[#allocation3 + $0xb8] sm:$0xff] %vm279, %v409
      %442 = vst.msk [vmem:[#allocation3 + $0xc0] sm:$0xff] %vm279, %v410
      %443 = vst.msk [vmem:[#allocation3 + $0xc8] sm:$0xff] %vm279, %v411
      %444 = vst.msk [vmem:[#allocation3 + $0xd0] sm:$0xff] %vm279, %v412
      %445 = vst.msk [vmem:[#allocation3 + $0xd8] sm:$0xff] %vm279, %v413
      %446 = vst.msk [vmem:[#allocation3 + $0xe0] sm:$0xff] %vm279, %v414
      %447 = vst.msk [vmem:[#allocation3 + $0xe8] sm:$0xff] %vm279, %v415
      %448 = vst.msk [vmem:[#allocation3 + $0xf0] sm:$0xff] %vm279, %v416
      %449 = vst.msk [vmem:[#allocation3 + $0xf8] sm:$0xff] %vm279, %v417
      %v450 = vld [vmem:[#allocation2 + $0x1] sm:$0xff]
      %v451 = vld [vmem:[#allocation2 + $0x9] sm:$0xff]
      %v452 = vld [vmem:[#allocation2 + $0x19] sm:$0xff]
      %v453 = vld [vmem:[#allocation2 + $0x21] sm:$0xff]
      %v454 = vld [vmem:[#allocation2 + $0x31] sm:$0xff]
      %v455 = vld [vmem:[#allocation2 + $0x39] sm:$0xff]
      %v456 = vld [vmem:[#allocation2 + $0x49] sm:$0xff]
      %v457 = vld [vmem:[#allocation2 + $0x51] sm:$0xff]
      %v458 = vld [vmem:[#allocation2 + $0x61] sm:$0xff]
      %v459 = vld [vmem:[#allocation2 + $0x69] sm:$0xff]
      %v460 = vld [vmem:[#allocation2 + $0x79] sm:$0xff]
      %v461 = vld [vmem:[#allocation2 + $0x81] sm:$0xff]
      %v462 = vld [vmem:[#allocation2 + $0x91] sm:$0xff]
      %v463 = vld [vmem:[#allocation2 + $0x99] sm:$0xff]
      %v464 = vld [vmem:[#allocation2 + $0xa9] sm:$0xff]
      %v465 = vld [vmem:[#allocation2 + $0xb1] sm:$0xff]
      %v466 = vld [vmem:[#allocation2 + $0xc1] sm:$0xff]
      %v467 = vld [vmem:[#allocation2 + $0xc9] sm:$0xff]
      %v468 = vld [vmem:[#allocation2 + $0xd9] sm:$0xff]
      %v469 = vld [vmem:[#allocation2 + $0xe1] sm:$0xff]
      %v470 = vld [vmem:[#allocation2 + $0xf1] sm:$0xff]
      %v471 = vld [vmem:[#allocation2 + $0xf9] sm:$0xff]
      %v472 = vld [vmem:[#allocation2 + $0x109] sm:$0xff]
      %v473 = vld [vmem:[#allocation2 + $0x111] sm:$0xff]
      %v474 = vld [vmem:[#allocation2 + $0x121] sm:$0xff]
      %v475 = vld [vmem:[#allocation2 + $0x129] sm:$0xff]
      %v476 = vld [vmem:[#allocation2 + $0x139] sm:$0xff]
      %v477 = vld [vmem:[#allocation2 + $0x141] sm:$0xff]
      %v478 = vld [vmem:[#allocation2 + $0x151] sm:$0xff]
      %v479 = vld [vmem:[#allocation2 + $0x159] sm:$0xff]
      %v480 = vld [vmem:[#allocation2 + $0x169] sm:$0xff]
      %v481 = vld [vmem:[#allocation2 + $0x171] sm:$0xff]
      %514 = vrot.lane.b32.xlu0 %v450, 8
      %v515 = vpop.permute.xlu0 %514
      %516 = vrot.lane.b32.xlu0 %v451, 8
      %v517 = vpop.permute.xlu0 %516
      %518 = vrot.lane.b32.xlu0 %v452, 8
      %v519 = vpop.permute.xlu0 %518
      %520 = vrot.lane.b32.xlu0 %v453, 8
      %v521 = vpop.permute.xlu0 %520
      %522 = vrot.lane.b32.xlu0 %v454, 8
      %v523 = vpop.permute.xlu0 %522
      %524 = vrot.lane.b32.xlu0 %v455, 8
      %v525 = vpop.permute.xlu0 %524
      %526 = vrot.lane.b32.xlu0 %v456, 8
      %v527 = vpop.permute.xlu0 %526
      %528 = vrot.lane.b32.xlu0 %v457, 8
      %v529 = vpop.permute.xlu0 %528
      %530 = vrot.lane.b32.xlu0 %v458, 8
      %v531 = vpop.permute.xlu0 %530
      %532 = vrot.lane.b32.xlu0 %v459, 8
      %v533 = vpop.permute.xlu0 %532
      %534 = vrot.lane.b32.xlu0 %v460, 8
      %v535 = vpop.permute.xlu0 %534
      %536 = vrot.lane.b32.xlu0 %v461, 8
      %v537 = vpop.permute.xlu0 %536
      %538 = vrot.lane.b32.xlu0 %v462, 8
      %v539 = vpop.permute.xlu0 %538
      %540 = vrot.lane.b32.xlu0 %v463, 8
      %v541 = vpop.permute.xlu0 %540
      %542 = vrot.lane.b32.xlu0 %v464, 8
      %v543 = vpop.permute.xlu0 %542
      %544 = vrot.lane.b32.xlu0 %v465, 8
      %v545 = vpop.permute.xlu0 %544
      %546 = vrot.lane.b32.xlu0 %v466, 8
      %v547 = vpop.permute.xlu0 %546
      %548 = vrot.lane.b32.xlu0 %v467, 8
      %v549 = vpop.permute.xlu0 %548
      %550 = vrot.lane.b32.xlu0 %v468, 8
      %v551 = vpop.permute.xlu0 %550
      %552 = vrot.lane.b32.xlu0 %v469, 8
      %v553 = vpop.permute.xlu0 %552
      %554 = vrot.lane.b32.xlu0 %v470, 8
      %v555 = vpop.permute.xlu0 %554
      %556 = vrot.lane.b32.xlu0 %v471, 8
      %v557 = vpop.permute.xlu0 %556
      %558 = vrot.lane.b32.xlu0 %v472, 8
      %v559 = vpop.permute.xlu0 %558
      %560 = vrot.lane.b32.xlu0 %v473, 8
      %v561 = vpop.permute.xlu0 %560
      %562 = vrot.lane.b32.xlu0 %v474, 8
      %v563 = vpop.permute.xlu0 %562
      %564 = vrot.lane.b32.xlu0 %v475, 8
      %v565 = vpop.permute.xlu0 %564
      %566 = vrot.lane.b32.xlu0 %v476, 8
      %v567 = vpop.permute.xlu0 %566
      %568 = vrot.lane.b32.xlu0 %v477, 8
      %v569 = vpop.permute.xlu0 %568
      %570 = vrot.lane.b32.xlu0 %v478, 8
      %v571 = vpop.permute.xlu0 %570
      %572 = vrot.lane.b32.xlu0 %v479, 8
      %v573 = vpop.permute.xlu0 %572
      %574 = vrot.lane.b32.xlu0 %v480, 8
      %v575 = vpop.permute.xlu0 %574
      %576 = vrot.lane.b32.xlu0 %v481, 8
      %v577 = vpop.permute.xlu0 %576
      %vm610 = vcmask 130112
      %611 = vst.msk [vmem:[#allocation3] sm:$0xff] %vm610, %v515
      %612 = vst.msk [vmem:[#allocation3 + $0x8] sm:$0xff] %vm610, %v517
      %613 = vst.msk [vmem:[#allocation3 + $0x10] sm:$0xff] %vm610, %v519
      %614 = vst.msk [vmem:[#allocation3 + $0x18] sm:$0xff] %vm610, %v521
      %615 = vst.msk [vmem:[#allocation3 + $0x20] sm:$0xff] %vm610, %v523
      %616 = vst.msk [vmem:[#allocation3 + $0x28] sm:$0xff] %vm610, %v525
      %617 = vst.msk [vmem:[#allocation3 + $0x30] sm:$0xff] %vm610, %v527
      %618 = vst.msk [vmem:[#allocation3 + $0x38] sm:$0xff] %vm610, %v529
      %619 = vst.msk [vmem:[#allocation3 + $0x40] sm:$0xff] %vm610, %v531
      %620 = vst.msk [vmem:[#allocation3 + $0x48] sm:$0xff] %vm610, %v533
      %621 = vst.msk [vmem:[#allocation3 + $0x50] sm:$0xff] %vm610, %v535
      %622 = vst.msk [vmem:[#allocation3 + $0x58] sm:$0xff] %vm610, %v537
      %623 = vst.msk [vmem:[#allocation3 + $0x60] sm:$0xff] %vm610, %v539
      %624 = vst.msk [vmem:[#allocation3 + $0x68] sm:$0xff] %vm610, %v541
      %625 = vst.msk [vmem:[#allocation3 + $0x70] sm:$0xff] %vm610, %v543
      %626 = vst.msk [vmem:[#allocation3 + $0x78] sm:$0xff] %vm610, %v545
      %627 = vst.msk [vmem:[#allocation3 + $0x80] sm:$0xff] %vm610, %v547
      %628 = vst.msk [vmem:[#allocation3 + $0x88] sm:$0xff] %vm610, %v549
      %629 = vst.msk [vmem:[#allocation3 + $0x90] sm:$0xff] %vm610, %v551
      %630 = vst.msk [vmem:[#allocation3 + $0x98] sm:$0xff] %vm610, %v553
      %631 = vst.msk [vmem:[#allocation3 + $0xa0] sm:$0xff] %vm610, %v555
      %632 = vst.msk [vmem:[#allocation3 + $0xa8] sm:$0xff] %vm610, %v557
      %633 = vst.msk [vmem:[#allocation3 + $0xb0] sm:$0xff] %vm610, %v559
      %634 = vst.msk [vmem:[#allocation3 + $0xb8] sm:$0xff] %vm610, %v561
      %635 = vst.msk [vmem:[#allocation3 + $0xc0] sm:$0xff] %vm610, %v563
      %636 = vst.msk [vmem:[#allocation3 + $0xc8] sm:$0xff] %vm610, %v565
      %637 = vst.msk [vmem:[#allocation3 + $0xd0] sm:$0xff] %vm610, %v567
      %638 = vst.msk [vmem:[#allocation3 + $0xd8] sm:$0xff] %vm610, %v569
      %639 = vst.msk [vmem:[#allocation3 + $0xe0] sm:$0xff] %vm610, %v571
      %640 = vst.msk [vmem:[#allocation3 + $0xe8] sm:$0xff] %vm610, %v573
      %641 = vst.msk [vmem:[#allocation3 + $0xf0] sm:$0xff] %vm610, %v575
      %642 = vst.msk [vmem:[#allocation3 + $0xf8] sm:$0xff] %vm610, %v577
      %v643 = vld [vmem:[#allocation2 + $0x2] sm:$0xff]
      %v644 = vld [vmem:[#allocation2 + $0xa] sm:$0xff]
      %v645 = vld [vmem:[#allocation2 + $0x1a] sm:$0xff]
      %v646 = vld [vmem:[#allocation2 + $0x22] sm:$0xff]
      %v647 = vld [vmem:[#allocation2 + $0x32] sm:$0xff]
      %v648 = vld [vmem:[#allocation2 + $0x3a] sm:$0xff]
      %v649 = vld [vmem:[#allocation2 + $0x4a] sm:$0xff]
      %v650 = vld [vmem:[#allocation2 + $0x52] sm:$0xff]
      %v651 = vld [vmem:[#allocation2 + $0x62] sm:$0xff]
      %v652 = vld [vmem:[#allocation2 + $0x6a] sm:$0xff]
      %v653 = vld [vmem:[#allocation2 + $0x7a] sm:$0xff]
      %v654 = vld [vmem:[#allocation2 + $0x82] sm:$0xff]
      %v655 = vld [vmem:[#allocation2 + $0x92] sm:$0xff]
      %v656 = vld [vmem:[#allocation2 + $0x9a] sm:$0xff]
      %v657 = vld [vmem:[#allocation2 + $0xaa] sm:$0xff]
      %v658 = vld [vmem:[#allocation2 + $0xb2] sm:$0xff]
      %v659 = vld [vmem:[#allocation2 + $0xc2] sm:$0xff]
      %v660 = vld [vmem:[#allocation2 + $0xca] sm:$0xff]
      %v661 = vld [vmem:[#allocation2 + $0xda] sm:$0xff]
      %v662 = vld [vmem:[#allocation2 + $0xe2] sm:$0xff]
      %v663 = vld [vmem:[#allocation2 + $0xf2] sm:$0xff]
      %v664 = vld [vmem:[#allocation2 + $0xfa] sm:$0xff]
      %v665 = vld [vmem:[#allocation2 + $0x10a] sm:$0xff]
      %v666 = vld [vmem:[#allocation2 + $0x112] sm:$0xff]
      %v667 = vld [vmem:[#allocation2 + $0x122] sm:$0xff]
      %v668 = vld [vmem:[#allocation2 + $0x12a] sm:$0xff]
      %v669 = vld [vmem:[#allocation2 + $0x13a] sm:$0xff]
      %v670 = vld [vmem:[#allocation2 + $0x142] sm:$0xff]
      %v671 = vld [vmem:[#allocation2 + $0x152] sm:$0xff]
      %v672 = vld [vmem:[#allocation2 + $0x15a] sm:$0xff]
      %v673 = vld [vmem:[#allocation2 + $0x16a] sm:$0xff]
      %v674 = vld [vmem:[#allocation2 + $0x172] sm:$0xff]
      %707 = vrot.lane.b32.xlu0 %v643, 16
      %v708 = vpop.permute.xlu0 %707
      %709 = vrot.lane.b32.xlu0 %v644, 16
      %v710 = vpop.permute.xlu0 %709
      %711 = vrot.lane.b32.xlu0 %v645, 16
      %v712 = vpop.permute.xlu0 %711
      %713 = vrot.lane.b32.xlu0 %v646, 16
      %v714 = vpop.permute.xlu0 %713
      %715 = vrot.lane.b32.xlu0 %v647, 16
      %v716 = vpop.permute.xlu0 %715
      %717 = vrot.lane.b32.xlu0 %v648, 16
      %v718 = vpop.permute.xlu0 %717
      %719 = vrot.lane.b32.xlu0 %v649, 16
      %v720 = vpop.permute.xlu0 %719
      %721 = vrot.lane.b32.xlu0 %v650, 16
      %v722 = vpop.permute.xlu0 %721
      %723 = vrot.lane.b32.xlu0 %v651, 16
      %v724 = vpop.permute.xlu0 %723
      %725 = vrot.lane.b32.xlu0 %v652, 16
      %v726 = vpop.permute.xlu0 %725
      %727 = vrot.lane.b32.xlu0 %v653, 16
      %v728 = vpop.permute.xlu0 %727
      %729 = vrot.lane.b32.xlu0 %v654, 16
      %v730 = vpop.permute.xlu0 %729
      %731 = vrot.lane.b32.xlu0 %v655, 16
      %v732 = vpop.permute.xlu0 %731
      %733 = vrot.lane.b32.xlu0 %v656, 16
      %v734 = vpop.permute.xlu0 %733
      %735 = vrot.lane.b32.xlu0 %v657, 16
      %v736 = vpop.permute.xlu0 %735
      %737 = vrot.lane.b32.xlu0 %v658, 16
      %v738 = vpop.permute.xlu0 %737
      %739 = vrot.lane.b32.xlu0 %v659, 16
      %v740 = vpop.permute.xlu0 %739
      %741 = vrot.lane.b32.xlu0 %v660, 16
      %v742 = vpop.permute.xlu0 %741
      %743 = vrot.lane.b32.xlu0 %v661, 16
      %v744 = vpop.permute.xlu0 %743
      %745 = vrot.lane.b32.xlu0 %v662, 16
      %v746 = vpop.permute.xlu0 %745
      %747 = vrot.lane.b32.xlu0 %v663, 16
      %v748 = vpop.permute.xlu0 %747
      %749 = vrot.lane.b32.xlu0 %v664, 16
      %v750 = vpop.permute.xlu0 %749
      %751 = vrot.lane.b32.xlu0 %v665, 16
      %v752 = vpop.permute.xlu0 %751
      %753 = vrot.lane.b32.xlu0 %v666, 16
      %v754 = vpop.permute.xlu0 %753
      %755 = vrot.lane.b32.xlu0 %v667, 16
      %v756 = vpop.permute.xlu0 %755
      %757 = vrot.lane.b32.xlu0 %v668, 16
      %v758 = vpop.permute.xlu0 %757
      %759 = vrot.lane.b32.xlu0 %v669, 16
      %v760 = vpop.permute.xlu0 %759
      %761 = vrot.lane.b32.xlu0 %v670, 16
      %v762 = vpop.permute.xlu0 %761
      %763 = vrot.lane.b32.xlu0 %v671, 16
      %v764 = vpop.permute.xlu0 %763
      %765 = vrot.lane.b32.xlu0 %v672, 16
      %v766 = vpop.permute.xlu0 %765
      %767 = vrot.lane.b32.xlu0 %v673, 16
      %v768 = vpop.permute.xlu0 %767
      %769 = vrot.lane.b32.xlu0 %v674, 16
      %v770 = vpop.permute.xlu0 %769
      %vm803 = vcmask 195712
      %804 = vst.msk [vmem:[#allocation3] sm:$0xff] %vm803, %v708
      %805 = vst.msk [vmem:[#allocation3 + $0x8] sm:$0xff] %vm803, %v710
      %806 = vst.msk [vmem:[#allocation3 + $0x10] sm:$0xff] %vm803, %v712
      %807 = vst.msk [vmem:[#allocation3 + $0x18] sm:$0xff] %vm803, %v714
      %808 = vst.msk [vmem:[#allocation3 + $0x20] sm:$0xff] %vm803, %v716
      %809 = vst.msk [vmem:[#allocation3 + $0x28] sm:$0xff] %vm803, %v718
      %810 = vst.msk [vmem:[#allocation3 + $0x30] sm:$0xff] %vm803, %v720
      %811 = vst.msk [vmem:[#allocation3 + $0x38] sm:$0xff] %vm803, %v722
      %812 = vst.msk [vmem:[#allocation3 + $0x40] sm:$0xff] %vm803, %v724
      %813 = vst.msk [vmem:[#allocation3 + $0x48] sm:$0xff] %vm803, %v726
      %814 = vst.msk [vmem:[#allocation3 + $0x50] sm:$0xff] %vm803, %v728
      %815 = vst.msk [vmem:[#allocation3 + $0x58] sm:$0xff] %vm803, %v730
      %816 = vst.msk [vmem:[#allocation3 + $0x60] sm:$0xff] %vm803, %v732
      %817 = vst.msk [vmem:[#allocation3 + $0x68] sm:$0xff] %vm803, %v734
      %818 = vst.msk [vmem:[#allocation3 + $0x70] sm:$0xff] %vm803, %v736
      %819 = vst.msk [vmem:[#allocation3 + $0x78] sm:$0xff] %vm803, %v738
      %820 = vst.msk [vmem:[#allocation3 + $0x80] sm:$0xff] %vm803, %v740
      %821 = vst.msk [vmem:[#allocation3 + $0x88] sm:$0xff] %vm803, %v742
      %822 = vst.msk [vmem:[#allocation3 + $0x90] sm:$0xff] %vm803, %v744
      %823 = vst.msk [vmem:[#allocation3 + $0x98] sm:$0xff] %vm803, %v746
      %824 = vst.msk [vmem:[#allocation3 + $0xa0] sm:$0xff] %vm803, %v748
      %825 = vst.msk [vmem:[#allocation3 + $0xa8] sm:$0xff] %vm803, %v750
      %826 = vst.msk [vmem:[#allocation3 + $0xb0] sm:$0xff] %vm803, %v752
      %827 = vst.msk [vmem:[#allocation3 + $0xb8] sm:$0xff] %vm803, %v754
      %828 = vst.msk [vmem:[#allocation3 + $0xc0] sm:$0xff] %vm803, %v756
      %829 = vst.msk [vmem:[#allocation3 + $0xc8] sm:$0xff] %vm803, %v758
      %830 = vst.msk [vmem:[#allocation3 + $0xd0] sm:$0xff] %vm803, %v760
      %831 = vst.msk [vmem:[#allocation3 + $0xd8] sm:$0xff] %vm803, %v762
      %832 = vst.msk [vmem:[#allocation3 + $0xe0] sm:$0xff] %vm803, %v764
      %833 = vst.msk [vmem:[#allocation3 + $0xe8] sm:$0xff] %vm803, %v766
      %834 = vst.msk [vmem:[#allocation3 + $0xf0] sm:$0xff] %vm803, %v768
      %835 = vst.msk [vmem:[#allocation3 + $0xf8] sm:$0xff] %vm803, %v770
      %v836 = vld [vmem:[%s288] sm:$0xff]
      %v837 = vld [vmem:[%s288 + $0x8] sm:$0xff]
      %v838 = vld [vmem:[%s288 + $0x18] sm:$0xff]
      %v839 = vld [vmem:[%s288 + $0x20] sm:$0xff]
      %v840 = vld [vmem:[%s288 + $0x30] sm:$0xff]
      %v841 = vld [vmem:[%s288 + $0x38] sm:$0xff]
      %v842 = vld [vmem:[%s288 + $0x48] sm:$0xff]
      %v843 = vld [vmem:[%s288 + $0x50] sm:$0xff]
      %v844 = vld [vmem:[%s288 + $0x60] sm:$0xff]
      %v845 = vld [vmem:[%s288 + $0x68] sm:$0xff]
      %v846 = vld [vmem:[%s288 + $0x78] sm:$0xff]
      %v847 = vld [vmem:[%s288 + $0x80] sm:$0xff]
      %v848 = vld [vmem:[%s288 + $0x90] sm:$0xff]
      %v849 = vld [vmem:[%s288 + $0x98] sm:$0xff]
      %v850 = vld [vmem:[%s288 + $0xa8] sm:$0xff]
      %v851 = vld [vmem:[%s288 + $0xb0] sm:$0xff]
      %v852 = vld [vmem:[%s288 + $0xc0] sm:$0xff]
      %v853 = vld [vmem:[%s288 + $0xc8] sm:$0xff]
      %v854 = vld [vmem:[%s288 + $0xd8] sm:$0xff]
      %v855 = vld [vmem:[%s288 + $0xe0] sm:$0xff]
      %v856 = vld [vmem:[%s288 + $0xf0] sm:$0xff]
      %v857 = vld [vmem:[%s288 + $0xf8] sm:$0xff]
      %v858 = vld [vmem:[%s288 + $0x108] sm:$0xff]
      %v859 = vld [vmem:[%s288 + $0x110] sm:$0xff]
      %v860 = vld [vmem:[%s288 + $0x120] sm:$0xff]
      %v861 = vld [vmem:[%s288 + $0x128] sm:$0xff]
      %v862 = vld [vmem:[%s288 + $0x138] sm:$0xff]
      %v863 = vld [vmem:[%s288 + $0x140] sm:$0xff]
      %v864 = vld [vmem:[%s288 + $0x150] sm:$0xff]
      %v865 = vld [vmem:[%s288 + $0x158] sm:$0xff]
      %v866 = vld [vmem:[%s288 + $0x168] sm:$0xff]
      %v867 = vld [vmem:[%s288 + $0x170] sm:$0xff]
      %900 = vrot.lane.b32.xlu0 %v836, 24
      %v901 = vpop.permute.xlu0 %900
      %902 = vrot.lane.b32.xlu0 %v837, 24
      %v903 = vpop.permute.xlu0 %902
      %904 = vrot.lane.b32.xlu0 %v838, 24
      %v905 = vpop.permute.xlu0 %904
      %906 = vrot.lane.b32.xlu0 %v839, 24
      %v907 = vpop.permute.xlu0 %906
      %908 = vrot.lane.b32.xlu0 %v840, 24
      %v909 = vpop.permute.xlu0 %908
      %910 = vrot.lane.b32.xlu0 %v841, 24
      %v911 = vpop.permute.xlu0 %910
      %912 = vrot.lane.b32.xlu0 %v842, 24
      %v913 = vpop.permute.xlu0 %912
      %914 = vrot.lane.b32.xlu0 %v843, 24
      %v915 = vpop.permute.xlu0 %914
      %916 = vrot.lane.b32.xlu0 %v844, 24
      %v917 = vpop.permute.xlu0 %916
      %918 = vrot.lane.b32.xlu0 %v845, 24
      %v919 = vpop.permute.xlu0 %918
      %920 = vrot.lane.b32.xlu0 %v846, 24
      %v921 = vpop.permute.xlu0 %920
      %922 = vrot.lane.b32.xlu0 %v847, 24
      %v923 = vpop.permute.xlu0 %922
      %924 = vrot.lane.b32.xlu0 %v848, 24
      %v925 = vpop.permute.xlu0 %924
      %926 = vrot.lane.b32.xlu0 %v849, 24
      %v927 = vpop.permute.xlu0 %926
      %928 = vrot.lane.b32.xlu0 %v850, 24
      %v929 = vpop.permute.xlu0 %928
      %930 = vrot.lane.b32.xlu0 %v851, 24
      %v931 = vpop.permute.xlu0 %930
      %932 = vrot.lane.b32.xlu0 %v852, 24
      %v933 = vpop.permute.xlu0 %932
      %934 = vrot.lane.b32.xlu0 %v853, 24
      %v935 = vpop.permute.xlu0 %934
      %936 = vrot.lane.b32.xlu0 %v854, 24
      %v937 = vpop.permute.xlu0 %936
      %938 = vrot.lane.b32.xlu0 %v855, 24
      %v939 = vpop.permute.xlu0 %938
      %940 = vrot.lane.b32.xlu0 %v856, 24
      %v941 = vpop.permute.xlu0 %940
      %942 = vrot.lane.b32.xlu0 %v857, 24
      %v943 = vpop.permute.xlu0 %942
      %944 = vrot.lane.b32.xlu0 %v858, 24
      %v945 = vpop.permute.xlu0 %944
      %946 = vrot.lane.b32.xlu0 %v859, 24
      %v947 = vpop.permute.xlu0 %946
      %948 = vrot.lane.b32.xlu0 %v860, 24
      %v949 = vpop.permute.xlu0 %948
      %950 = vrot.lane.b32.xlu0 %v861, 24
      %v951 = vpop.permute.xlu0 %950
      %952 = vrot.lane.b32.xlu0 %v862, 24
      %v953 = vpop.permute.xlu0 %952
      %954 = vrot.lane.b32.xlu0 %v863, 24
      %v955 = vpop.permute.xlu0 %954
      %956 = vrot.lane.b32.xlu0 %v864, 24
      %v957 = vpop.permute.xlu0 %956
      %958 = vrot.lane.b32.xlu0 %v865, 24
      %v959 = vpop.permute.xlu0 %958
      %960 = vrot.lane.b32.xlu0 %v866, 24
      %v961 = vpop.permute.xlu0 %960
      %962 = vrot.lane.b32.xlu0 %v867, 24
      %v963 = vpop.permute.xlu0 %962
      %vm996 = vcmask 261312
      %997 = vst.msk [vmem:[#allocation3] sm:$0xff] %vm996, %v901
      %998 = vst.msk [vmem:[#allocation3 + $0x8] sm:$0xff] %vm996, %v903
      %999 = vst.msk [vmem:[#allocation3 + $0x10] sm:$0xff] %vm996, %v905
      %1000 = vst.msk [vmem:[#allocation3 + $0x18] sm:$0xff] %vm996, %v907
      %1001 = vst.msk [vmem:[#allocation3 + $0x20] sm:$0xff] %vm996, %v909
      %1002 = vst.msk [vmem:[#allocation3 + $0x28] sm:$0xff] %vm996, %v911
      %1003 = vst.msk [vmem:[#allocation3 + $0x30] sm:$0xff] %vm996, %v913
      %1004 = vst.msk [vmem:[#allocation3 + $0x38] sm:$0xff] %vm996, %v915
      %1005 = vst.msk [vmem:[#allocation3 + $0x40] sm:$0xff] %vm996, %v917
      %1006 = vst.msk [vmem:[#allocation3 + $0x48] sm:$0xff] %vm996, %v919
      %1007 = vst.msk [vmem:[#allocation3 + $0x50] sm:$0xff] %vm996, %v921
      %1008 = vst.msk [vmem:[#allocation3 + $0x58] sm:$0xff] %vm996, %v923
      %1009 = vst.msk [vmem:[#allocation3 + $0x60] sm:$0xff] %vm996, %v925
      %1010 = vst.msk [vmem:[#allocation3 + $0x68] sm:$0xff] %vm996, %v927
      %1011 = vst.msk [vmem:[#allocation3 + $0x70] sm:$0xff] %vm996, %v929
      %1012 = vst.msk [vmem:[#allocation3 + $0x78] sm:$0xff] %vm996, %v931
      %1013 = vst.msk [vmem:[#allocation3 + $0x80] sm:$0xff] %vm996, %v933
      %1014 = vst.msk [vmem:[#allocation3 + $0x88] sm:$0xff] %vm996, %v935
      %1015 = vst.msk [vmem:[#allocation3 + $0x90] sm:$0xff] %vm996, %v937
      %1016 = vst.msk [vmem:[#allocation3 + $0x98] sm:$0xff] %vm996, %v939
      %1017 = vst.msk [vmem:[#allocation3 + $0xa0] sm:$0xff] %vm996, %v941
      %1018 = vst.msk [vmem:[#allocation3 + $0xa8] sm:$0xff] %vm996, %v943
      %1019 = vst.msk [vmem:[#allocation3 + $0xb0] sm:$0xff] %vm996, %v945
      %1020 = vst.msk [vmem:[#allocation3 + $0xb8] sm:$0xff] %vm996, %v947
      %1021 = vst.msk [vmem:[#allocation3 + $0xc0] sm:$0xff] %vm996, %v949
      %1022 = vst.msk [vmem:[#allocation3 + $0xc8] sm:$0xff] %vm996, %v951
      %1023 = vst.msk [vmem:[#allocation3 + $0xd0] sm:$0xff] %vm996, %v953
      %1024 = vst.msk [vmem:[#allocation3 + $0xd8] sm:$0xff] %vm996, %v955
      %1025 = vst.msk [vmem:[#allocation3 + $0xe0] sm:$0xff] %vm996, %v957
      %1026 = vst.msk [vmem:[#allocation3 + $0xe8] sm:$0xff] %vm996, %v959
      %1027 = vst.msk [vmem:[#allocation3 + $0xf0] sm:$0xff] %vm996, %v961
      %1028 = vst.msk [vmem:[#allocation3 + $0xf8] sm:$0xff] %vm996, %v963
      %v1029 = vld [vmem:[%s288 + $0x1] sm:$0xff]
      %v1030 = vld [vmem:[%s288 + $0x9] sm:$0xff]
      %v1031 = vld [vmem:[%s288 + $0x19] sm:$0xff]
      %v1032 = vld [vmem:[%s288 + $0x21] sm:$0xff]
      %v1033 = vld [vmem:[%s288 + $0x31] sm:$0xff]
      %v1034 = vld [vmem:[%s288 + $0x39] sm:$0xff]
      %v1035 = vld [vmem:[%s288 + $0x49] sm:$0xff]
      %v1036 = vld [vmem:[%s288 + $0x51] sm:$0xff]
      %v1037 = vld [vmem:[%s288 + $0x61] sm:$0xff]
      %v1038 = vld [vmem:[%s288 + $0x69] sm:$0xff]
      %v1039 = vld [vmem:[%s288 + $0x79] sm:$0xff]
      %v1040 = vld [vmem:[%s288 + $0x81] sm:$0xff]
      %v1041 = vld [vmem:[%s288 + $0x91] sm:$0xff]
      %v1042 = vld [vmem:[%s288 + $0x99] sm:$0xff]
      %v1043 = vld [vmem:[%s288 + $0xa9] sm:$0xff]
      %v1044 = vld [vmem:[%s288 + $0xb1] sm:$0xff]
      %v1045 = vld [vmem:[%s288 + $0xc1] sm:$0xff]
      %v1046 = vld [vmem:[%s288 + $0xc9] sm:$0xff]
      %v1047 = vld [vmem:[%s288 + $0xd9] sm:$0xff]
      %v1048 = vld [vmem:[%s288 + $0xe1] sm:$0xff]
      %v1049 = vld [vmem:[%s288 + $0xf1] sm:$0xff]
      %v1050 = vld [vmem:[%s288 + $0xf9] sm:$0xff]
      %v1051 = vld [vmem:[%s288 + $0x109] sm:$0xff]
      %v1052 = vld [vmem:[%s288 + $0x111] sm:$0xff]
      %v1053 = vld [vmem:[%s288 + $0x121] sm:$0xff]
      %v1054 = vld [vmem:[%s288 + $0x129] sm:$0xff]
      %v1055 = vld [vmem:[%s288 + $0x139] sm:$0xff]
      %v1056 = vld [vmem:[%s288 + $0x141] sm:$0xff]
      %v1057 = vld [vmem:[%s288 + $0x151] sm:$0xff]
      %v1058 = vld [vmem:[%s288 + $0x159] sm:$0xff]
      %v1059 = vld [vmem:[%s288 + $0x169] sm:$0xff]
      %v1060 = vld [vmem:[%s288 + $0x171] sm:$0xff]
      %1093 = vrot.lane.b32.xlu0 %v1029, 32
      %v1094 = vpop.permute.xlu0 %1093
      %1095 = vrot.lane.b32.xlu0 %v1030, 32
      %v1096 = vpop.permute.xlu0 %1095
      %1097 = vrot.lane.b32.xlu0 %v1031, 32
      %v1098 = vpop.permute.xlu0 %1097
      %1099 = vrot.lane.b32.xlu0 %v1032, 32
      %v1100 = vpop.permute.xlu0 %1099
      %1101 = vrot.lane.b32.xlu0 %v1033, 32
      %v1102 = vpop.permute.xlu0 %1101
      %1103 = vrot.lane.b32.xlu0 %v1034, 32
      %v1104 = vpop.permute.xlu0 %1103
      %1105 = vrot.lane.b32.xlu0 %v1035, 32
      %v1106 = vpop.permute.xlu0 %1105
      %1107 = vrot.lane.b32.xlu0 %v1036, 32
      %v1108 = vpop.permute.xlu0 %1107
      %1109 = vrot.lane.b32.xlu0 %v1037, 32
      %v1110 = vpop.permute.xlu0 %1109
      %1111 = vrot.lane.b32.xlu0 %v1038, 32
      %v1112 = vpop.permute.xlu0 %1111
      %1113 = vrot.lane.b32.xlu0 %v1039, 32
      %v1114 = vpop.permute.xlu0 %1113
      %1115 = vrot.lane.b32.xlu0 %v1040, 32
      %v1116 = vpop.permute.xlu0 %1115
      %1117 = vrot.lane.b32.xlu0 %v1041, 32
      %v1118 = vpop.permute.xlu0 %1117
      %1119 = vrot.lane.b32.xlu0 %v1042, 32
      %v1120 = vpop.permute.xlu0 %1119
      %1121 = vrot.lane.b32.xlu0 %v1043, 32
      %v1122 = vpop.permute.xlu0 %1121
      %1123 = vrot.lane.b32.xlu0 %v1044, 32
      %v1124 = vpop.permute.xlu0 %1123
      %1125 = vrot.lane.b32.xlu0 %v1045, 32
      %v1126 = vpop.permute.xlu0 %1125
      %1127 = vrot.lane.b32.xlu0 %v1046, 32
      %v1128 = vpop.permute.xlu0 %1127
      %1129 = vrot.lane.b32.xlu0 %v1047, 32
      %v1130 = vpop.permute.xlu0 %1129
      %1131 = vrot.lane.b32.xlu0 %v1048, 32
      %v1132 = vpop.permute.xlu0 %1131
      %1133 = vrot.lane.b32.xlu0 %v1049, 32
      %v1134 = vpop.permute.xlu0 %1133
      %1135 = vrot.lane.b32.xlu0 %v1050, 32
      %v1136 = vpop.permute.xlu0 %1135
      %1137 = vrot.lane.b32.xlu0 %v1051, 32
      %v1138 = vpop.permute.xlu0 %1137
      %1139 = vrot.lane.b32.xlu0 %v1052, 32
      %v1140 = vpop.permute.xlu0 %1139
      %1141 = vrot.lane.b32.xlu0 %v1053, 32
      %v1142 = vpop.permute.xlu0 %1141
      %1143 = vrot.lane.b32.xlu0 %v1054, 32
      %v1144 = vpop.permute.xlu0 %1143
      %1145 = vrot.lane.b32.xlu0 %v1055, 32
      %v1146 = vpop.permute.xlu0 %1145
      %1147 = vrot.lane.b32.xlu0 %v1056, 32
      %v1148 = vpop.permute.xlu0 %1147
      %1149 = vrot.lane.b32.xlu0 %v1057, 32
      %v1150 = vpop.permute.xlu0 %1149
      %1151 = vrot.lane.b32.xlu0 %v1058, 32
      %v1152 = vpop.permute.xlu0 %1151
      %1153 = vrot.lane.b32.xlu0 %v1059, 32
      %v1154 = vpop.permute.xlu0 %1153
      %1155 = vrot.lane.b32.xlu0 %v1060, 32
      %v1156 = vpop.permute.xlu0 %1155
      %vm1189 = vcmask 326912
      %1190 = vst.msk [vmem:[#allocation3] sm:$0xff] %vm1189, %v1094
      %1191 = vst.msk [vmem:[#allocation3 + $0x8] sm:$0xff] %vm1189, %v1096
      %1192 = vst.msk [vmem:[#allocation3 + $0x10] sm:$0xff] %vm1189, %v1098
      %1193 = vst.msk [vmem:[#allocation3 + $0x18] sm:$0xff] %vm1189, %v1100
      %1194 = vst.msk [vmem:[#allocation3 + $0x20] sm:$0xff] %vm1189, %v1102
      %1195 = vst.msk [vmem:[#allocation3 + $0x28] sm:$0xff] %vm1189, %v1104
      %1196 = vst.msk [vmem:[#allocation3 + $0x30] sm:$0xff] %vm1189, %v1106
      %1197 = vst.msk [vmem:[#allocation3 + $0x38] sm:$0xff] %vm1189, %v1108
      %1198 = vst.msk [vmem:[#allocation3 + $0x40] sm:$0xff] %vm1189, %v1110
      %1199 = vst.msk [vmem:[#allocation3 + $0x48] sm:$0xff] %vm1189, %v1112
      %1200 = vst.msk [vmem:[#allocation3 + $0x50] sm:$0xff] %vm1189, %v1114
      %1201 = vst.msk [vmem:[#allocation3 + $0x58] sm:$0xff] %vm1189, %v1116
      %1202 = vst.msk [vmem:[#allocation3 + $0x60] sm:$0xff] %vm1189, %v1118
      %1203 = vst.msk [vmem:[#allocation3 + $0x68] sm:$0xff] %vm1189, %v1120
      %1204 = vst.msk [vmem:[#allocation3 + $0x70] sm:$0xff] %vm1189, %v1122
      %1205 = vst.msk [vmem:[#allocation3 + $0x78] sm:$0xff] %vm1189, %v1124
      %1206 = vst.msk [vmem:[#allocation3 + $0x80] sm:$0xff] %vm1189, %v1126
      %1207 = vst.msk [vmem:[#allocation3 + $0x88] sm:$0xff] %vm1189, %v1128
      %1208 = vst.msk [vmem:[#allocation3 + $0x90] sm:$0xff] %vm1189, %v1130
      %1209 = vst.msk [vmem:[#allocation3 + $0x98] sm:$0xff] %vm1189, %v1132
      %1210 = vst.msk [vmem:[#allocation3 + $0xa0] sm:$0xff] %vm1189, %v1134
      %1211 = vst.msk [vmem:[#allocation3 + $0xa8] sm:$0xff] %vm1189, %v1136
      %1212 = vst.msk [vmem:[#allocation3 + $0xb0] sm:$0xff] %vm1189, %v1138
      %1213 = vst.msk [vmem:[#allocation3 + $0xb8] sm:$0xff] %vm1189, %v1140
      %1214 = vst.msk [vmem:[#allocation3 + $0xc0] sm:$0xff] %vm1189, %v1142
      %1215 = vst.msk [vmem:[#allocation3 + $0xc8] sm:$0xff] %vm1189, %v1144
      %1216 = vst.msk [vmem:[#allocation3 + $0xd0] sm:$0xff] %vm1189, %v1146
      %1217 = vst.msk [vmem:[#allocation3 + $0xd8] sm:$0xff] %vm1189, %v1148
      %1218 = vst.msk [vmem:[#allocation3 + $0xe0] sm:$0xff] %vm1189, %v1150
      %1219 = vst.msk [vmem:[#allocation3 + $0xe8] sm:$0xff] %vm1189, %v1152
      %1220 = vst.msk [vmem:[#allocation3 + $0xf0] sm:$0xff] %vm1189, %v1154
      %1221 = vst.msk [vmem:[#allocation3 + $0xf8] sm:$0xff] %vm1189, %v1156
      %v1222 = vld [vmem:[%s288 + $0x2] sm:$0xff]
      %v1223 = vld [vmem:[%s288 + $0xa] sm:$0xff]
      %v1224 = vld [vmem:[%s288 + $0x1a] sm:$0xff]
      %v1225 = vld [vmem:[%s288 + $0x22] sm:$0xff]
      %v1226 = vld [vmem:[%s288 + $0x32] sm:$0xff]
      %v1227 = vld [vmem:[%s288 + $0x3a] sm:$0xff]
      %v1228 = vld [vmem:[%s288 + $0x4a] sm:$0xff]
      %v1229 = vld [vmem:[%s288 + $0x52] sm:$0xff]
      %v1230 = vld [vmem:[%s288 + $0x62] sm:$0xff]
      %v1231 = vld [vmem:[%s288 + $0x6a] sm:$0xff]
      %v1232 = vld [vmem:[%s288 + $0x7a] sm:$0xff]
      %v1233 = vld [vmem:[%s288 + $0x82] sm:$0xff]
      %v1234 = vld [vmem:[%s288 + $0x92] sm:$0xff]
      %v1235 = vld [vmem:[%s288 + $0x9a] sm:$0xff]
      %v1236 = vld [vmem:[%s288 + $0xaa] sm:$0xff]
      %v1237 = vld [vmem:[%s288 + $0xb2] sm:$0xff]
      %v1238 = vld [vmem:[%s288 + $0xc2] sm:$0xff]
      %v1239 = vld [vmem:[%s288 + $0xca] sm:$0xff]
      %v1240 = vld [vmem:[%s288 + $0xda] sm:$0xff]
      %v1241 = vld [vmem:[%s288 + $0xe2] sm:$0xff]
      %v1242 = vld [vmem:[%s288 + $0xf2] sm:$0xff]
      %v1243 = vld [vmem:[%s288 + $0xfa] sm:$0xff]
      %v1244 = vld [vmem:[%s288 + $0x10a] sm:$0xff]
      %v1245 = vld [vmem:[%s288 + $0x112] sm:$0xff]
      %v1246 = vld [vmem:[%s288 + $0x122] sm:$0xff]
      %v1247 = vld [vmem:[%s288 + $0x12a] sm:$0xff]
      %v1248 = vld [vmem:[%s288 + $0x13a] sm:$0xff]
      %v1249 = vld [vmem:[%s288 + $0x142] sm:$0xff]
      %v1250 = vld [vmem:[%s288 + $0x152] sm:$0xff]
      %v1251 = vld [vmem:[%s288 + $0x15a] sm:$0xff]
      %v1252 = vld [vmem:[%s288 + $0x16a] sm:$0xff]
      %v1253 = vld [vmem:[%s288 + $0x172] sm:$0xff]
      %1286 = vrot.lane.b32.xlu0 %v1222, 40
      %v1287 = vpop.permute.xlu0 %1286
      %1288 = vrot.lane.b32.xlu0 %v1223, 40
      %v1289 = vpop.permute.xlu0 %1288
      %1290 = vrot.lane.b32.xlu0 %v1224, 40
      %v1291 = vpop.permute.xlu0 %1290
      %1292 = vrot.lane.b32.xlu0 %v1225, 40
      %v1293 = vpop.permute.xlu0 %1292
      %1294 = vrot.lane.b32.xlu0 %v1226, 40
      %v1295 = vpop.permute.xlu0 %1294
      %1296 = vrot.lane.b32.xlu0 %v1227, 40
      %v1297 = vpop.permute.xlu0 %1296
      %1298 = vrot.lane.b32.xlu0 %v1228, 40
      %v1299 = vpop.permute.xlu0 %1298
      %1300 = vrot.lane.b32.xlu0 %v1229, 40
      %v1301 = vpop.permute.xlu0 %1300
      %1302 = vrot.lane.b32.xlu0 %v1230, 40
      %v1303 = vpop.permute.xlu0 %1302
      %1304 = vrot.lane.b32.xlu0 %v1231, 40
      %v1305 = vpop.permute.xlu0 %1304
      %1306 = vrot.lane.b32.xlu0 %v1232, 40
      %v1307 = vpop.permute.xlu0 %1306
      %1308 = vrot.lane.b32.xlu0 %v1233, 40
      %v1309 = vpop.permute.xlu0 %1308
      %1310 = vrot.lane.b32.xlu0 %v1234, 40
      %v1311 = vpop.permute.xlu0 %1310
      %1312 = vrot.lane.b32.xlu0 %v1235, 40
      %v1313 = vpop.permute.xlu0 %1312
      %1314 = vrot.lane.b32.xlu0 %v1236, 40
      %v1315 = vpop.permute.xlu0 %1314
      %1316 = vrot.lane.b32.xlu0 %v1237, 40
      %v1317 = vpop.permute.xlu0 %1316
      %1318 = vrot.lane.b32.xlu0 %v1238, 40
      %v1319 = vpop.permute.xlu0 %1318
      %1320 = vrot.lane.b32.xlu0 %v1239, 40
      %v1321 = vpop.permute.xlu0 %1320
      %1322 = vrot.lane.b32.xlu0 %v1240, 40
      %v1323 = vpop.permute.xlu0 %1322
      %1324 = vrot.lane.b32.xlu0 %v1241, 40
      %v1325 = vpop.permute.xlu0 %1324
      %1326 = vrot.lane.b32.xlu0 %v1242, 40
      %v1327 = vpop.permute.xlu0 %1326
      %1328 = vrot.lane.b32.xlu0 %v1243, 40
      %v1329 = vpop.permute.xlu0 %1328
      %1330 = vrot.lane.b32.xlu0 %v1244, 40
      %v1331 = vpop.permute.xlu0 %1330
      %1332 = vrot.lane.b32.xlu0 %v1245, 40
      %v1333 = vpop.permute.xlu0 %1332
      %1334 = vrot.lane.b32.xlu0 %v1246, 40
      %v1335 = vpop.permute.xlu0 %1334
      %1336 = vrot.lane.b32.xlu0 %v1247, 40
      %v1337 = vpop.permute.xlu0 %1336
      %1338 = vrot.lane.b32.xlu0 %v1248, 40
      %v1339 = vpop.permute.xlu0 %1338
      %1340 = vrot.lane.b32.xlu0 %v1249, 40
      %v1341 = vpop.permute.xlu0 %1340
      %1342 = vrot.lane.b32.xlu0 %v1250, 40
      %v1343 = vpop.permute.xlu0 %1342
      %1344 = vrot.lane.b32.xlu0 %v1251, 40
      %v1345 = vpop.permute.xlu0 %1344
      %1346 = vrot.lane.b32.xlu0 %v1252, 40
      %v1347 = vpop.permute.xlu0 %1346
      %1348 = vrot.lane.b32.xlu0 %v1253, 40
      %v1349 = vpop.permute.xlu0 %1348
      %vm1382 = vcmask 392512
      %1383 = vst.msk [vmem:[#allocation3] sm:$0xff] %vm1382, %v1287
      %1384 = vst.msk [vmem:[#allocation3 + $0x8] sm:$0xff] %vm1382, %v1289
      %1385 = vst.msk [vmem:[#allocation3 + $0x10] sm:$0xff] %vm1382, %v1291
      %1386 = vst.msk [vmem:[#allocation3 + $0x18] sm:$0xff] %vm1382, %v1293
      %1387 = vst.msk [vmem:[#allocation3 + $0x20] sm:$0xff] %vm1382, %v1295
      %1388 = vst.msk [vmem:[#allocation3 + $0x28] sm:$0xff] %vm1382, %v1297
      %1389 = vst.msk [vmem:[#allocation3 + $0x30] sm:$0xff] %vm1382, %v1299
      %1390 = vst.msk [vmem:[#allocation3 + $0x38] sm:$0xff] %vm1382, %v1301
      %1391 = vst.msk [vmem:[#allocation3 + $0x40] sm:$0xff] %vm1382, %v1303
      %1392 = vst.msk [vmem:[#allocation3 + $0x48] sm:$0xff] %vm1382, %v1305
      %1393 = vst.msk [vmem:[#allocation3 + $0x50] sm:$0xff] %vm1382, %v1307
      %1394 = vst.msk [vmem:[#allocation3 + $0x58] sm:$0xff] %vm1382, %v1309
      %1395 = vst.msk [vmem:[#allocation3 + $0x60] sm:$0xff] %vm1382, %v1311
      %1396 = vst.msk [vmem:[#allocation3 + $0x68] sm:$0xff] %vm1382, %v1313
      %1397 = vst.msk [vmem:[#allocation3 + $0x70] sm:$0xff] %vm1382, %v1315
      %1398 = vst.msk [vmem:[#allocation3 + $0x78] sm:$0xff] %vm1382, %v1317
      %1399 = vst.msk [vmem:[#allocation3 + $0x80] sm:$0xff] %vm1382, %v1319
      %1400 = vst.msk [vmem:[#allocation3 + $0x88] sm:$0xff] %vm1382, %v1321
      %1401 = vst.msk [vmem:[#allocation3 + $0x90] sm:$0xff] %vm1382, %v1323
      %1402 = vst.msk [vmem:[#allocation3 + $0x98] sm:$0xff] %vm1382, %v1325
      %1403 = vst.msk [vmem:[#allocation3 + $0xa0] sm:$0xff] %vm1382, %v1327
      %1404 = vst.msk [vmem:[#allocation3 + $0xa8] sm:$0xff] %vm1382, %v1329
      %1405 = vst.msk [vmem:[#allocation3 + $0xb0] sm:$0xff] %vm1382, %v1331
      %1406 = vst.msk [vmem:[#allocation3 + $0xb8] sm:$0xff] %vm1382, %v1333
      %1407 = vst.msk [vmem:[#allocation3 + $0xc0] sm:$0xff] %vm1382, %v1335
      %1408 = vst.msk [vmem:[#allocation3 + $0xc8] sm:$0xff] %vm1382, %v1337
      %1409 = vst.msk [vmem:[#allocation3 + $0xd0] sm:$0xff] %vm1382, %v1339
      %1410 = vst.msk [vmem:[#allocation3 + $0xd8] sm:$0xff] %vm1382, %v1341
      %1411 = vst.msk [vmem:[#allocation3 + $0xe0] sm:$0xff] %vm1382, %v1343
      %1412 = vst.msk [vmem:[#allocation3 + $0xe8] sm:$0xff] %vm1382, %v1345
      %1413 = vst.msk [vmem:[#allocation3 + $0xf0] sm:$0xff] %vm1382, %v1347
      %1414 = vst.msk [vmem:[#allocation3 + $0xf8] sm:$0xff] %vm1382, %v1349
      %s1415 = scalar_lea.vmem [#allocation2], 48
      %v1416 = vld [vmem:[%s1415] sm:$0xff]
      %v1417 = vld [vmem:[%s1415 + $0x8] sm:$0xff]
      %v1418 = vld [vmem:[%s1415 + $0x18] sm:$0xff]
      %v1419 = vld [vmem:[%s1415 + $0x20] sm:$0xff]
      %v1420 = vld [vmem:[%s1415 + $0x30] sm:$0xff]
      %v1421 = vld [vmem:[%s1415 + $0x38] sm:$0xff]
      %v1422 = vld [vmem:[%s1415 + $0x48] sm:$0xff]
      %v1423 = vld [vmem:[%s1415 + $0x50] sm:$0xff]
      %v1424 = vld [vmem:[%s1415 + $0x60] sm:$0xff]
      %v1425 = vld [vmem:[%s1415 + $0x68] sm:$0xff]
      %v1426 = vld [vmem:[%s1415 + $0x78] sm:$0xff]
      %v1427 = vld [vmem:[%s1415 + $0x80] sm:$0xff]
      %v1428 = vld [vmem:[%s1415 + $0x90] sm:$0xff]
      %v1429 = vld [vmem:[%s1415 + $0x98] sm:$0xff]
      %v1430 = vld [vmem:[%s1415 + $0xa8] sm:$0xff]
      %v1431 = vld [vmem:[%s1415 + $0xb0] sm:$0xff]
      %v1432 = vld [vmem:[%s1415 + $0xc0] sm:$0xff]
      %v1433 = vld [vmem:[%s1415 + $0xc8] sm:$0xff]
      %v1434 = vld [vmem:[%s1415 + $0xd8] sm:$0xff]
      %v1435 = vld [vmem:[%s1415 + $0xe0] sm:$0xff]
      %v1436 = vld [vmem:[%s1415 + $0xf0] sm:$0xff]
      %v1437 = vld [vmem:[%s1415 + $0xf8] sm:$0xff]
      %v1438 = vld [vmem:[%s1415 + $0x108] sm:$0xff]
      %v1439 = vld [vmem:[%s1415 + $0x110] sm:$0xff]
      %v1440 = vld [vmem:[%s1415 + $0x120] sm:$0xff]
      %v1441 = vld [vmem:[%s1415 + $0x128] sm:$0xff]
      %v1442 = vld [vmem:[%s1415 + $0x138] sm:$0xff]
      %v1443 = vld [vmem:[%s1415 + $0x140] sm:$0xff]
      %v1444 = vld [vmem:[%s1415 + $0x150] sm:$0xff]
      %v1445 = vld [vmem:[%s1415 + $0x158] sm:$0xff]
      %v1446 = vld [vmem:[%s1415 + $0x168] sm:$0xff]
      %v1447 = vld [vmem:[%s1415 + $0x170] sm:$0xff]
      %1480 = vrot.lane.b32.xlu0 %v1416, 48
      %v1481 = vpop.permute.xlu0 %1480
      %1482 = vrot.lane.b32.xlu0 %v1417, 48
      %v1483 = vpop.permute.xlu0 %1482
      %1484 = vrot.lane.b32.xlu0 %v1418, 48
      %v1485 = vpop.permute.xlu0 %1484
      %1486 = vrot.lane.b32.xlu0 %v1419, 48
      %v1487 = vpop.permute.xlu0 %1486
      %1488 = vrot.lane.b32.xlu0 %v1420, 48
      %v1489 = vpop.permute.xlu0 %1488
      %1490 = vrot.lane.b32.xlu0 %v1421, 48
      %v1491 = vpop.permute.xlu0 %1490
      %1492 = vrot.lane.b32.xlu0 %v1422, 48
      %v1493 = vpop.permute.xlu0 %1492
      %1494 = vrot.lane.b32.xlu0 %v1423, 48
      %v1495 = vpop.permute.xlu0 %1494
      %1496 = vrot.lane.b32.xlu0 %v1424, 48
      %v1497 = vpop.permute.xlu0 %1496
      %1498 = vrot.lane.b32.xlu0 %v1425, 48
      %v1499 = vpop.permute.xlu0 %1498
      %1500 = vrot.lane.b32.xlu0 %v1426, 48
      %v1501 = vpop.permute.xlu0 %1500
      %1502 = vrot.lane.b32.xlu0 %v1427, 48
      %v1503 = vpop.permute.xlu0 %1502
      %1504 = vrot.lane.b32.xlu0 %v1428, 48
      %v1505 = vpop.permute.xlu0 %1504
      %1506 = vrot.lane.b32.xlu0 %v1429, 48
      %v1507 = vpop.permute.xlu0 %1506
      %1508 = vrot.lane.b32.xlu0 %v1430, 48
      %v1509 = vpop.permute.xlu0 %1508
      %1510 = vrot.lane.b32.xlu0 %v1431, 48
      %v1511 = vpop.permute.xlu0 %1510
      %1512 = vrot.lane.b32.xlu0 %v1432, 48
      %v1513 = vpop.permute.xlu0 %1512
      %1514 = vrot.lane.b32.xlu0 %v1433, 48
      %v1515 = vpop.permute.xlu0 %1514
      %1516 = vrot.lane.b32.xlu0 %v1434, 48
      %v1517 = vpop.permute.xlu0 %1516
      %1518 = vrot.lane.b32.xlu0 %v1435, 48
      %v1519 = vpop.permute.xlu0 %1518
      %1520 = vrot.lane.b32.xlu0 %v1436, 48
      %v1521 = vpop.permute.xlu0 %1520
      %1522 = vrot.lane.b32.xlu0 %v1437, 48
      %v1523 = vpop.permute.xlu0 %1522
      %1524 = vrot.lane.b32.xlu0 %v1438, 48
      %v1525 = vpop.permute.xlu0 %1524
      %1526 = vrot.lane.b32.xlu0 %v1439, 48
      %v1527 = vpop.permute.xlu0 %1526
      %1528 = vrot.lane.b32.xlu0 %v1440, 48
      %v1529 = vpop.permute.xlu0 %1528
      %1530 = vrot.lane.b32.xlu0 %v1441, 48
      %v1531 = vpop.permute.xlu0 %1530
      %1532 = vrot.lane.b32.xlu0 %v1442, 48
      %v1533 = vpop.permute.xlu0 %1532
      %1534 = vrot.lane.b32.xlu0 %v1443, 48
      %v1535 = vpop.permute.xlu0 %1534
      %1536 = vrot.lane.b32.xlu0 %v1444, 48
      %v1537 = vpop.permute.xlu0 %1536
      %1538 = vrot.lane.b32.xlu0 %v1445, 48
      %v1539 = vpop.permute.xlu0 %1538
      %1540 = vrot.lane.b32.xlu0 %v1446, 48
      %v1541 = vpop.permute.xlu0 %1540
      %1542 = vrot.lane.b32.xlu0 %v1447, 48
      %v1543 = vpop.permute.xlu0 %1542
      %vm1576 = vcmask 458112
      %1577 = vst.msk [vmem:[#allocation3] sm:$0xff] %vm1576, %v1481
      %1578 = vst.msk [vmem:[#allocation3 + $0x8] sm:$0xff] %vm1576, %v1483
      %1579 = vst.msk [vmem:[#allocation3 + $0x10] sm:$0xff] %vm1576, %v1485
      %1580 = vst.msk [vmem:[#allocation3 + $0x18] sm:$0xff] %vm1576, %v1487
      %1581 = vst.msk [vmem:[#allocation3 + $0x20] sm:$0xff] %vm1576, %v1489
      %1582 = vst.msk [vmem:[#allocation3 + $0x28] sm:$0xff] %vm1576, %v1491
      %1583 = vst.msk [vmem:[#allocation3 + $0x30] sm:$0xff] %vm1576, %v1493
      %1584 = vst.msk [vmem:[#allocation3 + $0x38] sm:$0xff] %vm1576, %v1495
      %1585 = vst.msk [vmem:[#allocation3 + $0x40] sm:$0xff] %vm1576, %v1497
      %1586 = vst.msk [vmem:[#allocation3 + $0x48] sm:$0xff] %vm1576, %v1499
      %1587 = vst.msk [vmem:[#allocation3 + $0x50] sm:$0xff] %vm1576, %v1501
      %1588 = vst.msk [vmem:[#allocation3 + $0x58] sm:$0xff] %vm1576, %v1503
      %1589 = vst.msk [vmem:[#allocation3 + $0x60] sm:$0xff] %vm1576, %v1505
      %1590 = vst.msk [vmem:[#allocation3 + $0x68] sm:$0xff] %vm1576, %v1507
      %1591 = vst.msk [vmem:[#allocation3 + $0x70] sm:$0xff] %vm1576, %v1509
      %1592 = vst.msk [vmem:[#allocation3 + $0x78] sm:$0xff] %vm1576, %v1511
      %1593 = vst.msk [vmem:[#allocation3 + $0x80] sm:$0xff] %vm1576, %v1513
      %1594 = vst.msk [vmem:[#allocation3 + $0x88] sm:$0xff] %vm1576, %v1515
      %1595 = vst.msk [vmem:[#allocation3 + $0x90] sm:$0xff] %vm1576, %v1517
      %1596 = vst.msk [vmem:[#allocation3 + $0x98] sm:$0xff] %vm1576, %v1519
      %1597 = vst.msk [vmem:[#allocation3 + $0xa0] sm:$0xff] %vm1576, %v1521
      %1598 = vst.msk [vmem:[#allocation3 + $0xa8] sm:$0xff] %vm1576, %v1523
      %1599 = vst.msk [vmem:[#allocation3 + $0xb0] sm:$0xff] %vm1576, %v1525
      %1600 = vst.msk [vmem:[#allocation3 + $0xb8] sm:$0xff] %vm1576, %v1527
      %1601 = vst.msk [vmem:[#allocation3 + $0xc0] sm:$0xff] %vm1576, %v1529
      %1602 = vst.msk [vmem:[#allocation3 + $0xc8] sm:$0xff] %vm1576, %v1531
      %1603 = vst.msk [vmem:[#allocation3 + $0xd0] sm:$0xff] %vm1576, %v1533
      %1604 = vst.msk [vmem:[#allocation3 + $0xd8] sm:$0xff] %vm1576, %v1535
      %1605 = vst.msk [vmem:[#allocation3 + $0xe0] sm:$0xff] %vm1576, %v1537
      %1606 = vst.msk [vmem:[#allocation3 + $0xe8] sm:$0xff] %vm1576, %v1539
      %1607 = vst.msk [vmem:[#allocation3 + $0xf0] sm:$0xff] %vm1576, %v1541
      %1608 = vst.msk [vmem:[#allocation3 + $0xf8] sm:$0xff] %vm1576, %v1543
      %v1609 = vld [vmem:[%s1415 + $0x1] sm:$0xff]
      %v1610 = vld [vmem:[%s1415 + $0x9] sm:$0xff]
      %v1611 = vld [vmem:[%s1415 + $0x19] sm:$0xff]
      %v1612 = vld [vmem:[%s1415 + $0x21] sm:$0xff]
      %v1613 = vld [vmem:[%s1415 + $0x31] sm:$0xff]
      %v1614 = vld [vmem:[%s1415 + $0x39] sm:$0xff]
      %v1615 = vld [vmem:[%s1415 + $0x49] sm:$0xff]
      %v1616 = vld [vmem:[%s1415 + $0x51] sm:$0xff]
      %v1617 = vld [vmem:[%s1415 + $0x61] sm:$0xff]
      %v1618 = vld [vmem:[%s1415 + $0x69] sm:$0xff]
      %v1619 = vld [vmem:[%s1415 + $0x79] sm:$0xff]
      %v1620 = vld [vmem:[%s1415 + $0x81] sm:$0xff]
      %v1621 = vld [vmem:[%s1415 + $0x91] sm:$0xff]
      %v1622 = vld [vmem:[%s1415 + $0x99] sm:$0xff]
      %v1623 = vld [vmem:[%s1415 + $0xa9] sm:$0xff]
      %v1624 = vld [vmem:[%s1415 + $0xb1] sm:$0xff]
      %v1625 = vld [vmem:[%s1415 + $0xc1] sm:$0xff]
      %v1626 = vld [vmem:[%s1415 + $0xc9] sm:$0xff]
      %v1627 = vld [vmem:[%s1415 + $0xd9] sm:$0xff]
      %v1628 = vld [vmem:[%s1415 + $0xe1] sm:$0xff]
      %v1629 = vld [vmem:[%s1415 + $0xf1] sm:$0xff]
      %v1630 = vld [vmem:[%s1415 + $0xf9] sm:$0xff]
      %v1631 = vld [vmem:[%s1415 + $0x109] sm:$0xff]
      %v1632 = vld [vmem:[%s1415 + $0x111] sm:$0xff]
      %v1633 = vld [vmem:[%s1415 + $0x121] sm:$0xff]
      %v1634 = vld [vmem:[%s1415 + $0x129] sm:$0xff]
      %v1635 = vld [vmem:[%s1415 + $0x139] sm:$0xff]
      %v1636 = vld [vmem:[%s1415 + $0x141] sm:$0xff]
      %v1637 = vld [vmem:[%s1415 + $0x151] sm:$0xff]
      %v1638 = vld [vmem:[%s1415 + $0x159] sm:$0xff]
      %v1639 = vld [vmem:[%s1415 + $0x169] sm:$0xff]
      %v1640 = vld [vmem:[%s1415 + $0x171] sm:$0xff]
      %1673 = vrot.lane.b32.xlu0 %v1609, 56
      %v1674 = vpop.permute.xlu0 %1673
      %1675 = vrot.lane.b32.xlu0 %v1610, 56
      %v1676 = vpop.permute.xlu0 %1675
      %1677 = vrot.lane.b32.xlu0 %v1611, 56
      %v1678 = vpop.permute.xlu0 %1677
      %1679 = vrot.lane.b32.xlu0 %v1612, 56
      %v1680 = vpop.permute.xlu0 %1679
      %1681 = vrot.lane.b32.xlu0 %v1613, 56
      %v1682 = vpop.permute.xlu0 %1681
      %1683 = vrot.lane.b32.xlu0 %v1614, 56
      %v1684 = vpop.permute.xlu0 %1683
      %1685 = vrot.lane.b32.xlu0 %v1615, 56
      %v1686 = vpop.permute.xlu0 %1685
      %1687 = vrot.lane.b32.xlu0 %v1616, 56
      %v1688 = vpop.permute.xlu0 %1687
      %1689 = vrot.lane.b32.xlu0 %v1617, 56
      %v1690 = vpop.permute.xlu0 %1689
      %1691 = vrot.lane.b32.xlu0 %v1618, 56
      %v1692 = vpop.permute.xlu0 %1691
      %1693 = vrot.lane.b32.xlu0 %v1619, 56
      %v1694 = vpop.permute.xlu0 %1693
      %1695 = vrot.lane.b32.xlu0 %v1620, 56
      %v1696 = vpop.permute.xlu0 %1695
      %1697 = vrot.lane.b32.xlu0 %v1621, 56
      %v1698 = vpop.permute.xlu0 %1697
      %1699 = vrot.lane.b32.xlu0 %v1622, 56
      %v1700 = vpop.permute.xlu0 %1699
      %1701 = vrot.lane.b32.xlu0 %v1623, 56
      %v1702 = vpop.permute.xlu0 %1701
      %1703 = vrot.lane.b32.xlu0 %v1624, 56
      %v1704 = vpop.permute.xlu0 %1703
      %1705 = vrot.lane.b32.xlu0 %v1625, 56
      %v1706 = vpop.permute.xlu0 %1705
      %1707 = vrot.lane.b32.xlu0 %v1626, 56
      %v1708 = vpop.permute.xlu0 %1707
      %1709 = vrot.lane.b32.xlu0 %v1627, 56
      %v1710 = vpop.permute.xlu0 %1709
      %1711 = vrot.lane.b32.xlu0 %v1628, 56
      %v1712 = vpop.permute.xlu0 %1711
      %1713 = vrot.lane.b32.xlu0 %v1629, 56
      %v1714 = vpop.permute.xlu0 %1713
      %1715 = vrot.lane.b32.xlu0 %v1630, 56
      %v1716 = vpop.permute.xlu0 %1715
      %1717 = vrot.lane.b32.xlu0 %v1631, 56
      %v1718 = vpop.permute.xlu0 %1717
      %1719 = vrot.lane.b32.xlu0 %v1632, 56
      %v1720 = vpop.permute.xlu0 %1719
      %1721 = vrot.lane.b32.xlu0 %v1633, 56
      %v1722 = vpop.permute.xlu0 %1721
      %1723 = vrot.lane.b32.xlu0 %v1634, 56
      %v1724 = vpop.permute.xlu0 %1723
      %1725 = vrot.lane.b32.xlu0 %v1635, 56
      %v1726 = vpop.permute.xlu0 %1725
      %1727 = vrot.lane.b32.xlu0 %v1636, 56
      %v1728 = vpop.permute.xlu0 %1727
      %1729 = vrot.lane.b32.xlu0 %v1637, 56
      %v1730 = vpop.permute.xlu0 %1729
      %1731 = vrot.lane.b32.xlu0 %v1638, 56
      %v1732 = vpop.permute.xlu0 %1731
      %1733 = vrot.lane.b32.xlu0 %v1639, 56
      %v1734 = vpop.permute.xlu0 %1733
      %1735 = vrot.lane.b32.xlu0 %v1640, 56
      %v1736 = vpop.permute.xlu0 %1735
      %vm1769 = vcmask 523712
      %1770 = vst.msk [vmem:[#allocation3] sm:$0xff] %vm1769, %v1674
      %1771 = vst.msk [vmem:[#allocation3 + $0x8] sm:$0xff] %vm1769, %v1676
      %1772 = vst.msk [vmem:[#allocation3 + $0x10] sm:$0xff] %vm1769, %v1678
      %1773 = vst.msk [vmem:[#allocation3 + $0x18] sm:$0xff] %vm1769, %v1680
      %1774 = vst.msk [vmem:[#allocation3 + $0x20] sm:$0xff] %vm1769, %v1682
      %1775 = vst.msk [vmem:[#allocation3 + $0x28] sm:$0xff] %vm1769, %v1684
      %1776 = vst.msk [vmem:[#allocation3 + $0x30] sm:$0xff] %vm1769, %v1686
      %1777 = vst.msk [vmem:[#allocation3 + $0x38] sm:$0xff] %vm1769, %v1688
      %1778 = vst.msk [vmem:[#allocation3 + $0x40] sm:$0xff] %vm1769, %v1690
      %1779 = vst.msk [vmem:[#allocation3 + $0x48] sm:$0xff] %vm1769, %v1692
      %1780 = vst.msk [vmem:[#allocation3 + $0x50] sm:$0xff] %vm1769, %v1694
      %1781 = vst.msk [vmem:[#allocation3 + $0x58] sm:$0xff] %vm1769, %v1696
      %1782 = vst.msk [vmem:[#allocation3 + $0x60] sm:$0xff] %vm1769, %v1698
      %1783 = vst.msk [vmem:[#allocation3 + $0x68] sm:$0xff] %vm1769, %v1700
      %1784 = vst.msk [vmem:[#allocation3 + $0x70] sm:$0xff] %vm1769, %v1702
      %1785 = vst.msk [vmem:[#allocation3 + $0x78] sm:$0xff] %vm1769, %v1704
      %1786 = vst.msk [vmem:[#allocation3 + $0x80] sm:$0xff] %vm1769, %v1706
      %1787 = vst.msk [vmem:[#allocation3 + $0x88] sm:$0xff] %vm1769, %v1708
      %1788 = vst.msk [vmem:[#allocation3 + $0x90] sm:$0xff] %vm1769, %v1710
      %1789 = vst.msk [vmem:[#allocation3 + $0x98] sm:$0xff] %vm1769, %v1712
      %1790 = vst.msk [vmem:[#allocation3 + $0xa0] sm:$0xff] %vm1769, %v1714
      %1791 = vst.msk [vmem:[#allocation3 + $0xa8] sm:$0xff] %vm1769, %v1716
      %1792 = vst.msk [vmem:[#allocation3 + $0xb0] sm:$0xff] %vm1769, %v1718
      %1793 = vst.msk [vmem:[#allocation3 + $0xb8] sm:$0xff] %vm1769, %v1720
      %1794 = vst.msk [vmem:[#allocation3 + $0xc0] sm:$0xff] %vm1769, %v1722
      %1795 = vst.msk [vmem:[#allocation3 + $0xc8] sm:$0xff] %vm1769, %v1724
      %1796 = vst.msk [vmem:[#allocation3 + $0xd0] sm:$0xff] %vm1769, %v1726
      %1797 = vst.msk [vmem:[#allocation3 + $0xd8] sm:$0xff] %vm1769, %v1728
      %1798 = vst.msk [vmem:[#allocation3 + $0xe0] sm:$0xff] %vm1769, %v1730
      %1799 = vst.msk [vmem:[#allocation3 + $0xe8] sm:$0xff] %vm1769, %v1732
      %1800 = vst.msk [vmem:[#allocation3 + $0xf0] sm:$0xff] %vm1769, %v1734
      %1801 = vst.msk [vmem:[#allocation3 + $0xf8] sm:$0xff] %vm1769, %v1736
      %v1802 = vld [vmem:[%s1415 + $0x2] sm:$0xff]
      %v1803 = vld [vmem:[%s1415 + $0xa] sm:$0xff]
      %v1804 = vld [vmem:[%s1415 + $0x1a] sm:$0xff]
      %v1805 = vld [vmem:[%s1415 + $0x22] sm:$0xff]
      %v1806 = vld [vmem:[%s1415 + $0x32] sm:$0xff]
      %v1807 = vld [vmem:[%s1415 + $0x3a] sm:$0xff]
      %v1808 = vld [vmem:[%s1415 + $0x4a] sm:$0xff]
      %v1809 = vld [vmem:[%s1415 + $0x52] sm:$0xff]
      %v1810 = vld [vmem:[%s1415 + $0x62] sm:$0xff]
      %v1811 = vld [vmem:[%s1415 + $0x6a] sm:$0xff]
      %v1812 = vld [vmem:[%s1415 + $0x7a] sm:$0xff]
      %v1813 = vld [vmem:[%s1415 + $0x82] sm:$0xff]
      %v1814 = vld [vmem:[%s1415 + $0x92] sm:$0xff]
      %v1815 = vld [vmem:[%s1415 + $0x9a] sm:$0xff]
      %v1816 = vld [vmem:[%s1415 + $0xaa] sm:$0xff]
      %v1817 = vld [vmem:[%s1415 + $0xb2] sm:$0xff]
      %v1818 = vld [vmem:[%s1415 + $0xc2] sm:$0xff]
      %v1819 = vld [vmem:[%s1415 + $0xca] sm:$0xff]
      %v1820 = vld [vmem:[%s1415 + $0xda] sm:$0xff]
      %v1821 = vld [vmem:[%s1415 + $0xe2] sm:$0xff]
      %v1822 = vld [vmem:[%s1415 + $0xf2] sm:$0xff]
      %v1823 = vld [vmem:[%s1415 + $0xfa] sm:$0xff]
      %v1824 = vld [vmem:[%s1415 + $0x10a] sm:$0xff]
      %v1825 = vld [vmem:[%s1415 + $0x112] sm:$0xff]
      %v1826 = vld [vmem:[%s1415 + $0x122] sm:$0xff]
      %v1827 = vld [vmem:[%s1415 + $0x12a] sm:$0xff]
      %v1828 = vld [vmem:[%s1415 + $0x13a] sm:$0xff]
      %v1829 = vld [vmem:[%s1415 + $0x142] sm:$0xff]
      %v1830 = vld [vmem:[%s1415 + $0x152] sm:$0xff]
      %v1831 = vld [vmem:[%s1415 + $0x15a] sm:$0xff]
      %v1832 = vld [vmem:[%s1415 + $0x16a] sm:$0xff]
      %v1833 = vld [vmem:[%s1415 + $0x172] sm:$0xff]
      %1866 = vrot.lane.b32.xlu0 %v1802, 64
      %v1867 = vpop.permute.xlu0 %1866
      %1868 = vrot.lane.b32.xlu0 %v1803, 64
      %v1869 = vpop.permute.xlu0 %1868
      %1870 = vrot.lane.b32.xlu0 %v1804, 64
      %v1871 = vpop.permute.xlu0 %1870
      %1872 = vrot.lane.b32.xlu0 %v1805, 64
      %v1873 = vpop.permute.xlu0 %1872
      %1874 = vrot.lane.b32.xlu0 %v1806, 64
      %v1875 = vpop.permute.xlu0 %1874
      %1876 = vrot.lane.b32.xlu0 %v1807, 64
      %v1877 = vpop.permute.xlu0 %1876
      %1878 = vrot.lane.b32.xlu0 %v1808, 64
      %v1879 = vpop.permute.xlu0 %1878
      %1880 = vrot.lane.b32.xlu0 %v1809, 64
      %v1881 = vpop.permute.xlu0 %1880
      %1882 = vrot.lane.b32.xlu0 %v1810, 64
      %v1883 = vpop.permute.xlu0 %1882
      %1884 = vrot.lane.b32.xlu0 %v1811, 64
      %v1885 = vpop.permute.xlu0 %1884
      %1886 = vrot.lane.b32.xlu0 %v1812, 64
      %v1887 = vpop.permute.xlu0 %1886
      %1888 = vrot.lane.b32.xlu0 %v1813, 64
      %v1889 = vpop.permute.xlu0 %1888
      %1890 = vrot.lane.b32.xlu0 %v1814, 64
      %v1891 = vpop.permute.xlu0 %1890
      %1892 = vrot.lane.b32.xlu0 %v1815, 64
      %v1893 = vpop.permute.xlu0 %1892
      %1894 = vrot.lane.b32.xlu0 %v1816, 64
      %v1895 = vpop.permute.xlu0 %1894
      %1896 = vrot.lane.b32.xlu0 %v1817, 64
      %v1897 = vpop.permute.xlu0 %1896
      %1898 = vrot.lane.b32.xlu0 %v1818, 64
      %v1899 = vpop.permute.xlu0 %1898
      %1900 = vrot.lane.b32.xlu0 %v1819, 64
      %v1901 = vpop.permute.xlu0 %1900
      %1902 = vrot.lane.b32.xlu0 %v1820, 64
      %v1903 = vpop.permute.xlu0 %1902
      %1904 = vrot.lane.b32.xlu0 %v1821, 64
      %v1905 = vpop.permute.xlu0 %1904
      %1906 = vrot.lane.b32.xlu0 %v1822, 64
      %v1907 = vpop.permute.xlu0 %1906
      %1908 = vrot.lane.b32.xlu0 %v1823, 64
      %v1909 = vpop.permute.xlu0 %1908
      %1910 = vrot.lane.b32.xlu0 %v1824, 64
      %v1911 = vpop.permute.xlu0 %1910
      %1912 = vrot.lane.b32.xlu0 %v1825, 64
      %v1913 = vpop.permute.xlu0 %1912
      %1914 = vrot.lane.b32.xlu0 %v1826, 64
      %v1915 = vpop.permute.xlu0 %1914
      %1916 = vrot.lane.b32.xlu0 %v1827, 64
      %v1917 = vpop.permute.xlu0 %1916
      %1918 = vrot.lane.b32.xlu0 %v1828, 64
      %v1919 = vpop.permute.xlu0 %1918
      %1920 = vrot.lane.b32.xlu0 %v1829, 64
      %v1921 = vpop.permute.xlu0 %1920
      %1922 = vrot.lane.b32.xlu0 %v1830, 64
      %v1923 = vpop.permute.xlu0 %1922
      %1924 = vrot.lane.b32.xlu0 %v1831, 64
      %v1925 = vpop.permute.xlu0 %1924
      %1926 = vrot.lane.b32.xlu0 %v1832, 64
      %v1927 = vpop.permute.xlu0 %1926
      %1928 = vrot.lane.b32.xlu0 %v1833, 64
      %v1929 = vpop.permute.xlu0 %1928
      %vm1962 = vcmask 589312
      %1963 = vst.msk [vmem:[#allocation3] sm:$0xff] %vm1962, %v1867
      %1964 = vst.msk [vmem:[#allocation3 + $0x8] sm:$0xff] %vm1962, %v1869
      %1965 = vst.msk [vmem:[#allocation3 + $0x10] sm:$0xff] %vm1962, %v1871
      %1966 = vst.msk [vmem:[#allocation3 + $0x18] sm:$0xff] %vm1962, %v1873
      %1967 = vst.msk [vmem:[#allocation3 + $0x20] sm:$0xff] %vm1962, %v1875
      %1968 = vst.msk [vmem:[#allocation3 + $0x28] sm:$0xff] %vm1962, %v1877
      %1969 = vst.msk [vmem:[#allocation3 + $0x30] sm:$0xff] %vm1962, %v1879
      %1970 = vst.msk [vmem:[#allocation3 + $0x38] sm:$0xff] %vm1962, %v1881
      %1971 = vst.msk [vmem:[#allocation3 + $0x40] sm:$0xff] %vm1962, %v1883
      %1972 = vst.msk [vmem:[#allocation3 + $0x48] sm:$0xff] %vm1962, %v1885
      %1973 = vst.msk [vmem:[#allocation3 + $0x50] sm:$0xff] %vm1962, %v1887
      %1974 = vst.msk [vmem:[#allocation3 + $0x58] sm:$0xff] %vm1962, %v1889
      %1975 = vst.msk [vmem:[#allocation3 + $0x60] sm:$0xff] %vm1962, %v1891
      %1976 = vst.msk [vmem:[#allocation3 + $0x68] sm:$0xff] %vm1962, %v1893
      %1977 = vst.msk [vmem:[#allocation3 + $0x70] sm:$0xff] %vm1962, %v1895
      %1978 = vst.msk [vmem:[#allocation3 + $0x78] sm:$0xff] %vm1962, %v1897
      %1979 = vst.msk [vmem:[#allocation3 + $0x80] sm:$0xff] %vm1962, %v1899
      %1980 = vst.msk [vmem:[#allocation3 + $0x88] sm:$0xff] %vm1962, %v1901
      %1981 = vst.msk [vmem:[#allocation3 + $0x90] sm:$0xff] %vm1962, %v1903
      %1982 = vst.msk [vmem:[#allocation3 + $0x98] sm:$0xff] %vm1962, %v1905
      %1983 = vst.msk [vmem:[#allocation3 + $0xa0] sm:$0xff] %vm1962, %v1907
      %1984 = vst.msk [vmem:[#allocation3 + $0xa8] sm:$0xff] %vm1962, %v1909
      %1985 = vst.msk [vmem:[#allocation3 + $0xb0] sm:$0xff] %vm1962, %v1911
      %1986 = vst.msk [vmem:[#allocation3 + $0xb8] sm:$0xff] %vm1962, %v1913
      %1987 = vst.msk [vmem:[#allocation3 + $0xc0] sm:$0xff] %vm1962, %v1915
      %1988 = vst.msk [vmem:[#allocation3 + $0xc8] sm:$0xff] %vm1962, %v1917
      %1989 = vst.msk [vmem:[#allocation3 + $0xd0] sm:$0xff] %vm1962, %v1919
      %1990 = vst.msk [vmem:[#allocation3 + $0xd8] sm:$0xff] %vm1962, %v1921
      %1991 = vst.msk [vmem:[#allocation3 + $0xe0] sm:$0xff] %vm1962, %v1923
      %1992 = vst.msk [vmem:[#allocation3 + $0xe8] sm:$0xff] %vm1962, %v1925
      %1993 = vst.msk [vmem:[#allocation3 + $0xf0] sm:$0xff] %vm1962, %v1927
      %1994 = vst.msk [vmem:[#allocation3 + $0xf8] sm:$0xff] %vm1962, %v1929
      %v1995 = vld [vmem:[#allocation3] sm:$0xff]
      %v1996 = vld [vmem:[#allocation3 + $0x8] sm:$0xff]
      %v1997 = vld [vmem:[#allocation3 + $0x10] sm:$0xff]
      %v1998 = vld [vmem:[#allocation3 + $0x18] sm:$0xff]
      %v1999 = vld [vmem:[#allocation3 + $0x20] sm:$0xff]
      %v2000 = vld [vmem:[#allocation3 + $0x28] sm:$0xff]
      %v2001 = vld [vmem:[#allocation3 + $0x30] sm:$0xff]
      %v2002 = vld [vmem:[#allocation3 + $0x38] sm:$0xff]
      %v2003 = vld [vmem:[#allocation3 + $0x40] sm:$0xff]
      %v2004 = vld [vmem:[#allocation3 + $0x48] sm:$0xff]
      %v2005 = vld [vmem:[#allocation3 + $0x50] sm:$0xff]
      %v2006 = vld [vmem:[#allocation3 + $0x58] sm:$0xff]
      %v2007 = vld [vmem:[#allocation3 + $0x60] sm:$0xff]
      %v2008 = vld [vmem:[#allocation3 + $0x68] sm:$0xff]
      %v2009 = vld [vmem:[#allocation3 + $0x70] sm:$0xff]
      %v2010 = vld [vmem:[#allocation3 + $0x78] sm:$0xff]
      %v2011 = vld [vmem:[#allocation3 + $0x80] sm:$0xff]
      %v2012 = vld [vmem:[#allocation3 + $0x88] sm:$0xff]
      %v2013 = vld [vmem:[#allocation3 + $0x90] sm:$0xff]
      %v2014 = vld [vmem:[#allocation3 + $0x98] sm:$0xff]
      %v2015 = vld [vmem:[#allocation3 + $0xa0] sm:$0xff]
      %v2016 = vld [vmem:[#allocation3 + $0xa8] sm:$0xff]
      %v2017 = vld [vmem:[#allocation3 + $0xb0] sm:$0xff]
      %v2018 = vld [vmem:[#allocation3 + $0xb8] sm:$0xff]
      %v2019 = vld [vmem:[#allocation3 + $0xc0] sm:$0xff]
      %v2020 = vld [vmem:[#allocation3 + $0xc8] sm:$0xff]
      %v2021 = vld [vmem:[#allocation3 + $0xd0] sm:$0xff]
      %v2022 = vld [vmem:[#allocation3 + $0xd8] sm:$0xff]
      %v2023 = vld [vmem:[#allocation3 + $0xe0] sm:$0xff]
      %v2024 = vld [vmem:[#allocation3 + $0xe8] sm:$0xff]
      %v2025 = vld [vmem:[#allocation3 + $0xf0] sm:$0xff]
      %v2026 = vld [vmem:[#allocation3 + $0xf8] sm:$0xff]
      %v2027 = vld [vmem:[%s1] sm:$0xff]
      %v2028 = vld [vmem:[%s1 + $0x8] sm:$0xff]
      %v2029 = vld [vmem:[%s1 + $0x10] sm:$0xff]
      %v2030 = vld [vmem:[%s1 + $0x18] sm:$0xff]
      %v2031 = vld [vmem:[%s1 + $0x20] sm:$0xff]
      %v2032 = vld [vmem:[%s1 + $0x28] sm:$0xff]
      %v2033 = vld [vmem:[%s1 + $0x30] sm:$0xff]
      %v2034 = vld [vmem:[%s1 + $0x38] sm:$0xff]
      %v2035 = vld [vmem:[%s1 + $0x40] sm:$0xff]
      %vm2036 = vcmask 588800
      %v2038 = vsel %vm2036, %v1995, 0
      %v2041 = vsel %vm2036, %v1996, 0
      %v2044 = vsel %vm2036, %v1997, 0
      %v2047 = vsel %vm2036, %v1998, 0
      %v2050 = vsel %vm2036, %v1999, 0
      %v2053 = vsel %vm2036, %v2000, 0
      %v2056 = vsel %vm2036, %v2001, 0
      %v2059 = vsel %vm2036, %v2002, 0
      %v2062 = vsel %vm2036, %v2003, 0
      %v2065 = vsel %vm2036, %v2004, 0
      %v2068 = vsel %vm2036, %v2005, 0
      %v2071 = vsel %vm2036, %v2006, 0
      %v2074 = vsel %vm2036, %v2007, 0
      %v2077 = vsel %vm2036, %v2008, 0
      %v2080 = vsel %vm2036, %v2009, 0
      %v2083 = vsel %vm2036, %v2010, 0
      %v2086 = vsel %vm2036, %v2011, 0
      %v2089 = vsel %vm2036, %v2012, 0
      %v2092 = vsel %vm2036, %v2013, 0
      %v2095 = vsel %vm2036, %v2014, 0
      %v2098 = vsel %vm2036, %v2015, 0
      %v2101 = vsel %vm2036, %v2016, 0
      %v2104 = vsel %vm2036, %v2017, 0
      %v2107 = vsel %vm2036, %v2018, 0
      %v2110 = vsel %vm2036, %v2019, 0
      %v2113 = vsel %vm2036, %v2020, 0
      %v2116 = vsel %vm2036, %v2021, 0
      %v2119 = vsel %vm2036, %v2022, 0
      %v2122 = vsel %vm2036, %v2023, 0
      %v2125 = vsel %vm2036, %v2024, 0
      %v2128 = vsel %vm2036, %v2025, 0
      %v2131 = vsel %vm2036, %v2026, 0
      %2133 = vmatpush.msra.mxu0 0.0
      %2134 = vmatpush.msra.mxu0 0.0
      %2135 = vmatpush.msra.mxu0 0.0
      %2136 = vmatpush.msra.mxu0 0.0
      %2137 = vmatpush.msra.mxu0 0.0
      %2138 = vmatpush.msra.mxu0 0.0
      %2139 = vmatpush.msra.mxu0 0.0
      %2140 = vmatpush.msra.mxu0 %v2035
      %2141 = vmatpush.msra.mxu0 %v2034
      %2142 = vmatpush.msra.mxu0 %v2033
      %2143 = vmatpush.msra.mxu0 %v2032
      %2144 = vmatpush.msra.mxu0 %v2031
      %2145 = vmatpush.msra.mxu0 %v2030
      %2146 = vmatpush.msra.mxu0 %v2029
      %2147 = vmatpush.msra.mxu0 %v2028
      %2148 = vmatpush.msra.mxu0 %v2027
      %2149 = vmatmul.f32.gmra.mxu0 %v2038
      %v2150 = vpop.f32.mrf.mxu0
      %v2151 = vadd.f32 0.0, %v2150
      %2152 = vmatmul.f32.gmra.mxu0 %v2041
      %v2153 = vpop.f32.mrf.mxu0
      %v2154 = vadd.f32 0.0, %v2153
      %2155 = vmatmul.f32.gmra.mxu0 %v2044
      %v2156 = vpop.f32.mrf.mxu0
      %v2157 = vadd.f32 0.0, %v2156
      %2158 = vmatmul.f32.gmra.mxu0 %v2047
      %v2159 = vpop.f32.mrf.mxu0
      %v2160 = vadd.f32 0.0, %v2159
      %2161 = vmatmul.f32.gmra.mxu0 %v2050
      %v2162 = vpop.f32.mrf.mxu0
      %v2163 = vadd.f32 0.0, %v2162
      %2164 = vmatmul.f32.gmra.mxu0 %v2053
      %v2165 = vpop.f32.mrf.mxu0
      %v2166 = vadd.f32 0.0, %v2165
      %2167 = vmatmul.f32.gmra.mxu0 %v2056
      %v2168 = vpop.f32.mrf.mxu0
      %v2169 = vadd.f32 0.0, %v2168
      %2170 = vmatmul.f32.gmra.mxu0 %v2059
      %v2171 = vpop.f32.mrf.mxu0
      %v2172 = vadd.f32 0.0, %v2171
      %2173 = vmatmul.f32.gmra.mxu0 %v2062
      %v2174 = vpop.f32.mrf.mxu0
      %v2175 = vadd.f32 0.0, %v2174
      %2176 = vmatmul.f32.gmra.mxu0 %v2065
      %v2177 = vpop.f32.mrf.mxu0
      %v2178 = vadd.f32 0.0, %v2177
      %2179 = vmatmul.f32.gmra.mxu0 %v2068
      %v2180 = vpop.f32.mrf.mxu0
      %v2181 = vadd.f32 0.0, %v2180
      %2182 = vmatmul.f32.gmra.mxu0 %v2071
      %v2183 = vpop.f32.mrf.mxu0
      %v2184 = vadd.f32 0.0, %v2183
      %2185 = vmatmul.f32.gmra.mxu0 %v2074
      %v2186 = vpop.f32.mrf.mxu0
      %v2187 = vadd.f32 0.0, %v2186
      %2188 = vmatmul.f32.gmra.mxu0 %v2077
      %v2189 = vpop.f32.mrf.mxu0
      %v2190 = vadd.f32 0.0, %v2189
      %2191 = vmatmul.f32.gmra.mxu0 %v2080
      %v2192 = vpop.f32.mrf.mxu0
      %v2193 = vadd.f32 0.0, %v2192
      %2194 = vmatmul.f32.gmra.mxu0 %v2083
      %v2195 = vpop.f32.mrf.mxu0
      %v2196 = vadd.f32 0.0, %v2195
      %2197 = vmatmul.f32.gmra.mxu0 %v2086
      %v2198 = vpop.f32.mrf.mxu0
      %v2199 = vadd.f32 0.0, %v2198
      %2200 = vmatmul.f32.gmra.mxu0 %v2089
      %v2201 = vpop.f32.mrf.mxu0
      %v2202 = vadd.f32 0.0, %v2201
      %2203 = vmatmul.f32.gmra.mxu0 %v2092
      %v2204 = vpop.f32.mrf.mxu0
      %v2205 = vadd.f32 0.0, %v2204
      %2206 = vmatmul.f32.gmra.mxu0 %v2095
      %v2207 = vpop.f32.mrf.mxu0
      %v2208 = vadd.f32 0.0, %v2207
      %2209 = vmatmul.f32.gmra.mxu0 %v2098
      %v2210 = vpop.f32.mrf.mxu0
      %v2211 = vadd.f32 0.0, %v2210
      %2212 = vmatmul.f32.gmra.mxu0 %v2101
      %v2213 = vpop.f32.mrf.mxu0
      %v2214 = vadd.f32 0.0, %v2213
      %2215 = vmatmul.f32.gmra.mxu0 %v2104
      %v2216 = vpop.f32.mrf.mxu0
      %v2217 = vadd.f32 0.0, %v2216
      %2218 = vmatmul.f32.gmra.mxu0 %v2107
      %v2219 = vpop.f32.mrf.mxu0
      %v2220 = vadd.f32 0.0, %v2219
      %2221 = vmatmul.f32.gmra.mxu0 %v2110
      %v2222 = vpop.f32.mrf.mxu0
      %v2223 = vadd.f32 0.0, %v2222
      %2224 = vmatmul.f32.gmra.mxu0 %v2113
      %v2225 = vpop.f32.mrf.mxu0
      %v2226 = vadd.f32 0.0, %v2225
      %2227 = vmatmul.f32.gmra.mxu0 %v2116
      %v2228 = vpop.f32.mrf.mxu0
      %v2229 = vadd.f32 0.0, %v2228
      %2230 = vmatmul.f32.gmra.mxu0 %v2119
      %v2231 = vpop.f32.mrf.mxu0
      %v2232 = vadd.f32 0.0, %v2231
      %2233 = vmatmul.f32.gmra.mxu0 %v2122
      %v2234 = vpop.f32.mrf.mxu0
      %v2235 = vadd.f32 0.0, %v2234
      %2236 = vmatmul.f32.gmra.mxu0 %v2125
      %v2237 = vpop.f32.mrf.mxu0
      %v2238 = vadd.f32 0.0, %v2237
      %2239 = vmatmul.f32.gmra.mxu0 %v2128
      %v2240 = vpop.f32.mrf.mxu0
      %v2241 = vadd.f32 0.0, %v2240
      %2242 = vmatmul.f32.gmra.mxu0 %v2131
      %v2243 = vpop.f32.mrf.mxu0
      %v2244 = vadd.f32 0.0, %v2243
      %2245 = vdwg.mxu0
      %v2246 = vld [vmem:[%s3] sm:$0x1]
      %v2248 = vperm.slane %v2246, 0
      %v2250 = vmul.f32 %v2151, %v2248
      %v2251 = vmul.f32 %v2154, %v2248
      %v2252 = vmul.f32 %v2157, %v2248
      %v2253 = vmul.f32 %v2160, %v2248
      %v2254 = vmul.f32 %v2163, %v2248
      %v2255 = vmul.f32 %v2166, %v2248
      %v2256 = vmul.f32 %v2169, %v2248
      %v2257 = vmul.f32 %v2172, %v2248
      %v2258 = vmul.f32 %v2175, %v2248
      %v2259 = vmul.f32 %v2178, %v2248
      %v2260 = vmul.f32 %v2181, %v2248
      %v2261 = vmul.f32 %v2184, %v2248
      %v2262 = vmul.f32 %v2187, %v2248
      %v2263 = vmul.f32 %v2190, %v2248
      %v2264 = vmul.f32 %v2193, %v2248
      %v2265 = vmul.f32 %v2196, %v2248
      %v2266 = vmul.f32 %v2199, %v2248
      %v2267 = vmul.f32 %v2202, %v2248
      %v2268 = vmul.f32 %v2205, %v2248
      %v2269 = vmul.f32 %v2208, %v2248
      %v2270 = vmul.f32 %v2211, %v2248
      %v2271 = vmul.f32 %v2214, %v2248
      %v2272 = vmul.f32 %v2217, %v2248
      %v2273 = vmul.f32 %v2220, %v2248
      %v2274 = vmul.f32 %v2223, %v2248
      %v2275 = vmul.f32 %v2226, %v2248
      %v2276 = vmul.f32 %v2229, %v2248
      %v2277 = vmul.f32 %v2232, %v2248
      %v2278 = vmul.f32 %v2235, %v2248
      %v2279 = vmul.f32 %v2238, %v2248
      %v2280 = vmul.f32 %v2241, %v2248
      %v2281 = vmul.f32 %v2244, %v2248
      %v2282 = vld [vmem:[%s4] sm:$0x1]
      %v2284 = vperm.slane %v2282, 0
      %v2286 = vadd.f32 %v2250, %v2284
      %v2287 = vadd.f32 %v2251, %v2284
      %v2288 = vadd.f32 %v2252, %v2284
      %v2289 = vadd.f32 %v2253, %v2284
      %v2290 = vadd.f32 %v2254, %v2284
      %v2291 = vadd.f32 %v2255, %v2284
      %v2292 = vadd.f32 %v2256, %v2284
      %v2293 = vadd.f32 %v2257, %v2284
      %v2294 = vadd.f32 %v2258, %v2284
      %v2295 = vadd.f32 %v2259, %v2284
      %v2296 = vadd.f32 %v2260, %v2284
      %v2297 = vadd.f32 %v2261, %v2284
      %v2298 = vadd.f32 %v2262, %v2284
      %v2299 = vadd.f32 %v2263, %v2284
      %v2300 = vadd.f32 %v2264, %v2284
      %v2301 = vadd.f32 %v2265, %v2284
      %v2302 = vadd.f32 %v2266, %v2284
      %v2303 = vadd.f32 %v2267, %v2284
      %v2304 = vadd.f32 %v2268, %v2284
      %v2305 = vadd.f32 %v2269, %v2284
      %v2306 = vadd.f32 %v2270, %v2284
      %v2307 = vadd.f32 %v2271, %v2284
      %v2308 = vadd.f32 %v2272, %v2284
      %v2309 = vadd.f32 %v2273, %v2284
      %v2310 = vadd.f32 %v2274, %v2284
      %v2311 = vadd.f32 %v2275, %v2284
      %v2312 = vadd.f32 %v2276, %v2284
      %v2313 = vadd.f32 %v2277, %v2284
      %v2314 = vadd.f32 %v2278, %v2284
      %v2315 = vadd.f32 %v2279, %v2284
      %v2316 = vadd.f32 %v2280, %v2284
      %v2317 = vadd.f32 %v2281, %v2284
      %v2318 = vmax.f32 %v2286, 0.0
      %v2319 = vmax.f32 %v2287, 0.0
      %v2320 = vmax.f32 %v2288, 0.0
      %v2321 = vmax.f32 %v2289, 0.0
      %v2322 = vmax.f32 %v2290, 0.0
      %v2323 = vmax.f32 %v2291, 0.0
      %v2324 = vmax.f32 %v2292, 0.0
      %v2325 = vmax.f32 %v2293, 0.0
      %v2326 = vmax.f32 %v2294, 0.0
      %v2327 = vmax.f32 %v2295, 0.0
      %v2328 = vmax.f32 %v2296, 0.0
      %v2329 = vmax.f32 %v2297, 0.0
      %v2330 = vmax.f32 %v2298, 0.0
      %v2331 = vmax.f32 %v2299, 0.0
      %v2332 = vmax.f32 %v2300, 0.0
      %v2333 = vmax.f32 %v2301, 0.0
      %v2334 = vmax.f32 %v2302, 0.0
      %v2335 = vmax.f32 %v2303, 0.0
      %v2336 = vmax.f32 %v2304, 0.0
      %v2337 = vmax.f32 %v2305, 0.0
      %v2338 = vmax.f32 %v2306, 0.0
      %v2339 = vmax.f32 %v2307, 0.0
      %v2340 = vmax.f32 %v2308, 0.0
      %v2341 = vmax.f32 %v2309, 0.0
      %v2342 = vmax.f32 %v2310, 0.0
      %v2343 = vmax.f32 %v2311, 0.0
      %v2344 = vmax.f32 %v2312, 0.0
      %v2345 = vmax.f32 %v2313, 0.0
      %v2346 = vmax.f32 %v2314, 0.0
      %v2347 = vmax.f32 %v2315, 0.0
      %v2348 = vmax.f32 %v2316, 0.0
      %v2349 = vmax.f32 %v2317, 0.0
      %2350 = vst.msk [vmem:[%s288 + $0x1] sm:$0xff] %vm279, %v2318
      %2351 = vst.msk [vmem:[%s288 + $0x9] sm:$0xff] %vm279, %v2319
      %2352 = vst.msk [vmem:[%s288 + $0x19] sm:$0xff] %vm279, %v2320
      %2353 = vst.msk [vmem:[%s288 + $0x21] sm:$0xff] %vm279, %v2321
      %2354 = vst.msk [vmem:[%s288 + $0x31] sm:$0xff] %vm279, %v2322
      %2355 = vst.msk [vmem:[%s288 + $0x39] sm:$0xff] %vm279, %v2323
      %2356 = vst.msk [vmem:[%s288 + $0x49] sm:$0xff] %vm279, %v2324
      %2357 = vst.msk [vmem:[%s288 + $0x51] sm:$0xff] %vm279, %v2325
      %2358 = vst.msk [vmem:[%s288 + $0x61] sm:$0xff] %vm279, %v2326
      %2359 = vst.msk [vmem:[%s288 + $0x69] sm:$0xff] %vm279, %v2327
      %2360 = vst.msk [vmem:[%s288 + $0x79] sm:$0xff] %vm279, %v2328
      %2361 = vst.msk [vmem:[%s288 + $0x81] sm:$0xff] %vm279, %v2329
      %2362 = vst.msk [vmem:[%s288 + $0x91] sm:$0xff] %vm279, %v2330
      %2363 = vst.msk [vmem:[%s288 + $0x99] sm:$0xff] %vm279, %v2331
      %2364 = vst.msk [vmem:[%s288 + $0xa9] sm:$0xff] %vm279, %v2332
      %2365 = vst.msk [vmem:[%s288 + $0xb1] sm:$0xff] %vm279, %v2333
      %2366 = vst.msk [vmem:[%s288 + $0xc1] sm:$0xff] %vm279, %v2334
      %2367 = vst.msk [vmem:[%s288 + $0xc9] sm:$0xff] %vm279, %v2335
      %2368 = vst.msk [vmem:[%s288 + $0xd9] sm:$0xff] %vm279, %v2336
      %2369 = vst.msk [vmem:[%s288 + $0xe1] sm:$0xff] %vm279, %v2337
      %2370 = vst.msk [vmem:[%s288 + $0xf1] sm:$0xff] %vm279, %v2338
      %2371 = vst.msk [vmem:[%s288 + $0xf9] sm:$0xff] %vm279, %v2339
      %2372 = vst.msk [vmem:[%s288 + $0x109] sm:$0xff] %vm279, %v2340
      %2373 = vst.msk [vmem:[%s288 + $0x111] sm:$0xff] %vm279, %v2341
      %2374 = vst.msk [vmem:[%s288 + $0x121] sm:$0xff] %vm279, %v2342
      %2375 = vst.msk [vmem:[%s288 + $0x129] sm:$0xff] %vm279, %v2343
      %2376 = vst.msk [vmem:[%s288 + $0x139] sm:$0xff] %vm279, %v2344
      %2377 = vst.msk [vmem:[%s288 + $0x141] sm:$0xff] %vm279, %v2345
      %2378 = vst.msk [vmem:[%s288 + $0x151] sm:$0xff] %vm279, %v2346
      %2379 = vst.msk [vmem:[%s288 + $0x159] sm:$0xff] %vm279, %v2347
      %2380 = vst.msk [vmem:[%s288 + $0x169] sm:$0xff] %vm279, %v2348
      %2381 = vst.msk [vmem:[%s288 + $0x171] sm:$0xff] %vm279, %v2349
      %v2382 = vld [vmem:[#allocation2] sm:$0xff]
      %v2383 = vld [vmem:[#allocation2 + $0x8] sm:$0xff]
      %v2384 = vld [vmem:[#allocation2 + $0x18] sm:$0xff]
      %v2385 = vld [vmem:[#allocation2 + $0x20] sm:$0xff]
      %v2386 = vld [vmem:[#allocation2 + $0x30] sm:$0xff]
      %v2387 = vld [vmem:[#allocation2 + $0x38] sm:$0xff]
      %v2388 = vld [vmem:[#allocation2 + $0x48] sm:$0xff]
      %v2389 = vld [vmem:[#allocation2 + $0x50] sm:$0xff]
      %v2390 = vld [vmem:[#allocation2 + $0x60] sm:$0xff]
      %v2391 = vld [vmem:[#allocation2 + $0x68] sm:$0xff]
      %v2392 = vld [vmem:[#allocation2 + $0x78] sm:$0xff]
      %v2393 = vld [vmem:[#allocation2 + $0x80] sm:$0xff]
      %v2394 = vld [vmem:[#allocation2 + $0x90] sm:$0xff]
      %v2395 = vld [vmem:[#allocation2 + $0x98] sm:$0xff]
      %v2396 = vld [vmem:[#allocation2 + $0xa8] sm:$0xff]
      %v2397 = vld [vmem:[#allocation2 + $0xb0] sm:$0xff]
      %v2398 = vld [vmem:[#allocation2 + $0xc0] sm:$0xff]
      %v2399 = vld [vmem:[#allocation2 + $0xc8] sm:$0xff]
      %v2400 = vld [vmem:[#allocation2 + $0xd8] sm:$0xff]
      %v2401 = vld [vmem:[#allocation2 + $0xe0] sm:$0xff]
      %v2402 = vld [vmem:[#allocation2 + $0xf0] sm:$0xff]
      %v2403 = vld [vmem:[#allocation2 + $0xf8] sm:$0xff]
      %v2404 = vld [vmem:[#allocation2 + $0x108] sm:$0xff]
      %v2405 = vld [vmem:[#allocation2 + $0x110] sm:$0xff]
      %v2406 = vld [vmem:[#allocation2 + $0x120] sm:$0xff]
      %v2407 = vld [vmem:[#allocation2 + $0x128] sm:$0xff]
      %v2408 = vld [vmem:[#allocation2 + $0x138] sm:$0xff]
      %v2409 = vld [vmem:[#allocation2 + $0x140] sm:$0xff]
      %v2410 = vld [vmem:[#allocation2 + $0x150] sm:$0xff]
      %v2411 = vld [vmem:[#allocation2 + $0x158] sm:$0xff]
      %v2412 = vld [vmem:[#allocation2 + $0x168] sm:$0xff]
      %v2413 = vld [vmem:[#allocation2 + $0x170] sm:$0xff]
      %2414 = vst.msk [vmem:[#allocation3] sm:$0xff] %vm279, %v2382
      %2415 = vst.msk [vmem:[#allocation3 + $0x8] sm:$0xff] %vm279, %v2383
      %2416 = vst.msk [vmem:[#allocation3 + $0x10] sm:$0xff] %vm279, %v2384
      %2417 = vst.msk [vmem:[#allocation3 + $0x18] sm:$0xff] %vm279, %v2385
      %2418 = vst.msk [vmem:[#allocation3 + $0x20] sm:$0xff] %vm279, %v2386
      %2419 = vst.msk [vmem:[#allocation3 + $0x28] sm:$0xff] %vm279, %v2387
      %2420 = vst.msk [vmem:[#allocation3 + $0x30] sm:$0xff] %vm279, %v2388
      %2421 = vst.msk [vmem:[#allocation3 + $0x38] sm:$0xff] %vm279, %v2389
      %2422 = vst.msk [vmem:[#allocation3 + $0x40] sm:$0xff] %vm279, %v2390
      %2423 = vst.msk [vmem:[#allocation3 + $0x48] sm:$0xff] %vm279, %v2391
      %2424 = vst.msk [vmem:[#allocation3 + $0x50] sm:$0xff] %vm279, %v2392
      %2425 = vst.msk [vmem:[#allocation3 + $0x58] sm:$0xff] %vm279, %v2393
      %2426 = vst.msk [vmem:[#allocation3 + $0x60] sm:$0xff] %vm279, %v2394
      %2427 = vst.msk [vmem:[#allocation3 + $0x68] sm:$0xff] %vm279, %v2395
      %2428 = vst.msk [vmem:[#allocation3 + $0x70] sm:$0xff] %vm279, %v2396
      %2429 = vst.msk [vmem:[#allocation3 + $0x78] sm:$0xff] %vm279, %v2397
      %2430 = vst.msk [vmem:[#allocation3 + $0x80] sm:$0xff] %vm279, %v2398
      %2431 = vst.msk [vmem:[#allocation3 + $0x88] sm:$0xff] %vm279, %v2399
      %2432 = vst.msk [vmem:[#allocation3 + $0x90] sm:$0xff] %vm279, %v2400
      %2433 = vst.msk [vmem:[#allocation3 + $0x98] sm:$0xff] %vm279, %v2401
      %2434 = vst.msk [vmem:[#allocation3 + $0xa0] sm:$0xff] %vm279, %v2402
      %2435 = vst.msk [vmem:[#allocation3 + $0xa8] sm:$0xff] %vm279, %v2403
      %2436 = vst.msk [vmem:[#allocation3 + $0xb0] sm:$0xff] %vm279, %v2404
      %2437 = vst.msk [vmem:[#allocation3 + $0xb8] sm:$0xff] %vm279, %v2405
      %2438 = vst.msk [vmem:[#allocation3 + $0xc0] sm:$0xff] %vm279, %v2406
      %2439 = vst.msk [vmem:[#allocation3 + $0xc8] sm:$0xff] %vm279, %v2407
      %2440 = vst.msk [vmem:[#allocation3 + $0xd0] sm:$0xff] %vm279, %v2408
      %2441 = vst.msk [vmem:[#allocation3 + $0xd8] sm:$0xff] %vm279, %v2409
      %2442 = vst.msk [vmem:[#allocation3 + $0xe0] sm:$0xff] %vm279, %v2410
      %2443 = vst.msk [vmem:[#allocation3 + $0xe8] sm:$0xff] %vm279, %v2411
      %2444 = vst.msk [vmem:[#allocation3 + $0xf0] sm:$0xff] %vm279, %v2412
      %2445 = vst.msk [vmem:[#allocation3 + $0xf8] sm:$0xff] %vm279, %v2413
      %v2446 = vld [vmem:[#allocation2 + $0x1] sm:$0xff]
      %v2447 = vld [vmem:[#allocation2 + $0x9] sm:$0xff]
      %v2448 = vld [vmem:[#allocation2 + $0x19] sm:$0xff]
      %v2449 = vld [vmem:[#allocation2 + $0x21] sm:$0xff]
      %v2450 = vld [vmem:[#allocation2 + $0x31] sm:$0xff]
      %v2451 = vld [vmem:[#allocation2 + $0x39] sm:$0xff]
      %v2452 = vld [vmem:[#allocation2 + $0x49] sm:$0xff]
      %v2453 = vld [vmem:[#allocation2 + $0x51] sm:$0xff]
      %v2454 = vld [vmem:[#allocation2 + $0x61] sm:$0xff]
      %v2455 = vld [vmem:[#allocation2 + $0x69] sm:$0xff]
      %v2456 = vld [vmem:[#allocation2 + $0x79] sm:$0xff]
      %v2457 = vld [vmem:[#allocation2 + $0x81] sm:$0xff]
      %v2458 = vld [vmem:[#allocation2 + $0x91] sm:$0xff]
      %v2459 = vld [vmem:[#allocation2 + $0x99] sm:$0xff]
      %v2460 = vld [vmem:[#allocation2 + $0xa9] sm:$0xff]
      %v2461 = vld [vmem:[#allocation2 + $0xb1] sm:$0xff]
      %v2462 = vld [vmem:[#allocation2 + $0xc1] sm:$0xff]
      %v2463 = vld [vmem:[#allocation2 + $0xc9] sm:$0xff]
      %v2464 = vld [vmem:[#allocation2 + $0xd9] sm:$0xff]
      %v2465 = vld [vmem:[#allocation2 + $0xe1] sm:$0xff]
      %v2466 = vld [vmem:[#allocation2 + $0xf1] sm:$0xff]
      %v2467 = vld [vmem:[#allocation2 + $0xf9] sm:$0xff]
      %v2468 = vld [vmem:[#allocation2 + $0x109] sm:$0xff]
      %v2469 = vld [vmem:[#allocation2 + $0x111] sm:$0xff]
      %v2470 = vld [vmem:[#allocation2 + $0x121] sm:$0xff]
      %v2471 = vld [vmem:[#allocation2 + $0x129] sm:$0xff]
      %v2472 = vld [vmem:[#allocation2 + $0x139] sm:$0xff]
      %v2473 = vld [vmem:[#allocation2 + $0x141] sm:$0xff]
      %v2474 = vld [vmem:[#allocation2 + $0x151] sm:$0xff]
      %v2475 = vld [vmem:[#allocation2 + $0x159] sm:$0xff]
      %v2476 = vld [vmem:[#allocation2 + $0x169] sm:$0xff]
      %v2477 = vld [vmem:[#allocation2 + $0x171] sm:$0xff]
      %2510 = vrot.lane.b32.xlu0 %v2446, 8
      %v2511 = vpop.permute.xlu0 %2510
      %2512 = vrot.lane.b32.xlu0 %v2447, 8
      %v2513 = vpop.permute.xlu0 %2512
      %2514 = vrot.lane.b32.xlu0 %v2448, 8
      %v2515 = vpop.permute.xlu0 %2514
      %2516 = vrot.lane.b32.xlu0 %v2449, 8
      %v2517 = vpop.permute.xlu0 %2516
      %2518 = vrot.lane.b32.xlu0 %v2450, 8
      %v2519 = vpop.permute.xlu0 %2518
      %2520 = vrot.lane.b32.xlu0 %v2451, 8
      %v2521 = vpop.permute.xlu0 %2520
      %2522 = vrot.lane.b32.xlu0 %v2452, 8
      %v2523 = vpop.permute.xlu0 %2522
      %2524 = vrot.lane.b32.xlu0 %v2453, 8
      %v2525 = vpop.permute.xlu0 %2524
      %2526 = vrot.lane.b32.xlu0 %v2454, 8
      %v2527 = vpop.permute.xlu0 %2526
      %2528 = vrot.lane.b32.xlu0 %v2455, 8
      %v2529 = vpop.permute.xlu0 %2528
      %2530 = vrot.lane.b32.xlu0 %v2456, 8
      %v2531 = vpop.permute.xlu0 %2530
      %2532 = vrot.lane.b32.xlu0 %v2457, 8
      %v2533 = vpop.permute.xlu0 %2532
      %2534 = vrot.lane.b32.xlu0 %v2458, 8
      %v2535 = vpop.permute.xlu0 %2534
      %2536 = vrot.lane.b32.xlu0 %v2459, 8
      %v2537 = vpop.permute.xlu0 %2536
      %2538 = vrot.lane.b32.xlu0 %v2460, 8
      %v2539 = vpop.permute.xlu0 %2538
      %2540 = vrot.lane.b32.xlu0 %v2461, 8
      %v2541 = vpop.permute.xlu0 %2540
      %2542 = vrot.lane.b32.xlu0 %v2462, 8
      %v2543 = vpop.permute.xlu0 %2542
      %2544 = vrot.lane.b32.xlu0 %v2463, 8
      %v2545 = vpop.permute.xlu0 %2544
      %2546 = vrot.lane.b32.xlu0 %v2464, 8
      %v2547 = vpop.permute.xlu0 %2546
      %2548 = vrot.lane.b32.xlu0 %v2465, 8
      %v2549 = vpop.permute.xlu0 %2548
      %2550 = vrot.lane.b32.xlu0 %v2466, 8
      %v2551 = vpop.permute.xlu0 %2550
      %2552 = vrot.lane.b32.xlu0 %v2467, 8
      %v2553 = vpop.permute.xlu0 %2552
      %2554 = vrot.lane.b32.xlu0 %v2468, 8
      %v2555 = vpop.permute.xlu0 %2554
      %2556 = vrot.lane.b32.xlu0 %v2469, 8
      %v2557 = vpop.permute.xlu0 %2556
      %2558 = vrot.lane.b32.xlu0 %v2470, 8
      %v2559 = vpop.permute.xlu0 %2558
      %2560 = vrot.lane.b32.xlu0 %v2471, 8
      %v2561 = vpop.permute.xlu0 %2560
      %2562 = vrot.lane.b32.xlu0 %v2472, 8
      %v2563 = vpop.permute.xlu0 %2562
      %2564 = vrot.lane.b32.xlu0 %v2473, 8
      %v2565 = vpop.permute.xlu0 %2564
      %2566 = vrot.lane.b32.xlu0 %v2474, 8
      %v2567 = vpop.permute.xlu0 %2566
      %2568 = vrot.lane.b32.xlu0 %v2475, 8
      %v2569 = vpop.permute.xlu0 %2568
      %2570 = vrot.lane.b32.xlu0 %v2476, 8
      %v2571 = vpop.permute.xlu0 %2570
      %2572 = vrot.lane.b32.xlu0 %v2477, 8
      %v2573 = vpop.permute.xlu0 %2572
      %2606 = vst.msk [vmem:[#allocation3] sm:$0xff] %vm610, %v2511
      %2607 = vst.msk [vmem:[#allocation3 + $0x8] sm:$0xff] %vm610, %v2513
      %2608 = vst.msk [vmem:[#allocation3 + $0x10] sm:$0xff] %vm610, %v2515
      %2609 = vst.msk [vmem:[#allocation3 + $0x18] sm:$0xff] %vm610, %v2517
      %2610 = vst.msk [vmem:[#allocation3 + $0x20] sm:$0xff] %vm610, %v2519
      %2611 = vst.msk [vmem:[#allocation3 + $0x28] sm:$0xff] %vm610, %v2521
      %2612 = vst.msk [vmem:[#allocation3 + $0x30] sm:$0xff] %vm610, %v2523
      %2613 = vst.msk [vmem:[#allocation3 + $0x38] sm:$0xff] %vm610, %v2525
      %2614 = vst.msk [vmem:[#allocation3 + $0x40] sm:$0xff] %vm610, %v2527
      %2615 = vst.msk [vmem:[#allocation3 + $0x48] sm:$0xff] %vm610, %v2529
      %2616 = vst.msk [vmem:[#allocation3 + $0x50] sm:$0xff] %vm610, %v2531
      %2617 = vst.msk [vmem:[#allocation3 + $0x58] sm:$0xff] %vm610, %v2533
      %2618 = vst.msk [vmem:[#allocation3 + $0x60] sm:$0xff] %vm610, %v2535
      %2619 = vst.msk [vmem:[#allocation3 + $0x68] sm:$0xff] %vm610, %v2537
      %2620 = vst.msk [vmem:[#allocation3 + $0x70] sm:$0xff] %vm610, %v2539
      %2621 = vst.msk [vmem:[#allocation3 + $0x78] sm:$0xff] %vm610, %v2541
      %2622 = vst.msk [vmem:[#allocation3 + $0x80] sm:$0xff] %vm610, %v2543
      %2623 = vst.msk [vmem:[#allocation3 + $0x88] sm:$0xff] %vm610, %v2545
      %2624 = vst.msk [vmem:[#allocation3 + $0x90] sm:$0xff] %vm610, %v2547
      %2625 = vst.msk [vmem:[#allocation3 + $0x98] sm:$0xff] %vm610, %v2549
      %2626 = vst.msk [vmem:[#allocation3 + $0xa0] sm:$0xff] %vm610, %v2551
      %2627 = vst.msk [vmem:[#allocation3 + $0xa8] sm:$0xff] %vm610, %v2553
      %2628 = vst.msk [vmem:[#allocation3 + $0xb0] sm:$0xff] %vm610, %v2555
      %2629 = vst.msk [vmem:[#allocation3 + $0xb8] sm:$0xff] %vm610, %v2557
      %2630 = vst.msk [vmem:[#allocation3 + $0xc0] sm:$0xff] %vm610, %v2559
      %2631 = vst.msk [vmem:[#allocation3 + $0xc8] sm:$0xff] %vm610, %v2561
      %2632 = vst.msk [vmem:[#allocation3 + $0xd0] sm:$0xff] %vm610, %v2563
      %2633 = vst.msk [vmem:[#allocation3 + $0xd8] sm:$0xff] %vm610, %v2565
      %2634 = vst.msk [vmem:[#allocation3 + $0xe0] sm:$0xff] %vm610, %v2567
      %2635 = vst.msk [vmem:[#allocation3 + $0xe8] sm:$0xff] %vm610, %v2569
      %2636 = vst.msk [vmem:[#allocation3 + $0xf0] sm:$0xff] %vm610, %v2571
      %2637 = vst.msk [vmem:[#allocation3 + $0xf8] sm:$0xff] %vm610, %v2573
      %v2638 = vld [vmem:[#allocation2 + $0x2] sm:$0xff]
      %v2639 = vld [vmem:[#allocation2 + $0xa] sm:$0xff]
      %v2640 = vld [vmem:[#allocation2 + $0x1a] sm:$0xff]
      %v2641 = vld [vmem:[#allocation2 + $0x22] sm:$0xff]
      %v2642 = vld [vmem:[#allocation2 + $0x32] sm:$0xff]
      %v2643 = vld [vmem:[#allocation2 + $0x3a] sm:$0xff]
      %v2644 = vld [vmem:[#allocation2 + $0x4a] sm:$0xff]
      %v2645 = vld [vmem:[#allocation2 + $0x52] sm:$0xff]
      %v2646 = vld [vmem:[#allocation2 + $0x62] sm:$0xff]
      %v2647 = vld [vmem:[#allocation2 + $0x6a] sm:$0xff]
      %v2648 = vld [vmem:[#allocation2 + $0x7a] sm:$0xff]
      %v2649 = vld [vmem:[#allocation2 + $0x82] sm:$0xff]
      %v2650 = vld [vmem:[#allocation2 + $0x92] sm:$0xff]
      %v2651 = vld [vmem:[#allocation2 + $0x9a] sm:$0xff]
      %v2652 = vld [vmem:[#allocation2 + $0xaa] sm:$0xff]
      %v2653 = vld [vmem:[#allocation2 + $0xb2] sm:$0xff]
      %v2654 = vld [vmem:[#allocation2 + $0xc2] sm:$0xff]
      %v2655 = vld [vmem:[#allocation2 + $0xca] sm:$0xff]
      %v2656 = vld [vmem:[#allocation2 + $0xda] sm:$0xff]
      %v2657 = vld [vmem:[#allocation2 + $0xe2] sm:$0xff]
      %v2658 = vld [vmem:[#allocation2 + $0xf2] sm:$0xff]
      %v2659 = vld [vmem:[#allocation2 + $0xfa] sm:$0xff]
      %v2660 = vld [vmem:[#allocation2 + $0x10a] sm:$0xff]
      %v2661 = vld [vmem:[#allocation2 + $0x112] sm:$0xff]
      %v2662 = vld [vmem:[#allocation2 + $0x122] sm:$0xff]
      %v2663 = vld [vmem:[#allocation2 + $0x12a] sm:$0xff]
      %v2664 = vld [vmem:[#allocation2 + $0x13a] sm:$0xff]
      %v2665 = vld [vmem:[#allocation2 + $0x142] sm:$0xff]
      %v2666 = vld [vmem:[#allocation2 + $0x152] sm:$0xff]
      %v2667 = vld [vmem:[#allocation2 + $0x15a] sm:$0xff]
      %v2668 = vld [vmem:[#allocation2 + $0x16a] sm:$0xff]
      %v2669 = vld [vmem:[#allocation2 + $0x172] sm:$0xff]
      %2702 = vrot.lane.b32.xlu0 %v2638, 16
      %v2703 = vpop.permute.xlu0 %2702
      %2704 = vrot.lane.b32.xlu0 %v2639, 16
      %v2705 = vpop.permute.xlu0 %2704
      %2706 = vrot.lane.b32.xlu0 %v2640, 16
      %v2707 = vpop.permute.xlu0 %2706
      %2708 = vrot.lane.b32.xlu0 %v2641, 16
      %v2709 = vpop.permute.xlu0 %2708
      %2710 = vrot.lane.b32.xlu0 %v2642, 16
      %v2711 = vpop.permute.xlu0 %2710
      %2712 = vrot.lane.b32.xlu0 %v2643, 16
      %v2713 = vpop.permute.xlu0 %2712
      %2714 = vrot.lane.b32.xlu0 %v2644, 16
      %v2715 = vpop.permute.xlu0 %2714
      %2716 = vrot.lane.b32.xlu0 %v2645, 16
      %v2717 = vpop.permute.xlu0 %2716
      %2718 = vrot.lane.b32.xlu0 %v2646, 16
      %v2719 = vpop.permute.xlu0 %2718
      %2720 = vrot.lane.b32.xlu0 %v2647, 16
      %v2721 = vpop.permute.xlu0 %2720
      %2722 = vrot.lane.b32.xlu0 %v2648, 16
      %v2723 = vpop.permute.xlu0 %2722
      %2724 = vrot.lane.b32.xlu0 %v2649, 16
      %v2725 = vpop.permute.xlu0 %2724
      %2726 = vrot.lane.b32.xlu0 %v2650, 16
      %v2727 = vpop.permute.xlu0 %2726
      %2728 = vrot.lane.b32.xlu0 %v2651, 16
      %v2729 = vpop.permute.xlu0 %2728
      %2730 = vrot.lane.b32.xlu0 %v2652, 16
      %v2731 = vpop.permute.xlu0 %2730
      %2732 = vrot.lane.b32.xlu0 %v2653, 16
      %v2733 = vpop.permute.xlu0 %2732
      %2734 = vrot.lane.b32.xlu0 %v2654, 16
      %v2735 = vpop.permute.xlu0 %2734
      %2736 = vrot.lane.b32.xlu0 %v2655, 16
      %v2737 = vpop.permute.xlu0 %2736
      %2738 = vrot.lane.b32.xlu0 %v2656, 16
      %v2739 = vpop.permute.xlu0 %2738
      %2740 = vrot.lane.b32.xlu0 %v2657, 16
      %v2741 = vpop.permute.xlu0 %2740
      %2742 = vrot.lane.b32.xlu0 %v2658, 16
      %v2743 = vpop.permute.xlu0 %2742
      %2744 = vrot.lane.b32.xlu0 %v2659, 16
      %v2745 = vpop.permute.xlu0 %2744
      %2746 = vrot.lane.b32.xlu0 %v2660, 16
      %v2747 = vpop.permute.xlu0 %2746
      %2748 = vrot.lane.b32.xlu0 %v2661, 16
      %v2749 = vpop.permute.xlu0 %2748
      %2750 = vrot.lane.b32.xlu0 %v2662, 16
      %v2751 = vpop.permute.xlu0 %2750
      %2752 = vrot.lane.b32.xlu0 %v2663, 16
      %v2753 = vpop.permute.xlu0 %2752
      %2754 = vrot.lane.b32.xlu0 %v2664, 16
      %v2755 = vpop.permute.xlu0 %2754
      %2756 = vrot.lane.b32.xlu0 %v2665, 16
      %v2757 = vpop.permute.xlu0 %2756
      %2758 = vrot.lane.b32.xlu0 %v2666, 16
      %v2759 = vpop.permute.xlu0 %2758
      %2760 = vrot.lane.b32.xlu0 %v2667, 16
      %v2761 = vpop.permute.xlu0 %2760
      %2762 = vrot.lane.b32.xlu0 %v2668, 16
      %v2763 = vpop.permute.xlu0 %2762
      %2764 = vrot.lane.b32.xlu0 %v2669, 16
      %v2765 = vpop.permute.xlu0 %2764
      %2798 = vst.msk [vmem:[#allocation3] sm:$0xff] %vm803, %v2703
      %2799 = vst.msk [vmem:[#allocation3 + $0x8] sm:$0xff] %vm803, %v2705
      %2800 = vst.msk [vmem:[#allocation3 + $0x10] sm:$0xff] %vm803, %v2707
      %2801 = vst.msk [vmem:[#allocation3 + $0x18] sm:$0xff] %vm803, %v2709
      %2802 = vst.msk [vmem:[#allocation3 + $0x20] sm:$0xff] %vm803, %v2711
      %2803 = vst.msk [vmem:[#allocation3 + $0x28] sm:$0xff] %vm803, %v2713
      %2804 = vst.msk [vmem:[#allocation3 + $0x30] sm:$0xff] %vm803, %v2715
      %2805 = vst.msk [vmem:[#allocation3 + $0x38] sm:$0xff] %vm803, %v2717
      %2806 = vst.msk [vmem:[#allocation3 + $0x40] sm:$0xff] %vm803, %v2719
      %2807 = vst.msk [vmem:[#allocation3 + $0x48] sm:$0xff] %vm803, %v2721
      %2808 = vst.msk [vmem:[#allocation3 + $0x50] sm:$0xff] %vm803, %v2723
      %2809 = vst.msk [vmem:[#allocation3 + $0x58] sm:$0xff] %vm803, %v2725
      %2810 = vst.msk [vmem:[#allocation3 + $0x60] sm:$0xff] %vm803, %v2727
      %2811 = vst.msk [vmem:[#allocation3 + $0x68] sm:$0xff] %vm803, %v2729
      %2812 = vst.msk [vmem:[#allocation3 + $0x70] sm:$0xff] %vm803, %v2731
      %2813 = vst.msk [vmem:[#allocation3 + $0x78] sm:$0xff] %vm803, %v2733
      %2814 = vst.msk [vmem:[#allocation3 + $0x80] sm:$0xff] %vm803, %v2735
      %2815 = vst.msk [vmem:[#allocation3 + $0x88] sm:$0xff] %vm803, %v2737
      %2816 = vst.msk [vmem:[#allocation3 + $0x90] sm:$0xff] %vm803, %v2739
      %2817 = vst.msk [vmem:[#allocation3 + $0x98] sm:$0xff] %vm803, %v2741
      %2818 = vst.msk [vmem:[#allocation3 + $0xa0] sm:$0xff] %vm803, %v2743
      %2819 = vst.msk [vmem:[#allocation3 + $0xa8] sm:$0xff] %vm803, %v2745
      %2820 = vst.msk [vmem:[#allocation3 + $0xb0] sm:$0xff] %vm803, %v2747
      %2821 = vst.msk [vmem:[#allocation3 + $0xb8] sm:$0xff] %vm803, %v2749
      %2822 = vst.msk [vmem:[#allocation3 + $0xc0] sm:$0xff] %vm803, %v2751
      %2823 = vst.msk [vmem:[#allocation3 + $0xc8] sm:$0xff] %vm803, %v2753
      %2824 = vst.msk [vmem:[#allocation3 + $0xd0] sm:$0xff] %vm803, %v2755
      %2825 = vst.msk [vmem:[#allocation3 + $0xd8] sm:$0xff] %vm803, %v2757
      %2826 = vst.msk [vmem:[#allocation3 + $0xe0] sm:$0xff] %vm803, %v2759
      %2827 = vst.msk [vmem:[#allocation3 + $0xe8] sm:$0xff] %vm803, %v2761
      %2828 = vst.msk [vmem:[#allocation3 + $0xf0] sm:$0xff] %vm803, %v2763
      %2829 = vst.msk [vmem:[#allocation3 + $0xf8] sm:$0xff] %vm803, %v2765
      %v2830 = vld [vmem:[%s288] sm:$0xff]
      %v2831 = vld [vmem:[%s288 + $0x8] sm:$0xff]
      %v2832 = vld [vmem:[%s288 + $0x18] sm:$0xff]
      %v2833 = vld [vmem:[%s288 + $0x20] sm:$0xff]
      %v2834 = vld [vmem:[%s288 + $0x30] sm:$0xff]
      %v2835 = vld [vmem:[%s288 + $0x38] sm:$0xff]
      %v2836 = vld [vmem:[%s288 + $0x48] sm:$0xff]
      %v2837 = vld [vmem:[%s288 + $0x50] sm:$0xff]
      %v2838 = vld [vmem:[%s288 + $0x60] sm:$0xff]
      %v2839 = vld [vmem:[%s288 + $0x68] sm:$0xff]
      %v2840 = vld [vmem:[%s288 + $0x78] sm:$0xff]
      %v2841 = vld [vmem:[%s288 + $0x80] sm:$0xff]
      %v2842 = vld [vmem:[%s288 + $0x90] sm:$0xff]
      %v2843 = vld [vmem:[%s288 + $0x98] sm:$0xff]
      %v2844 = vld [vmem:[%s288 + $0xa8] sm:$0xff]
      %v2845 = vld [vmem:[%s288 + $0xb0] sm:$0xff]
      %v2846 = vld [vmem:[%s288 + $0xc0] sm:$0xff]
      %v2847 = vld [vmem:[%s288 + $0xc8] sm:$0xff]
      %v2848 = vld [vmem:[%s288 + $0xd8] sm:$0xff]
      %v2849 = vld [vmem:[%s288 + $0xe0] sm:$0xff]
      %v2850 = vld [vmem:[%s288 + $0xf0] sm:$0xff]
      %v2851 = vld [vmem:[%s288 + $0xf8] sm:$0xff]
      %v2852 = vld [vmem:[%s288 + $0x108] sm:$0xff]
      %v2853 = vld [vmem:[%s288 + $0x110] sm:$0xff]
      %v2854 = vld [vmem:[%s288 + $0x120] sm:$0xff]
      %v2855 = vld [vmem:[%s288 + $0x128] sm:$0xff]
      %v2856 = vld [vmem:[%s288 + $0x138] sm:$0xff]
      %v2857 = vld [vmem:[%s288 + $0x140] sm:$0xff]
      %v2858 = vld [vmem:[%s288 + $0x150] sm:$0xff]
      %v2859 = vld [vmem:[%s288 + $0x158] sm:$0xff]
      %v2860 = vld [vmem:[%s288 + $0x168] sm:$0xff]
      %v2861 = vld [vmem:[%s288 + $0x170] sm:$0xff]
      %2894 = vrot.lane.b32.xlu0 %v2830, 24
      %v2895 = vpop.permute.xlu0 %2894
      %2896 = vrot.lane.b32.xlu0 %v2831, 24
      %v2897 = vpop.permute.xlu0 %2896
      %2898 = vrot.lane.b32.xlu0 %v2832, 24
      %v2899 = vpop.permute.xlu0 %2898
      %2900 = vrot.lane.b32.xlu0 %v2833, 24
      %v2901 = vpop.permute.xlu0 %2900
      %2902 = vrot.lane.b32.xlu0 %v2834, 24
      %v2903 = vpop.permute.xlu0 %2902
      %2904 = vrot.lane.b32.xlu0 %v2835, 24
      %v2905 = vpop.permute.xlu0 %2904
      %2906 = vrot.lane.b32.xlu0 %v2836, 24
      %v2907 = vpop.permute.xlu0 %2906
      %2908 = vrot.lane.b32.xlu0 %v2837, 24
      %v2909 = vpop.permute.xlu0 %2908
      %2910 = vrot.lane.b32.xlu0 %v2838, 24
      %v2911 = vpop.permute.xlu0 %2910
      %2912 = vrot.lane.b32.xlu0 %v2839, 24
      %v2913 = vpop.permute.xlu0 %2912
      %2914 = vrot.lane.b32.xlu0 %v2840, 24
      %v2915 = vpop.permute.xlu0 %2914
      %2916 = vrot.lane.b32.xlu0 %v2841, 24
      %v2917 = vpop.permute.xlu0 %2916
      %2918 = vrot.lane.b32.xlu0 %v2842, 24
      %v2919 = vpop.permute.xlu0 %2918
      %2920 = vrot.lane.b32.xlu0 %v2843, 24
      %v2921 = vpop.permute.xlu0 %2920
      %2922 = vrot.lane.b32.xlu0 %v2844, 24
      %v2923 = vpop.permute.xlu0 %2922
      %2924 = vrot.lane.b32.xlu0 %v2845, 24
      %v2925 = vpop.permute.xlu0 %2924
      %2926 = vrot.lane.b32.xlu0 %v2846, 24
      %v2927 = vpop.permute.xlu0 %2926
      %2928 = vrot.lane.b32.xlu0 %v2847, 24
      %v2929 = vpop.permute.xlu0 %2928
      %2930 = vrot.lane.b32.xlu0 %v2848, 24
      %v2931 = vpop.permute.xlu0 %2930
      %2932 = vrot.lane.b32.xlu0 %v2849, 24
      %v2933 = vpop.permute.xlu0 %2932
      %2934 = vrot.lane.b32.xlu0 %v2850, 24
      %v2935 = vpop.permute.xlu0 %2934
      %2936 = vrot.lane.b32.xlu0 %v2851, 24
      %v2937 = vpop.permute.xlu0 %2936
      %2938 = vrot.lane.b32.xlu0 %v2852, 24
      %v2939 = vpop.permute.xlu0 %2938
      %2940 = vrot.lane.b32.xlu0 %v2853, 24
      %v2941 = vpop.permute.xlu0 %2940
      %2942 = vrot.lane.b32.xlu0 %v2854, 24
      %v2943 = vpop.permute.xlu0 %2942
      %2944 = vrot.lane.b32.xlu0 %v2855, 24
      %v2945 = vpop.permute.xlu0 %2944
      %2946 = vrot.lane.b32.xlu0 %v2856, 24
      %v2947 = vpop.permute.xlu0 %2946
      %2948 = vrot.lane.b32.xlu0 %v2857, 24
      %v2949 = vpop.permute.xlu0 %2948
      %2950 = vrot.lane.b32.xlu0 %v2858, 24
      %v2951 = vpop.permute.xlu0 %2950
      %2952 = vrot.lane.b32.xlu0 %v2859, 24
      %v2953 = vpop.permute.xlu0 %2952
      %2954 = vrot.lane.b32.xlu0 %v2860, 24
      %v2955 = vpop.permute.xlu0 %2954
      %2956 = vrot.lane.b32.xlu0 %v2861, 24
      %v2957 = vpop.permute.xlu0 %2956
      %2990 = vst.msk [vmem:[#allocation3] sm:$0xff] %vm996, %v2895
      %2991 = vst.msk [vmem:[#allocation3 + $0x8] sm:$0xff] %vm996, %v2897
      %2992 = vst.msk [vmem:[#allocation3 + $0x10] sm:$0xff] %vm996, %v2899
      %2993 = vst.msk [vmem:[#allocation3 + $0x18] sm:$0xff] %vm996, %v2901
      %2994 = vst.msk [vmem:[#allocation3 + $0x20] sm:$0xff] %vm996, %v2903
      %2995 = vst.msk [vmem:[#allocation3 + $0x28] sm:$0xff] %vm996, %v2905
      %2996 = vst.msk [vmem:[#allocation3 + $0x30] sm:$0xff] %vm996, %v2907
      %2997 = vst.msk [vmem:[#allocation3 + $0x38] sm:$0xff] %vm996, %v2909
      %2998 = vst.msk [vmem:[#allocation3 + $0x40] sm:$0xff] %vm996, %v2911
      %2999 = vst.msk [vmem:[#allocation3 + $0x48] sm:$0xff] %vm996, %v2913
      %3000 = vst.msk [vmem:[#allocation3 + $0x50] sm:$0xff] %vm996, %v2915
      %3001 = vst.msk [vmem:[#allocation3 + $0x58] sm:$0xff] %vm996, %v2917
      %3002 = vst.msk [vmem:[#allocation3 + $0x60] sm:$0xff] %vm996, %v2919
      %3003 = vst.msk [vmem:[#allocation3 + $0x68] sm:$0xff] %vm996, %v2921
      %3004 = vst.msk [vmem:[#allocation3 + $0x70] sm:$0xff] %vm996, %v2923
      %3005 = vst.msk [vmem:[#allocation3 + $0x78] sm:$0xff] %vm996, %v2925
      %3006 = vst.msk [vmem:[#allocation3 + $0x80] sm:$0xff] %vm996, %v2927
      %3007 = vst.msk [vmem:[#allocation3 + $0x88] sm:$0xff] %vm996, %v2929
      %3008 = vst.msk [vmem:[#allocation3 + $0x90] sm:$0xff] %vm996, %v2931
      %3009 = vst.msk [vmem:[#allocation3 + $0x98] sm:$0xff] %vm996, %v2933
      %3010 = vst.msk [vmem:[#allocation3 + $0xa0] sm:$0xff] %vm996, %v2935
      %3011 = vst.msk [vmem:[#allocation3 + $0xa8] sm:$0xff] %vm996, %v2937
      %3012 = vst.msk [vmem:[#allocation3 + $0xb0] sm:$0xff] %vm996, %v2939
      %3013 = vst.msk [vmem:[#allocation3 + $0xb8] sm:$0xff] %vm996, %v2941
      %3014 = vst.msk [vmem:[#allocation3 + $0xc0] sm:$0xff] %vm996, %v2943
      %3015 = vst.msk [vmem:[#allocation3 + $0xc8] sm:$0xff] %vm996, %v2945
      %3016 = vst.msk [vmem:[#allocation3 + $0xd0] sm:$0xff] %vm996, %v2947
      %3017 = vst.msk [vmem:[#allocation3 + $0xd8] sm:$0xff] %vm996, %v2949
      %3018 = vst.msk [vmem:[#allocation3 + $0xe0] sm:$0xff] %vm996, %v2951
      %3019 = vst.msk [vmem:[#allocation3 + $0xe8] sm:$0xff] %vm996, %v2953
      %3020 = vst.msk [vmem:[#allocation3 + $0xf0] sm:$0xff] %vm996, %v2955
      %3021 = vst.msk [vmem:[#allocation3 + $0xf8] sm:$0xff] %vm996, %v2957
      %v3022 = vld [vmem:[%s288 + $0x1] sm:$0xff]
      %v3023 = vld [vmem:[%s288 + $0x9] sm:$0xff]
      %v3024 = vld [vmem:[%s288 + $0x19] sm:$0xff]
      %v3025 = vld [vmem:[%s288 + $0x21] sm:$0xff]
      %v3026 = vld [vmem:[%s288 + $0x31] sm:$0xff]
      %v3027 = vld [vmem:[%s288 + $0x39] sm:$0xff]
      %v3028 = vld [vmem:[%s288 + $0x49] sm:$0xff]
      %v3029 = vld [vmem:[%s288 + $0x51] sm:$0xff]
      %v3030 = vld [vmem:[%s288 + $0x61] sm:$0xff]
      %v3031 = vld [vmem:[%s288 + $0x69] sm:$0xff]
      %v3032 = vld [vmem:[%s288 + $0x79] sm:$0xff]
      %v3033 = vld [vmem:[%s288 + $0x81] sm:$0xff]
      %v3034 = vld [vmem:[%s288 + $0x91] sm:$0xff]
      %v3035 = vld [vmem:[%s288 + $0x99] sm:$0xff]
      %v3036 = vld [vmem:[%s288 + $0xa9] sm:$0xff]
      %v3037 = vld [vmem:[%s288 + $0xb1] sm:$0xff]
      %v3038 = vld [vmem:[%s288 + $0xc1] sm:$0xff]
      %v3039 = vld [vmem:[%s288 + $0xc9] sm:$0xff]
      %v3040 = vld [vmem:[%s288 + $0xd9] sm:$0xff]
      %v3041 = vld [vmem:[%s288 + $0xe1] sm:$0xff]
      %v3042 = vld [vmem:[%s288 + $0xf1] sm:$0xff]
      %v3043 = vld [vmem:[%s288 + $0xf9] sm:$0xff]
      %v3044 = vld [vmem:[%s288 + $0x109] sm:$0xff]
      %v3045 = vld [vmem:[%s288 + $0x111] sm:$0xff]
      %v3046 = vld [vmem:[%s288 + $0x121] sm:$0xff]
      %v3047 = vld [vmem:[%s288 + $0x129] sm:$0xff]
      %v3048 = vld [vmem:[%s288 + $0x139] sm:$0xff]
      %v3049 = vld [vmem:[%s288 + $0x141] sm:$0xff]
      %v3050 = vld [vmem:[%s288 + $0x151] sm:$0xff]
      %v3051 = vld [vmem:[%s288 + $0x159] sm:$0xff]
      %v3052 = vld [vmem:[%s288 + $0x169] sm:$0xff]
      %v3053 = vld [vmem:[%s288 + $0x171] sm:$0xff]
      %3086 = vrot.lane.b32.xlu0 %v3022, 32
      %v3087 = vpop.permute.xlu0 %3086
      %3088 = vrot.lane.b32.xlu0 %v3023, 32
      %v3089 = vpop.permute.xlu0 %3088
      %3090 = vrot.lane.b32.xlu0 %v3024, 32
      %v3091 = vpop.permute.xlu0 %3090
      %3092 = vrot.lane.b32.xlu0 %v3025, 32
      %v3093 = vpop.permute.xlu0 %3092
      %3094 = vrot.lane.b32.xlu0 %v3026, 32
      %v3095 = vpop.permute.xlu0 %3094
      %3096 = vrot.lane.b32.xlu0 %v3027, 32
      %v3097 = vpop.permute.xlu0 %3096
      %3098 = vrot.lane.b32.xlu0 %v3028, 32
      %v3099 = vpop.permute.xlu0 %3098
      %3100 = vrot.lane.b32.xlu0 %v3029, 32
      %v3101 = vpop.permute.xlu0 %3100
      %3102 = vrot.lane.b32.xlu0 %v3030, 32
      %v3103 = vpop.permute.xlu0 %3102
      %3104 = vrot.lane.b32.xlu0 %v3031, 32
      %v3105 = vpop.permute.xlu0 %3104
      %3106 = vrot.lane.b32.xlu0 %v3032, 32
      %v3107 = vpop.permute.xlu0 %3106
      %3108 = vrot.lane.b32.xlu0 %v3033, 32
      %v3109 = vpop.permute.xlu0 %3108
      %3110 = vrot.lane.b32.xlu0 %v3034, 32
      %v3111 = vpop.permute.xlu0 %3110
      %3112 = vrot.lane.b32.xlu0 %v3035, 32
      %v3113 = vpop.permute.xlu0 %3112
      %3114 = vrot.lane.b32.xlu0 %v3036, 32
      %v3115 = vpop.permute.xlu0 %3114
      %3116 = vrot.lane.b32.xlu0 %v3037, 32
      %v3117 = vpop.permute.xlu0 %3116
      %3118 = vrot.lane.b32.xlu0 %v3038, 32
      %v3119 = vpop.permute.xlu0 %3118
      %3120 = vrot.lane.b32.xlu0 %v3039, 32
      %v3121 = vpop.permute.xlu0 %3120
      %3122 = vrot.lane.b32.xlu0 %v3040, 32
      %v3123 = vpop.permute.xlu0 %3122
      %3124 = vrot.lane.b32.xlu0 %v3041, 32
      %v3125 = vpop.permute.xlu0 %3124
      %3126 = vrot.lane.b32.xlu0 %v3042, 32
      %v3127 = vpop.permute.xlu0 %3126
      %3128 = vrot.lane.b32.xlu0 %v3043, 32
      %v3129 = vpop.permute.xlu0 %3128
      %3130 = vrot.lane.b32.xlu0 %v3044, 32
      %v3131 = vpop.permute.xlu0 %3130
      %3132 = vrot.lane.b32.xlu0 %v3045, 32
      %v3133 = vpop.permute.xlu0 %3132
      %3134 = vrot.lane.b32.xlu0 %v3046, 32
      %v3135 = vpop.permute.xlu0 %3134
      %3136 = vrot.lane.b32.xlu0 %v3047, 32
      %v3137 = vpop.permute.xlu0 %3136
      %3138 = vrot.lane.b32.xlu0 %v3048, 32
      %v3139 = vpop.permute.xlu0 %3138
      %3140 = vrot.lane.b32.xlu0 %v3049, 32
      %v3141 = vpop.permute.xlu0 %3140
      %3142 = vrot.lane.b32.xlu0 %v3050, 32
      %v3143 = vpop.permute.xlu0 %3142
      %3144 = vrot.lane.b32.xlu0 %v3051, 32
      %v3145 = vpop.permute.xlu0 %3144
      %3146 = vrot.lane.b32.xlu0 %v3052, 32
      %v3147 = vpop.permute.xlu0 %3146
      %3148 = vrot.lane.b32.xlu0 %v3053, 32
      %v3149 = vpop.permute.xlu0 %3148
      %3182 = vst.msk [vmem:[#allocation3] sm:$0xff] %vm1189, %v3087
      %3183 = vst.msk [vmem:[#allocation3 + $0x8] sm:$0xff] %vm1189, %v3089
      %3184 = vst.msk [vmem:[#allocation3 + $0x10] sm:$0xff] %vm1189, %v3091
      %3185 = vst.msk [vmem:[#allocation3 + $0x18] sm:$0xff] %vm1189, %v3093
      %3186 = vst.msk [vmem:[#allocation3 + $0x20] sm:$0xff] %vm1189, %v3095
      %3187 = vst.msk [vmem:[#allocation3 + $0x28] sm:$0xff] %vm1189, %v3097
      %3188 = vst.msk [vmem:[#allocation3 + $0x30] sm:$0xff] %vm1189, %v3099
      %3189 = vst.msk [vmem:[#allocation3 + $0x38] sm:$0xff] %vm1189, %v3101
      %3190 = vst.msk [vmem:[#allocation3 + $0x40] sm:$0xff] %vm1189, %v3103
      %3191 = vst.msk [vmem:[#allocation3 + $0x48] sm:$0xff] %vm1189, %v3105
      %3192 = vst.msk [vmem:[#allocation3 + $0x50] sm:$0xff] %vm1189, %v3107
      %3193 = vst.msk [vmem:[#allocation3 + $0x58] sm:$0xff] %vm1189, %v3109
      %3194 = vst.msk [vmem:[#allocation3 + $0x60] sm:$0xff] %vm1189, %v3111
      %3195 = vst.msk [vmem:[#allocation3 + $0x68] sm:$0xff] %vm1189, %v3113
      %3196 = vst.msk [vmem:[#allocation3 + $0x70] sm:$0xff] %vm1189, %v3115
      %3197 = vst.msk [vmem:[#allocation3 + $0x78] sm:$0xff] %vm1189, %v3117
      %3198 = vst.msk [vmem:[#allocation3 + $0x80] sm:$0xff] %vm1189, %v3119
      %3199 = vst.msk [vmem:[#allocation3 + $0x88] sm:$0xff] %vm1189, %v3121
      %3200 = vst.msk [vmem:[#allocation3 + $0x90] sm:$0xff] %vm1189, %v3123
      %3201 = vst.msk [vmem:[#allocation3 + $0x98] sm:$0xff] %vm1189, %v3125
      %3202 = vst.msk [vmem:[#allocation3 + $0xa0] sm:$0xff] %vm1189, %v3127
      %3203 = vst.msk [vmem:[#allocation3 + $0xa8] sm:$0xff] %vm1189, %v3129
      %3204 = vst.msk [vmem:[#allocation3 + $0xb0] sm:$0xff] %vm1189, %v3131
      %3205 = vst.msk [vmem:[#allocation3 + $0xb8] sm:$0xff] %vm1189, %v3133
      %3206 = vst.msk [vmem:[#allocation3 + $0xc0] sm:$0xff] %vm1189, %v3135
      %3207 = vst.msk [vmem:[#allocation3 + $0xc8] sm:$0xff] %vm1189, %v3137
      %3208 = vst.msk [vmem:[#allocation3 + $0xd0] sm:$0xff] %vm1189, %v3139
      %3209 = vst.msk [vmem:[#allocation3 + $0xd8] sm:$0xff] %vm1189, %v3141
      %3210 = vst.msk [vmem:[#allocation3 + $0xe0] sm:$0xff] %vm1189, %v3143
      %3211 = vst.msk [vmem:[#allocation3 + $0xe8] sm:$0xff] %vm1189, %v3145
      %3212 = vst.msk [vmem:[#allocation3 + $0xf0] sm:$0xff] %vm1189, %v3147
      %3213 = vst.msk [vmem:[#allocation3 + $0xf8] sm:$0xff] %vm1189, %v3149
      %v3214 = vld [vmem:[%s288 + $0x2] sm:$0xff]
      %v3215 = vld [vmem:[%s288 + $0xa] sm:$0xff]
      %v3216 = vld [vmem:[%s288 + $0x1a] sm:$0xff]
      %v3217 = vld [vmem:[%s288 + $0x22] sm:$0xff]
      %v3218 = vld [vmem:[%s288 + $0x32] sm:$0xff]
      %v3219 = vld [vmem:[%s288 + $0x3a] sm:$0xff]
      %v3220 = vld [vmem:[%s288 + $0x4a] sm:$0xff]
      %v3221 = vld [vmem:[%s288 + $0x52] sm:$0xff]
      %v3222 = vld [vmem:[%s288 + $0x62] sm:$0xff]
      %v3223 = vld [vmem:[%s288 + $0x6a] sm:$0xff]
      %v3224 = vld [vmem:[%s288 + $0x7a] sm:$0xff]
      %v3225 = vld [vmem:[%s288 + $0x82] sm:$0xff]
      %v3226 = vld [vmem:[%s288 + $0x92] sm:$0xff]
      %v3227 = vld [vmem:[%s288 + $0x9a] sm:$0xff]
      %v3228 = vld [vmem:[%s288 + $0xaa] sm:$0xff]
      %v3229 = vld [vmem:[%s288 + $0xb2] sm:$0xff]
      %v3230 = vld [vmem:[%s288 + $0xc2] sm:$0xff]
      %v3231 = vld [vmem:[%s288 + $0xca] sm:$0xff]
      %v3232 = vld [vmem:[%s288 + $0xda] sm:$0xff]
      %v3233 = vld [vmem:[%s288 + $0xe2] sm:$0xff]
      %v3234 = vld [vmem:[%s288 + $0xf2] sm:$0xff]
      %v3235 = vld [vmem:[%s288 + $0xfa] sm:$0xff]
      %v3236 = vld [vmem:[%s288 + $0x10a] sm:$0xff]
      %v3237 = vld [vmem:[%s288 + $0x112] sm:$0xff]
      %v3238 = vld [vmem:[%s288 + $0x122] sm:$0xff]
      %v3239 = vld [vmem:[%s288 + $0x12a] sm:$0xff]
      %v3240 = vld [vmem:[%s288 + $0x13a] sm:$0xff]
      %v3241 = vld [vmem:[%s288 + $0x142] sm:$0xff]
      %v3242 = vld [vmem:[%s288 + $0x152] sm:$0xff]
      %v3243 = vld [vmem:[%s288 + $0x15a] sm:$0xff]
      %v3244 = vld [vmem:[%s288 + $0x16a] sm:$0xff]
      %v3245 = vld [vmem:[%s288 + $0x172] sm:$0xff]
      %3278 = vrot.lane.b32.xlu0 %v3214, 40
      %v3279 = vpop.permute.xlu0 %3278
      %3280 = vrot.lane.b32.xlu0 %v3215, 40
      %v3281 = vpop.permute.xlu0 %3280
      %3282 = vrot.lane.b32.xlu0 %v3216, 40
      %v3283 = vpop.permute.xlu0 %3282
      %3284 = vrot.lane.b32.xlu0 %v3217, 40
      %v3285 = vpop.permute.xlu0 %3284
      %3286 = vrot.lane.b32.xlu0 %v3218, 40
      %v3287 = vpop.permute.xlu0 %3286
      %3288 = vrot.lane.b32.xlu0 %v3219, 40
      %v3289 = vpop.permute.xlu0 %3288
      %3290 = vrot.lane.b32.xlu0 %v3220, 40
      %v3291 = vpop.permute.xlu0 %3290
      %3292 = vrot.lane.b32.xlu0 %v3221, 40
      %v3293 = vpop.permute.xlu0 %3292
      %3294 = vrot.lane.b32.xlu0 %v3222, 40
      %v3295 = vpop.permute.xlu0 %3294
      %3296 = vrot.lane.b32.xlu0 %v3223, 40
      %v3297 = vpop.permute.xlu0 %3296
      %3298 = vrot.lane.b32.xlu0 %v3224, 40
      %v3299 = vpop.permute.xlu0 %3298
      %3300 = vrot.lane.b32.xlu0 %v3225, 40
      %v3301 = vpop.permute.xlu0 %3300
      %3302 = vrot.lane.b32.xlu0 %v3226, 40
      %v3303 = vpop.permute.xlu0 %3302
      %3304 = vrot.lane.b32.xlu0 %v3227, 40
      %v3305 = vpop.permute.xlu0 %3304
      %3306 = vrot.lane.b32.xlu0 %v3228, 40
      %v3307 = vpop.permute.xlu0 %3306
      %3308 = vrot.lane.b32.xlu0 %v3229, 40
      %v3309 = vpop.permute.xlu0 %3308
      %3310 = vrot.lane.b32.xlu0 %v3230, 40
      %v3311 = vpop.permute.xlu0 %3310
      %3312 = vrot.lane.b32.xlu0 %v3231, 40
      %v3313 = vpop.permute.xlu0 %3312
      %3314 = vrot.lane.b32.xlu0 %v3232, 40
      %v3315 = vpop.permute.xlu0 %3314
      %3316 = vrot.lane.b32.xlu0 %v3233, 40
      %v3317 = vpop.permute.xlu0 %3316
      %3318 = vrot.lane.b32.xlu0 %v3234, 40
      %v3319 = vpop.permute.xlu0 %3318
      %3320 = vrot.lane.b32.xlu0 %v3235, 40
      %v3321 = vpop.permute.xlu0 %3320
      %3322 = vrot.lane.b32.xlu0 %v3236, 40
      %v3323 = vpop.permute.xlu0 %3322
      %3324 = vrot.lane.b32.xlu0 %v3237, 40
      %v3325 = vpop.permute.xlu0 %3324
      %3326 = vrot.lane.b32.xlu0 %v3238, 40
      %v3327 = vpop.permute.xlu0 %3326
      %3328 = vrot.lane.b32.xlu0 %v3239, 40
      %v3329 = vpop.permute.xlu0 %3328
      %3330 = vrot.lane.b32.xlu0 %v3240, 40
      %v3331 = vpop.permute.xlu0 %3330
      %3332 = vrot.lane.b32.xlu0 %v3241, 40
      %v3333 = vpop.permute.xlu0 %3332
      %3334 = vrot.lane.b32.xlu0 %v3242, 40
      %v3335 = vpop.permute.xlu0 %3334
      %3336 = vrot.lane.b32.xlu0 %v3243, 40
      %v3337 = vpop.permute.xlu0 %3336
      %3338 = vrot.lane.b32.xlu0 %v3244, 40
      %v3339 = vpop.permute.xlu0 %3338
      %3340 = vrot.lane.b32.xlu0 %v3245, 40
      %v3341 = vpop.permute.xlu0 %3340
      %3374 = vst.msk [vmem:[#allocation3] sm:$0xff] %vm1382, %v3279
      %3375 = vst.msk [vmem:[#allocation3 + $0x8] sm:$0xff] %vm1382, %v3281
      %3376 = vst.msk [vmem:[#allocation3 + $0x10] sm:$0xff] %vm1382, %v3283
      %3377 = vst.msk [vmem:[#allocation3 + $0x18] sm:$0xff] %vm1382, %v3285
      %3378 = vst.msk [vmem:[#allocation3 + $0x20] sm:$0xff] %vm1382, %v3287
      %3379 = vst.msk [vmem:[#allocation3 + $0x28] sm:$0xff] %vm1382, %v3289
      %3380 = vst.msk [vmem:[#allocation3 + $0x30] sm:$0xff] %vm1382, %v3291
      %3381 = vst.msk [vmem:[#allocation3 + $0x38] sm:$0xff] %vm1382, %v3293
      %3382 = vst.msk [vmem:[#allocation3 + $0x40] sm:$0xff] %vm1382, %v3295
      %3383 = vst.msk [vmem:[#allocation3 + $0x48] sm:$0xff] %vm1382, %v3297
      %3384 = vst.msk [vmem:[#allocation3 + $0x50] sm:$0xff] %vm1382, %v3299
      %3385 = vst.msk [vmem:[#allocation3 + $0x58] sm:$0xff] %vm1382, %v3301
      %3386 = vst.msk [vmem:[#allocation3 + $0x60] sm:$0xff] %vm1382, %v3303
      %3387 = vst.msk [vmem:[#allocation3 + $0x68] sm:$0xff] %vm1382, %v3305
      %3388 = vst.msk [vmem:[#allocation3 + $0x70] sm:$0xff] %vm1382, %v3307
      %3389 = vst.msk [vmem:[#allocation3 + $0x78] sm:$0xff] %vm1382, %v3309
      %3390 = vst.msk [vmem:[#allocation3 + $0x80] sm:$0xff] %vm1382, %v3311
      %3391 = vst.msk [vmem:[#allocation3 + $0x88] sm:$0xff] %vm1382, %v3313
      %3392 = vst.msk [vmem:[#allocation3 + $0x90] sm:$0xff] %vm1382, %v3315
      %3393 = vst.msk [vmem:[#allocation3 + $0x98] sm:$0xff] %vm1382, %v3317
      %3394 = vst.msk [vmem:[#allocation3 + $0xa0] sm:$0xff] %vm1382, %v3319
      %3395 = vst.msk [vmem:[#allocation3 + $0xa8] sm:$0xff] %vm1382, %v3321
      %3396 = vst.msk [vmem:[#allocation3 + $0xb0] sm:$0xff] %vm1382, %v3323
      %3397 = vst.msk [vmem:[#allocation3 + $0xb8] sm:$0xff] %vm1382, %v3325
      %3398 = vst.msk [vmem:[#allocation3 + $0xc0] sm:$0xff] %vm1382, %v3327
      %3399 = vst.msk [vmem:[#allocation3 + $0xc8] sm:$0xff] %vm1382, %v3329
      %3400 = vst.msk [vmem:[#allocation3 + $0xd0] sm:$0xff] %vm1382, %v3331
      %3401 = vst.msk [vmem:[#allocation3 + $0xd8] sm:$0xff] %vm1382, %v3333
      %3402 = vst.msk [vmem:[#allocation3 + $0xe0] sm:$0xff] %vm1382, %v3335
      %3403 = vst.msk [vmem:[#allocation3 + $0xe8] sm:$0xff] %vm1382, %v3337
      %3404 = vst.msk [vmem:[#allocation3 + $0xf0] sm:$0xff] %vm1382, %v3339
      %3405 = vst.msk [vmem:[#allocation3 + $0xf8] sm:$0xff] %vm1382, %v3341
      %v3406 = vld [vmem:[%s1415] sm:$0xff]
      %v3407 = vld [vmem:[%s1415 + $0x8] sm:$0xff]
      %v3408 = vld [vmem:[%s1415 + $0x18] sm:$0xff]
      %v3409 = vld [vmem:[%s1415 + $0x20] sm:$0xff]
      %v3410 = vld [vmem:[%s1415 + $0x30] sm:$0xff]
      %v3411 = vld [vmem:[%s1415 + $0x38] sm:$0xff]
      %v3412 = vld [vmem:[%s1415 + $0x48] sm:$0xff]
      %v3413 = vld [vmem:[%s1415 + $0x50] sm:$0xff]
      %v3414 = vld [vmem:[%s1415 + $0x60] sm:$0xff]
      %v3415 = vld [vmem:[%s1415 + $0x68] sm:$0xff]
      %v3416 = vld [vmem:[%s1415 + $0x78] sm:$0xff]
      %v3417 = vld [vmem:[%s1415 + $0x80] sm:$0xff]
      %v3418 = vld [vmem:[%s1415 + $0x90] sm:$0xff]
      %v3419 = vld [vmem:[%s1415 + $0x98] sm:$0xff]
      %v3420 = vld [vmem:[%s1415 + $0xa8] sm:$0xff]
      %v3421 = vld [vmem:[%s1415 + $0xb0] sm:$0xff]
      %v3422 = vld [vmem:[%s1415 + $0xc0] sm:$0xff]
      %v3423 = vld [vmem:[%s1415 + $0xc8] sm:$0xff]
      %v3424 = vld [vmem:[%s1415 + $0xd8] sm:$0xff]
      %v3425 = vld [vmem:[%s1415 + $0xe0] sm:$0xff]
      %v3426 = vld [vmem:[%s1415 + $0xf0] sm:$0xff]
      %v3427 = vld [vmem:[%s1415 + $0xf8] sm:$0xff]
      %v3428 = vld [vmem:[%s1415 + $0x108] sm:$0xff]
      %v3429 = vld [vmem:[%s1415 + $0x110] sm:$0xff]
      %v3430 = vld [vmem:[%s1415 + $0x120] sm:$0xff]
      %v3431 = vld [vmem:[%s1415 + $0x128] sm:$0xff]
      %v3432 = vld [vmem:[%s1415 + $0x138] sm:$0xff]
      %v3433 = vld [vmem:[%s1415 + $0x140] sm:$0xff]
      %v3434 = vld [vmem:[%s1415 + $0x150] sm:$0xff]
      %v3435 = vld [vmem:[%s1415 + $0x158] sm:$0xff]
      %v3436 = vld [vmem:[%s1415 + $0x168] sm:$0xff]
      %v3437 = vld [vmem:[%s1415 + $0x170] sm:$0xff]
      %3470 = vrot.lane.b32.xlu0 %v3406, 48
      %v3471 = vpop.permute.xlu0 %3470
      %3472 = vrot.lane.b32.xlu0 %v3407, 48
      %v3473 = vpop.permute.xlu0 %3472
      %3474 = vrot.lane.b32.xlu0 %v3408, 48
      %v3475 = vpop.permute.xlu0 %3474
      %3476 = vrot.lane.b32.xlu0 %v3409, 48
      %v3477 = vpop.permute.xlu0 %3476
      %3478 = vrot.lane.b32.xlu0 %v3410, 48
      %v3479 = vpop.permute.xlu0 %3478
      %3480 = vrot.lane.b32.xlu0 %v3411, 48
      %v3481 = vpop.permute.xlu0 %3480
      %3482 = vrot.lane.b32.xlu0 %v3412, 48
      %v3483 = vpop.permute.xlu0 %3482
      %3484 = vrot.lane.b32.xlu0 %v3413, 48
      %v3485 = vpop.permute.xlu0 %3484
      %3486 = vrot.lane.b32.xlu0 %v3414, 48
      %v3487 = vpop.permute.xlu0 %3486
      %3488 = vrot.lane.b32.xlu0 %v3415, 48
      %v3489 = vpop.permute.xlu0 %3488
      %3490 = vrot.lane.b32.xlu0 %v3416, 48
      %v3491 = vpop.permute.xlu0 %3490
      %3492 = vrot.lane.b32.xlu0 %v3417, 48
      %v3493 = vpop.permute.xlu0 %3492
      %3494 = vrot.lane.b32.xlu0 %v3418, 48
      %v3495 = vpop.permute.xlu0 %3494
      %3496 = vrot.lane.b32.xlu0 %v3419, 48
      %v3497 = vpop.permute.xlu0 %3496
      %3498 = vrot.lane.b32.xlu0 %v3420, 48
      %v3499 = vpop.permute.xlu0 %3498
      %3500 = vrot.lane.b32.xlu0 %v3421, 48
      %v3501 = vpop.permute.xlu0 %3500
      %3502 = vrot.lane.b32.xlu0 %v3422, 48
      %v3503 = vpop.permute.xlu0 %3502
      %3504 = vrot.lane.b32.xlu0 %v3423, 48
      %v3505 = vpop.permute.xlu0 %3504
      %3506 = vrot.lane.b32.xlu0 %v3424, 48
      %v3507 = vpop.permute.xlu0 %3506
      %3508 = vrot.lane.b32.xlu0 %v3425, 48
      %v3509 = vpop.permute.xlu0 %3508
      %3510 = vrot.lane.b32.xlu0 %v3426, 48
      %v3511 = vpop.permute.xlu0 %3510
      %3512 = vrot.lane.b32.xlu0 %v3427, 48
      %v3513 = vpop.permute.xlu0 %3512
      %3514 = vrot.lane.b32.xlu0 %v3428, 48
      %v3515 = vpop.permute.xlu0 %3514
      %3516 = vrot.lane.b32.xlu0 %v3429, 48
      %v3517 = vpop.permute.xlu0 %3516
      %3518 = vrot.lane.b32.xlu0 %v3430, 48
      %v3519 = vpop.permute.xlu0 %3518
      %3520 = vrot.lane.b32.xlu0 %v3431, 48
      %v3521 = vpop.permute.xlu0 %3520
      %3522 = vrot.lane.b32.xlu0 %v3432, 48
      %v3523 = vpop.permute.xlu0 %3522
      %3524 = vrot.lane.b32.xlu0 %v3433, 48
      %v3525 = vpop.permute.xlu0 %3524
      %3526 = vrot.lane.b32.xlu0 %v3434, 48
      %v3527 = vpop.permute.xlu0 %3526
      %3528 = vrot.lane.b32.xlu0 %v3435, 48
      %v3529 = vpop.permute.xlu0 %3528
      %3530 = vrot.lane.b32.xlu0 %v3436, 48
      %v3531 = vpop.permute.xlu0 %3530
      %3532 = vrot.lane.b32.xlu0 %v3437, 48
      %v3533 = vpop.permute.xlu0 %3532
      %3566 = vst.msk [vmem:[#allocation3] sm:$0xff] %vm1576, %v3471
      %3567 = vst.msk [vmem:[#allocation3 + $0x8] sm:$0xff] %vm1576, %v3473
      %3568 = vst.msk [vmem:[#allocation3 + $0x10] sm:$0xff] %vm1576, %v3475
      %3569 = vst.msk [vmem:[#allocation3 + $0x18] sm:$0xff] %vm1576, %v3477
      %3570 = vst.msk [vmem:[#allocation3 + $0x20] sm:$0xff] %vm1576, %v3479
      %3571 = vst.msk [vmem:[#allocation3 + $0x28] sm:$0xff] %vm1576, %v3481
      %3572 = vst.msk [vmem:[#allocation3 + $0x30] sm:$0xff] %vm1576, %v3483
      %3573 = vst.msk [vmem:[#allocation3 + $0x38] sm:$0xff] %vm1576, %v3485
      %3574 = vst.msk [vmem:[#allocation3 + $0x40] sm:$0xff] %vm1576, %v3487
      %3575 = vst.msk [vmem:[#allocation3 + $0x48] sm:$0xff] %vm1576, %v3489
      %3576 = vst.msk [vmem:[#allocation3 + $0x50] sm:$0xff] %vm1576, %v3491
      %3577 = vst.msk [vmem:[#allocation3 + $0x58] sm:$0xff] %vm1576, %v3493
      %3578 = vst.msk [vmem:[#allocation3 + $0x60] sm:$0xff] %vm1576, %v3495
      %3579 = vst.msk [vmem:[#allocation3 + $0x68] sm:$0xff] %vm1576, %v3497
      %3580 = vst.msk [vmem:[#allocation3 + $0x70] sm:$0xff] %vm1576, %v3499
      %3581 = vst.msk [vmem:[#allocation3 + $0x78] sm:$0xff] %vm1576, %v3501
      %3582 = vst.msk [vmem:[#allocation3 + $0x80] sm:$0xff] %vm1576, %v3503
      %3583 = vst.msk [vmem:[#allocation3 + $0x88] sm:$0xff] %vm1576, %v3505
      %3584 = vst.msk [vmem:[#allocation3 + $0x90] sm:$0xff] %vm1576, %v3507
      %3585 = vst.msk [vmem:[#allocation3 + $0x98] sm:$0xff] %vm1576, %v3509
      %3586 = vst.msk [vmem:[#allocation3 + $0xa0] sm:$0xff] %vm1576, %v3511
      %3587 = vst.msk [vmem:[#allocation3 + $0xa8] sm:$0xff] %vm1576, %v3513
      %3588 = vst.msk [vmem:[#allocation3 + $0xb0] sm:$0xff] %vm1576, %v3515
      %3589 = vst.msk [vmem:[#allocation3 + $0xb8] sm:$0xff] %vm1576, %v3517
      %3590 = vst.msk [vmem:[#allocation3 + $0xc0] sm:$0xff] %vm1576, %v3519
      %3591 = vst.msk [vmem:[#allocation3 + $0xc8] sm:$0xff] %vm1576, %v3521
      %3592 = vst.msk [vmem:[#allocation3 + $0xd0] sm:$0xff] %vm1576, %v3523
      %3593 = vst.msk [vmem:[#allocation3 + $0xd8] sm:$0xff] %vm1576, %v3525
      %3594 = vst.msk [vmem:[#allocation3 + $0xe0] sm:$0xff] %vm1576, %v3527
      %3595 = vst.msk [vmem:[#allocation3 + $0xe8] sm:$0xff] %vm1576, %v3529
      %3596 = vst.msk [vmem:[#allocation3 + $0xf0] sm:$0xff] %vm1576, %v3531
      %3597 = vst.msk [vmem:[#allocation3 + $0xf8] sm:$0xff] %vm1576, %v3533
      %v3598 = vld [vmem:[%s1415 + $0x1] sm:$0xff]
      %v3599 = vld [vmem:[%s1415 + $0x9] sm:$0xff]
      %v3600 = vld [vmem:[%s1415 + $0x19] sm:$0xff]
      %v3601 = vld [vmem:[%s1415 + $0x21] sm:$0xff]
      %v3602 = vld [vmem:[%s1415 + $0x31] sm:$0xff]
      %v3603 = vld [vmem:[%s1415 + $0x39] sm:$0xff]
      %v3604 = vld [vmem:[%s1415 + $0x49] sm:$0xff]
      %v3605 = vld [vmem:[%s1415 + $0x51] sm:$0xff]
      %v3606 = vld [vmem:[%s1415 + $0x61] sm:$0xff]
      %v3607 = vld [vmem:[%s1415 + $0x69] sm:$0xff]
      %v3608 = vld [vmem:[%s1415 + $0x79] sm:$0xff]
      %v3609 = vld [vmem:[%s1415 + $0x81] sm:$0xff]
      %v3610 = vld [vmem:[%s1415 + $0x91] sm:$0xff]
      %v3611 = vld [vmem:[%s1415 + $0x99] sm:$0xff]
      %v3612 = vld [vmem:[%s1415 + $0xa9] sm:$0xff]
      %v3613 = vld [vmem:[%s1415 + $0xb1] sm:$0xff]
      %v3614 = vld [vmem:[%s1415 + $0xc1] sm:$0xff]
      %v3615 = vld [vmem:[%s1415 + $0xc9] sm:$0xff]
      %v3616 = vld [vmem:[%s1415 + $0xd9] sm:$0xff]
      %v3617 = vld [vmem:[%s1415 + $0xe1] sm:$0xff]
      %v3618 = vld [vmem:[%s1415 + $0xf1] sm:$0xff]
      %v3619 = vld [vmem:[%s1415 + $0xf9] sm:$0xff]
      %v3620 = vld [vmem:[%s1415 + $0x109] sm:$0xff]
      %v3621 = vld [vmem:[%s1415 + $0x111] sm:$0xff]
      %v3622 = vld [vmem:[%s1415 + $0x121] sm:$0xff]
      %v3623 = vld [vmem:[%s1415 + $0x129] sm:$0xff]
      %v3624 = vld [vmem:[%s1415 + $0x139] sm:$0xff]
      %v3625 = vld [vmem:[%s1415 + $0x141] sm:$0xff]
      %v3626 = vld [vmem:[%s1415 + $0x151] sm:$0xff]
      %v3627 = vld [vmem:[%s1415 + $0x159] sm:$0xff]
      %v3628 = vld [vmem:[%s1415 + $0x169] sm:$0xff]
      %v3629 = vld [vmem:[%s1415 + $0x171] sm:$0xff]
      %3662 = vrot.lane.b32.xlu0 %v3598, 56
      %v3663 = vpop.permute.xlu0 %3662
      %3664 = vrot.lane.b32.xlu0 %v3599, 56
      %v3665 = vpop.permute.xlu0 %3664
      %3666 = vrot.lane.b32.xlu0 %v3600, 56
      %v3667 = vpop.permute.xlu0 %3666
      %3668 = vrot.lane.b32.xlu0 %v3601, 56
      %v3669 = vpop.permute.xlu0 %3668
      %3670 = vrot.lane.b32.xlu0 %v3602, 56
      %v3671 = vpop.permute.xlu0 %3670
      %3672 = vrot.lane.b32.xlu0 %v3603, 56
      %v3673 = vpop.permute.xlu0 %3672
      %3674 = vrot.lane.b32.xlu0 %v3604, 56
      %v3675 = vpop.permute.xlu0 %3674
      %3676 = vrot.lane.b32.xlu0 %v3605, 56
      %v3677 = vpop.permute.xlu0 %3676
      %3678 = vrot.lane.b32.xlu0 %v3606, 56
      %v3679 = vpop.permute.xlu0 %3678
      %3680 = vrot.lane.b32.xlu0 %v3607, 56
      %v3681 = vpop.permute.xlu0 %3680
      %3682 = vrot.lane.b32.xlu0 %v3608, 56
      %v3683 = vpop.permute.xlu0 %3682
      %3684 = vrot.lane.b32.xlu0 %v3609, 56
      %v3685 = vpop.permute.xlu0 %3684
      %3686 = vrot.lane.b32.xlu0 %v3610, 56
      %v3687 = vpop.permute.xlu0 %3686
      %3688 = vrot.lane.b32.xlu0 %v3611, 56
      %v3689 = vpop.permute.xlu0 %3688
      %3690 = vrot.lane.b32.xlu0 %v3612, 56
      %v3691 = vpop.permute.xlu0 %3690
      %3692 = vrot.lane.b32.xlu0 %v3613, 56
      %v3693 = vpop.permute.xlu0 %3692
      %3694 = vrot.lane.b32.xlu0 %v3614, 56
      %v3695 = vpop.permute.xlu0 %3694
      %3696 = vrot.lane.b32.xlu0 %v3615, 56
      %v3697 = vpop.permute.xlu0 %3696
      %3698 = vrot.lane.b32.xlu0 %v3616, 56
      %v3699 = vpop.permute.xlu0 %3698
      %3700 = vrot.lane.b32.xlu0 %v3617, 56
      %v3701 = vpop.permute.xlu0 %3700
      %3702 = vrot.lane.b32.xlu0 %v3618, 56
      %v3703 = vpop.permute.xlu0 %3702
      %3704 = vrot.lane.b32.xlu0 %v3619, 56
      %v3705 = vpop.permute.xlu0 %3704
      %3706 = vrot.lane.b32.xlu0 %v3620, 56
      %v3707 = vpop.permute.xlu0 %3706
      %3708 = vrot.lane.b32.xlu0 %v3621, 56
      %v3709 = vpop.permute.xlu0 %3708
      %3710 = vrot.lane.b32.xlu0 %v3622, 56
      %v3711 = vpop.permute.xlu0 %3710
      %3712 = vrot.lane.b32.xlu0 %v3623, 56
      %v3713 = vpop.permute.xlu0 %3712
      %3714 = vrot.lane.b32.xlu0 %v3624, 56
      %v3715 = vpop.permute.xlu0 %3714
      %3716 = vrot.lane.b32.xlu0 %v3625, 56
      %v3717 = vpop.permute.xlu0 %3716
      %3718 = vrot.lane.b32.xlu0 %v3626, 56
      %v3719 = vpop.permute.xlu0 %3718
      %3720 = vrot.lane.b32.xlu0 %v3627, 56
      %v3721 = vpop.permute.xlu0 %3720
      %3722 = vrot.lane.b32.xlu0 %v3628, 56
      %v3723 = vpop.permute.xlu0 %3722
      %3724 = vrot.lane.b32.xlu0 %v3629, 56
      %v3725 = vpop.permute.xlu0 %3724
      %3758 = vst.msk [vmem:[#allocation3] sm:$0xff] %vm1769, %v3663
      %3759 = vst.msk [vmem:[#allocation3 + $0x8] sm:$0xff] %vm1769, %v3665
      %3760 = vst.msk [vmem:[#allocation3 + $0x10] sm:$0xff] %vm1769, %v3667
      %3761 = vst.msk [vmem:[#allocation3 + $0x18] sm:$0xff] %vm1769, %v3669
      %3762 = vst.msk [vmem:[#allocation3 + $0x20] sm:$0xff] %vm1769, %v3671
      %3763 = vst.msk [vmem:[#allocation3 + $0x28] sm:$0xff] %vm1769, %v3673
      %3764 = vst.msk [vmem:[#allocation3 + $0x30] sm:$0xff] %vm1769, %v3675
      %3765 = vst.msk [vmem:[#allocation3 + $0x38] sm:$0xff] %vm1769, %v3677
      %3766 = vst.msk [vmem:[#allocation3 + $0x40] sm:$0xff] %vm1769, %v3679
      %3767 = vst.msk [vmem:[#allocation3 + $0x48] sm:$0xff] %vm1769, %v3681
      %3768 = vst.msk [vmem:[#allocation3 + $0x50] sm:$0xff] %vm1769, %v3683
      %3769 = vst.msk [vmem:[#allocation3 + $0x58] sm:$0xff] %vm1769, %v3685
      %3770 = vst.msk [vmem:[#allocation3 + $0x60] sm:$0xff] %vm1769, %v3687
      %3771 = vst.msk [vmem:[#allocation3 + $0x68] sm:$0xff] %vm1769, %v3689
      %3772 = vst.msk [vmem:[#allocation3 + $0x70] sm:$0xff] %vm1769, %v3691
      %3773 = vst.msk [vmem:[#allocation3 + $0x78] sm:$0xff] %vm1769, %v3693
      %3774 = vst.msk [vmem:[#allocation3 + $0x80] sm:$0xff] %vm1769, %v3695
      %3775 = vst.msk [vmem:[#allocation3 + $0x88] sm:$0xff] %vm1769, %v3697
      %3776 = vst.msk [vmem:[#allocation3 + $0x90] sm:$0xff] %vm1769, %v3699
      %3777 = vst.msk [vmem:[#allocation3 + $0x98] sm:$0xff] %vm1769, %v3701
      %3778 = vst.msk [vmem:[#allocation3 + $0xa0] sm:$0xff] %vm1769, %v3703
      %3779 = vst.msk [vmem:[#allocation3 + $0xa8] sm:$0xff] %vm1769, %v3705
      %3780 = vst.msk [vmem:[#allocation3 + $0xb0] sm:$0xff] %vm1769, %v3707
      %3781 = vst.msk [vmem:[#allocation3 + $0xb8] sm:$0xff] %vm1769, %v3709
      %3782 = vst.msk [vmem:[#allocation3 + $0xc0] sm:$0xff] %vm1769, %v3711
      %3783 = vst.msk [vmem:[#allocation3 + $0xc8] sm:$0xff] %vm1769, %v3713
      %3784 = vst.msk [vmem:[#allocation3 + $0xd0] sm:$0xff] %vm1769, %v3715
      %3785 = vst.msk [vmem:[#allocation3 + $0xd8] sm:$0xff] %vm1769, %v3717
      %3786 = vst.msk [vmem:[#allocation3 + $0xe0] sm:$0xff] %vm1769, %v3719
      %3787 = vst.msk [vmem:[#allocation3 + $0xe8] sm:$0xff] %vm1769, %v3721
      %3788 = vst.msk [vmem:[#allocation3 + $0xf0] sm:$0xff] %vm1769, %v3723
      %3789 = vst.msk [vmem:[#allocation3 + $0xf8] sm:$0xff] %vm1769, %v3725
      %v3790 = vld [vmem:[%s1415 + $0x2] sm:$0xff]
      %v3791 = vld [vmem:[%s1415 + $0xa] sm:$0xff]
      %v3792 = vld [vmem:[%s1415 + $0x1a] sm:$0xff]
      %v3793 = vld [vmem:[%s1415 + $0x22] sm:$0xff]
      %v3794 = vld [vmem:[%s1415 + $0x32] sm:$0xff]
      %v3795 = vld [vmem:[%s1415 + $0x3a] sm:$0xff]
      %v3796 = vld [vmem:[%s1415 + $0x4a] sm:$0xff]
      %v3797 = vld [vmem:[%s1415 + $0x52] sm:$0xff]
      %v3798 = vld [vmem:[%s1415 + $0x62] sm:$0xff]
      %v3799 = vld [vmem:[%s1415 + $0x6a] sm:$0xff]
      %v3800 = vld [vmem:[%s1415 + $0x7a] sm:$0xff]
      %v3801 = vld [vmem:[%s1415 + $0x82] sm:$0xff]
      %v3802 = vld [vmem:[%s1415 + $0x92] sm:$0xff]
      %v3803 = vld [vmem:[%s1415 + $0x9a] sm:$0xff]
      %v3804 = vld [vmem:[%s1415 + $0xaa] sm:$0xff]
      %v3805 = vld [vmem:[%s1415 + $0xb2] sm:$0xff]
      %v3806 = vld [vmem:[%s1415 + $0xc2] sm:$0xff]
      %v3807 = vld [vmem:[%s1415 + $0xca] sm:$0xff]
      %v3808 = vld [vmem:[%s1415 + $0xda] sm:$0xff]
      %v3809 = vld [vmem:[%s1415 + $0xe2] sm:$0xff]
      %v3810 = vld [vmem:[%s1415 + $0xf2] sm:$0xff]
      %v3811 = vld [vmem:[%s1415 + $0xfa] sm:$0xff]
      %v3812 = vld [vmem:[%s1415 + $0x10a] sm:$0xff]
      %v3813 = vld [vmem:[%s1415 + $0x112] sm:$0xff]
      %v3814 = vld [vmem:[%s1415 + $0x122] sm:$0xff]
      %v3815 = vld [vmem:[%s1415 + $0x12a] sm:$0xff]
      %v3816 = vld [vmem:[%s1415 + $0x13a] sm:$0xff]
      %v3817 = vld [vmem:[%s1415 + $0x142] sm:$0xff]
      %v3818 = vld [vmem:[%s1415 + $0x152] sm:$0xff]
      %v3819 = vld [vmem:[%s1415 + $0x15a] sm:$0xff]
      %v3820 = vld [vmem:[%s1415 + $0x16a] sm:$0xff]
      %v3821 = vld [vmem:[%s1415 + $0x172] sm:$0xff]
      %3854 = vrot.lane.b32.xlu0 %v3790, 64
      %v3855 = vpop.permute.xlu0 %3854
      %3856 = vrot.lane.b32.xlu0 %v3791, 64
      %v3857 = vpop.permute.xlu0 %3856
      %3858 = vrot.lane.b32.xlu0 %v3792, 64
      %v3859 = vpop.permute.xlu0 %3858
      %3860 = vrot.lane.b32.xlu0 %v3793, 64
      %v3861 = vpop.permute.xlu0 %3860
      %3862 = vrot.lane.b32.xlu0 %v3794, 64
      %v3863 = vpop.permute.xlu0 %3862
      %3864 = vrot.lane.b32.xlu0 %v3795, 64
      %v3865 = vpop.permute.xlu0 %3864
      %3866 = vrot.lane.b32.xlu0 %v3796, 64
      %v3867 = vpop.permute.xlu0 %3866
      %3868 = vrot.lane.b32.xlu0 %v3797, 64
      %v3869 = vpop.permute.xlu0 %3868
      %3870 = vrot.lane.b32.xlu0 %v3798, 64
      %v3871 = vpop.permute.xlu0 %3870
      %3872 = vrot.lane.b32.xlu0 %v3799, 64
      %v3873 = vpop.permute.xlu0 %3872
      %3874 = vrot.lane.b32.xlu0 %v3800, 64
      %v3875 = vpop.permute.xlu0 %3874
      %3876 = vrot.lane.b32.xlu0 %v3801, 64
      %v3877 = vpop.permute.xlu0 %3876
      %3878 = vrot.lane.b32.xlu0 %v3802, 64
      %v3879 = vpop.permute.xlu0 %3878
      %3880 = vrot.lane.b32.xlu0 %v3803, 64
      %v3881 = vpop.permute.xlu0 %3880
      %3882 = vrot.lane.b32.xlu0 %v3804, 64
      %v3883 = vpop.permute.xlu0 %3882
      %3884 = vrot.lane.b32.xlu0 %v3805, 64
      %v3885 = vpop.permute.xlu0 %3884
      %3886 = vrot.lane.b32.xlu0 %v3806, 64
      %v3887 = vpop.permute.xlu0 %3886
      %3888 = vrot.lane.b32.xlu0 %v3807, 64
      %v3889 = vpop.permute.xlu0 %3888
      %3890 = vrot.lane.b32.xlu0 %v3808, 64
      %v3891 = vpop.permute.xlu0 %3890
      %3892 = vrot.lane.b32.xlu0 %v3809, 64
      %v3893 = vpop.permute.xlu0 %3892
      %3894 = vrot.lane.b32.xlu0 %v3810, 64
      %v3895 = vpop.permute.xlu0 %3894
      %3896 = vrot.lane.b32.xlu0 %v3811, 64
      %v3897 = vpop.permute.xlu0 %3896
      %3898 = vrot.lane.b32.xlu0 %v3812, 64
      %v3899 = vpop.permute.xlu0 %3898
      %3900 = vrot.lane.b32.xlu0 %v3813, 64
      %v3901 = vpop.permute.xlu0 %3900
      %3902 = vrot.lane.b32.xlu0 %v3814, 64
      %v3903 = vpop.permute.xlu0 %3902
      %3904 = vrot.lane.b32.xlu0 %v3815, 64
      %v3905 = vpop.permute.xlu0 %3904
      %3906 = vrot.lane.b32.xlu0 %v3816, 64
      %v3907 = vpop.permute.xlu0 %3906
      %3908 = vrot.lane.b32.xlu0 %v3817, 64
      %v3909 = vpop.permute.xlu0 %3908
      %3910 = vrot.lane.b32.xlu0 %v3818, 64
      %v3911 = vpop.permute.xlu0 %3910
      %3912 = vrot.lane.b32.xlu0 %v3819, 64
      %v3913 = vpop.permute.xlu0 %3912
      %3914 = vrot.lane.b32.xlu0 %v3820, 64
      %v3915 = vpop.permute.xlu0 %3914
      %3916 = vrot.lane.b32.xlu0 %v3821, 64
      %v3917 = vpop.permute.xlu0 %3916
      %3950 = vst.msk [vmem:[#allocation3] sm:$0xff] %vm1962, %v3855
      %3951 = vst.msk [vmem:[#allocation3 + $0x8] sm:$0xff] %vm1962, %v3857
      %3952 = vst.msk [vmem:[#allocation3 + $0x10] sm:$0xff] %vm1962, %v3859
      %3953 = vst.msk [vmem:[#allocation3 + $0x18] sm:$0xff] %vm1962, %v3861
      %3954 = vst.msk [vmem:[#allocation3 + $0x20] sm:$0xff] %vm1962, %v3863
      %3955 = vst.msk [vmem:[#allocation3 + $0x28] sm:$0xff] %vm1962, %v3865
      %3956 = vst.msk [vmem:[#allocation3 + $0x30] sm:$0xff] %vm1962, %v3867
      %3957 = vst.msk [vmem:[#allocation3 + $0x38] sm:$0xff] %vm1962, %v3869
      %3958 = vst.msk [vmem:[#allocation3 + $0x40] sm:$0xff] %vm1962, %v3871
      %3959 = vst.msk [vmem:[#allocation3 + $0x48] sm:$0xff] %vm1962, %v3873
      %3960 = vst.msk [vmem:[#allocation3 + $0x50] sm:$0xff] %vm1962, %v3875
      %3961 = vst.msk [vmem:[#allocation3 + $0x58] sm:$0xff] %vm1962, %v3877
      %3962 = vst.msk [vmem:[#allocation3 + $0x60] sm:$0xff] %vm1962, %v3879
      %3963 = vst.msk [vmem:[#allocation3 + $0x68] sm:$0xff] %vm1962, %v3881
      %3964 = vst.msk [vmem:[#allocation3 + $0x70] sm:$0xff] %vm1962, %v3883
      %3965 = vst.msk [vmem:[#allocation3 + $0x78] sm:$0xff] %vm1962, %v3885
      %3966 = vst.msk [vmem:[#allocation3 + $0x80] sm:$0xff] %vm1962, %v3887
      %3967 = vst.msk [vmem:[#allocation3 + $0x88] sm:$0xff] %vm1962, %v3889
      %3968 = vst.msk [vmem:[#allocation3 + $0x90] sm:$0xff] %vm1962, %v3891
      %3969 = vst.msk [vmem:[#allocation3 + $0x98] sm:$0xff] %vm1962, %v3893
      %3970 = vst.msk [vmem:[#allocation3 + $0xa0] sm:$0xff] %vm1962, %v3895
      %3971 = vst.msk [vmem:[#allocation3 + $0xa8] sm:$0xff] %vm1962, %v3897
      %3972 = vst.msk [vmem:[#allocation3 + $0xb0] sm:$0xff] %vm1962, %v3899
      %3973 = vst.msk [vmem:[#allocation3 + $0xb8] sm:$0xff] %vm1962, %v3901
      %3974 = vst.msk [vmem:[#allocation3 + $0xc0] sm:$0xff] %vm1962, %v3903
      %3975 = vst.msk [vmem:[#allocation3 + $0xc8] sm:$0xff] %vm1962, %v3905
      %3976 = vst.msk [vmem:[#allocation3 + $0xd0] sm:$0xff] %vm1962, %v3907
      %3977 = vst.msk [vmem:[#allocation3 + $0xd8] sm:$0xff] %vm1962, %v3909
      %3978 = vst.msk [vmem:[#allocation3 + $0xe0] sm:$0xff] %vm1962, %v3911
      %3979 = vst.msk [vmem:[#allocation3 + $0xe8] sm:$0xff] %vm1962, %v3913
      %3980 = vst.msk [vmem:[#allocation3 + $0xf0] sm:$0xff] %vm1962, %v3915
      %3981 = vst.msk [vmem:[#allocation3 + $0xf8] sm:$0xff] %vm1962, %v3917
      %v3982 = vld [vmem:[#allocation3] sm:$0xff]
      %v3983 = vld [vmem:[#allocation3 + $0x8] sm:$0xff]
      %v3984 = vld [vmem:[#allocation3 + $0x10] sm:$0xff]
      %v3985 = vld [vmem:[#allocation3 + $0x18] sm:$0xff]
      %v3986 = vld [vmem:[#allocation3 + $0x20] sm:$0xff]
      %v3987 = vld [vmem:[#allocation3 + $0x28] sm:$0xff]
      %v3988 = vld [vmem:[#allocation3 + $0x30] sm:$0xff]
      %v3989 = vld [vmem:[#allocation3 + $0x38] sm:$0xff]
      %v3990 = vld [vmem:[#allocation3 + $0x40] sm:$0xff]
      %v3991 = vld [vmem:[#allocation3 + $0x48] sm:$0xff]
      %v3992 = vld [vmem:[#allocation3 + $0x50] sm:$0xff]
      %v3993 = vld [vmem:[#allocation3 + $0x58] sm:$0xff]
      %v3994 = vld [vmem:[#allocation3 + $0x60] sm:$0xff]
      %v3995 = vld [vmem:[#allocation3 + $0x68] sm:$0xff]
      %v3996 = vld [vmem:[#allocation3 + $0x70] sm:$0xff]
      %v3997 = vld [vmem:[#allocation3 + $0x78] sm:$0xff]
      %v3998 = vld [vmem:[#allocation3 + $0x80] sm:$0xff]
      %v3999 = vld [vmem:[#allocation3 + $0x88] sm:$0xff]
      %v4000 = vld [vmem:[#allocation3 + $0x90] sm:$0xff]
      %v4001 = vld [vmem:[#allocation3 + $0x98] sm:$0xff]
      %v4002 = vld [vmem:[#allocation3 + $0xa0] sm:$0xff]
      %v4003 = vld [vmem:[#allocation3 + $0xa8] sm:$0xff]
      %v4004 = vld [vmem:[#allocation3 + $0xb0] sm:$0xff]
      %v4005 = vld [vmem:[#allocation3 + $0xb8] sm:$0xff]
      %v4006 = vld [vmem:[#allocation3 + $0xc0] sm:$0xff]
      %v4007 = vld [vmem:[#allocation3 + $0xc8] sm:$0xff]
      %v4008 = vld [vmem:[#allocation3 + $0xd0] sm:$0xff]
      %v4009 = vld [vmem:[#allocation3 + $0xd8] sm:$0xff]
      %v4010 = vld [vmem:[#allocation3 + $0xe0] sm:$0xff]
      %v4011 = vld [vmem:[#allocation3 + $0xe8] sm:$0xff]
      %v4012 = vld [vmem:[#allocation3 + $0xf0] sm:$0xff]
      %v4013 = vld [vmem:[#allocation3 + $0xf8] sm:$0xff]
      %v4014 = vld [vmem:[%s2] sm:$0xff]
      %v4015 = vld [vmem:[%s2 + $0x8] sm:$0xff]
      %v4016 = vld [vmem:[%s2 + $0x10] sm:$0xff]
      %v4017 = vld [vmem:[%s2 + $0x18] sm:$0xff]
      %v4018 = vld [vmem:[%s2 + $0x20] sm:$0xff]
      %v4019 = vld [vmem:[%s2 + $0x28] sm:$0xff]
      %v4020 = vld [vmem:[%s2 + $0x30] sm:$0xff]
      %v4021 = vld [vmem:[%s2 + $0x38] sm:$0xff]
      %v4022 = vld [vmem:[%s2 + $0x40] sm:$0xff]
      %v4024 = vsel %vm2036, %v3982, 0
      %v4027 = vsel %vm2036, %v3983, 0
      %v4030 = vsel %vm2036, %v3984, 0
      %v4033 = vsel %vm2036, %v3985, 0
      %v4036 = vsel %vm2036, %v3986, 0
      %v4039 = vsel %vm2036, %v3987, 0
      %v4042 = vsel %vm2036, %v3988, 0
      %v4045 = vsel %vm2036, %v3989, 0
      %v4048 = vsel %vm2036, %v3990, 0
      %v4051 = vsel %vm2036, %v3991, 0
      %v4054 = vsel %vm2036, %v3992, 0
      %v4057 = vsel %vm2036, %v3993, 0
      %v4060 = vsel %vm2036, %v3994, 0
      %v4063 = vsel %vm2036, %v3995, 0
      %v4066 = vsel %vm2036, %v3996, 0
      %v4069 = vsel %vm2036, %v3997, 0
      %v4072 = vsel %vm2036, %v3998, 0
      %v4075 = vsel %vm2036, %v3999, 0
      %v4078 = vsel %vm2036, %v4000, 0
      %v4081 = vsel %vm2036, %v4001, 0
      %v4084 = vsel %vm2036, %v4002, 0
      %v4087 = vsel %vm2036, %v4003, 0
      %v4090 = vsel %vm2036, %v4004, 0
      %v4093 = vsel %vm2036, %v4005, 0
      %v4096 = vsel %vm2036, %v4006, 0
      %v4099 = vsel %vm2036, %v4007, 0
      %v4102 = vsel %vm2036, %v4008, 0
      %v4105 = vsel %vm2036, %v4009, 0
      %v4108 = vsel %vm2036, %v4010, 0
      %v4111 = vsel %vm2036, %v4011, 0
      %v4114 = vsel %vm2036, %v4012, 0
      %v4117 = vsel %vm2036, %v4013, 0
      %4119 = vmatpush.msra.mxu0 0.0
      %4120 = vmatpush.msra.mxu0 0.0
      %4121 = vmatpush.msra.mxu0 0.0
      %4122 = vmatpush.msra.mxu0 0.0
      %4123 = vmatpush.msra.mxu0 0.0
      %4124 = vmatpush.msra.mxu0 0.0
      %4125 = vmatpush.msra.mxu0 0.0
      %4126 = vmatpush.msra.mxu0 %v4022
      %4127 = vmatpush.msra.mxu0 %v4021
      %4128 = vmatpush.msra.mxu0 %v4020
      %4129 = vmatpush.msra.mxu0 %v4019
      %4130 = vmatpush.msra.mxu0 %v4018
      %4131 = vmatpush.msra.mxu0 %v4017
      %4132 = vmatpush.msra.mxu0 %v4016
      %4133 = vmatpush.msra.mxu0 %v4015
      %4134 = vmatpush.msra.mxu0 %v4014
      %4135 = vmatmul.f32.gmra.mxu0 %v4024
      %v4136 = vpop.f32.mrf.mxu0
      %v4137 = vadd.f32 0.0, %v4136
      %4138 = vmatmul.f32.gmra.mxu0 %v4027
      %v4139 = vpop.f32.mrf.mxu0
      %v4140 = vadd.f32 0.0, %v4139
      %4141 = vmatmul.f32.gmra.mxu0 %v4030
      %v4142 = vpop.f32.mrf.mxu0
      %v4143 = vadd.f32 0.0, %v4142
      %4144 = vmatmul.f32.gmra.mxu0 %v4033
      %v4145 = vpop.f32.mrf.mxu0
      %v4146 = vadd.f32 0.0, %v4145
      %4147 = vmatmul.f32.gmra.mxu0 %v4036
      %v4148 = vpop.f32.mrf.mxu0
      %v4149 = vadd.f32 0.0, %v4148
      %4150 = vmatmul.f32.gmra.mxu0 %v4039
      %v4151 = vpop.f32.mrf.mxu0
      %v4152 = vadd.f32 0.0, %v4151
      %4153 = vmatmul.f32.gmra.mxu0 %v4042
      %v4154 = vpop.f32.mrf.mxu0
      %v4155 = vadd.f32 0.0, %v4154
      %4156 = vmatmul.f32.gmra.mxu0 %v4045
      %v4157 = vpop.f32.mrf.mxu0
      %v4158 = vadd.f32 0.0, %v4157
      %4159 = vmatmul.f32.gmra.mxu0 %v4048
      %v4160 = vpop.f32.mrf.mxu0
      %v4161 = vadd.f32 0.0, %v4160
      %4162 = vmatmul.f32.gmra.mxu0 %v4051
      %v4163 = vpop.f32.mrf.mxu0
      %v4164 = vadd.f32 0.0, %v4163
      %4165 = vmatmul.f32.gmra.mxu0 %v4054
      %v4166 = vpop.f32.mrf.mxu0
      %v4167 = vadd.f32 0.0, %v4166
      %4168 = vmatmul.f32.gmra.mxu0 %v4057
      %v4169 = vpop.f32.mrf.mxu0
      %v4170 = vadd.f32 0.0, %v4169
      %4171 = vmatmul.f32.gmra.mxu0 %v4060
      %v4172 = vpop.f32.mrf.mxu0
      %v4173 = vadd.f32 0.0, %v4172
      %4174 = vmatmul.f32.gmra.mxu0 %v4063
      %v4175 = vpop.f32.mrf.mxu0
      %v4176 = vadd.f32 0.0, %v4175
      %4177 = vmatmul.f32.gmra.mxu0 %v4066
      %v4178 = vpop.f32.mrf.mxu0
      %v4179 = vadd.f32 0.0, %v4178
      %4180 = vmatmul.f32.gmra.mxu0 %v4069
      %v4181 = vpop.f32.mrf.mxu0
      %v4182 = vadd.f32 0.0, %v4181
      %4183 = vmatmul.f32.gmra.mxu0 %v4072
      %v4184 = vpop.f32.mrf.mxu0
      %v4185 = vadd.f32 0.0, %v4184
      %4186 = vmatmul.f32.gmra.mxu0 %v4075
      %v4187 = vpop.f32.mrf.mxu0
      %v4188 = vadd.f32 0.0, %v4187
      %4189 = vmatmul.f32.gmra.mxu0 %v4078
      %v4190 = vpop.f32.mrf.mxu0
      %v4191 = vadd.f32 0.0, %v4190
      %4192 = vmatmul.f32.gmra.mxu0 %v4081
      %v4193 = vpop.f32.mrf.mxu0
      %v4194 = vadd.f32 0.0, %v4193
      %4195 = vmatmul.f32.gmra.mxu0 %v4084
      %v4196 = vpop.f32.mrf.mxu0
      %v4197 = vadd.f32 0.0, %v4196
      %4198 = vmatmul.f32.gmra.mxu0 %v4087
      %v4199 = vpop.f32.mrf.mxu0
      %v4200 = vadd.f32 0.0, %v4199
      %4201 = vmatmul.f32.gmra.mxu0 %v4090
      %v4202 = vpop.f32.mrf.mxu0
      %v4203 = vadd.f32 0.0, %v4202
      %4204 = vmatmul.f32.gmra.mxu0 %v4093
      %v4205 = vpop.f32.mrf.mxu0
      %v4206 = vadd.f32 0.0, %v4205
      %4207 = vmatmul.f32.gmra.mxu0 %v4096
      %v4208 = vpop.f32.mrf.mxu0
      %v4209 = vadd.f32 0.0, %v4208
      %4210 = vmatmul.f32.gmra.mxu0 %v4099
      %v4211 = vpop.f32.mrf.mxu0
      %v4212 = vadd.f32 0.0, %v4211
      %4213 = vmatmul.f32.gmra.mxu0 %v4102
      %v4214 = vpop.f32.mrf.mxu0
      %v4215 = vadd.f32 0.0, %v4214
      %4216 = vmatmul.f32.gmra.mxu0 %v4105
      %v4217 = vpop.f32.mrf.mxu0
      %v4218 = vadd.f32 0.0, %v4217
      %4219 = vmatmul.f32.gmra.mxu0 %v4108
      %v4220 = vpop.f32.mrf.mxu0
      %v4221 = vadd.f32 0.0, %v4220
      %4222 = vmatmul.f32.gmra.mxu0 %v4111
      %v4223 = vpop.f32.mrf.mxu0
      %v4224 = vadd.f32 0.0, %v4223
      %4225 = vmatmul.f32.gmra.mxu0 %v4114
      %v4226 = vpop.f32.mrf.mxu0
      %v4227 = vadd.f32 0.0, %v4226
      %4228 = vmatmul.f32.gmra.mxu0 %v4117
      %v4229 = vpop.f32.mrf.mxu0
      %v4230 = vadd.f32 0.0, %v4229
      %4231 = vdwg.mxu0
      %v4232 = vld [vmem:[%s5] sm:$0x1]
      %v4234 = vperm.slane %v4232, 0
      %v4236 = vmul.f32 %v4137, %v4234
      %v4237 = vmul.f32 %v4140, %v4234
      %v4238 = vmul.f32 %v4143, %v4234
      %v4239 = vmul.f32 %v4146, %v4234
      %v4240 = vmul.f32 %v4149, %v4234
      %v4241 = vmul.f32 %v4152, %v4234
      %v4242 = vmul.f32 %v4155, %v4234
      %v4243 = vmul.f32 %v4158, %v4234
      %v4244 = vmul.f32 %v4161, %v4234
      %v4245 = vmul.f32 %v4164, %v4234
      %v4246 = vmul.f32 %v4167, %v4234
      %v4247 = vmul.f32 %v4170, %v4234
      %v4248 = vmul.f32 %v4173, %v4234
      %v4249 = vmul.f32 %v4176, %v4234
      %v4250 = vmul.f32 %v4179, %v4234
      %v4251 = vmul.f32 %v4182, %v4234
      %v4252 = vmul.f32 %v4185, %v4234
      %v4253 = vmul.f32 %v4188, %v4234
      %v4254 = vmul.f32 %v4191, %v4234
      %v4255 = vmul.f32 %v4194, %v4234
      %v4256 = vmul.f32 %v4197, %v4234
      %v4257 = vmul.f32 %v4200, %v4234
      %v4258 = vmul.f32 %v4203, %v4234
      %v4259 = vmul.f32 %v4206, %v4234
      %v4260 = vmul.f32 %v4209, %v4234
      %v4261 = vmul.f32 %v4212, %v4234
      %v4262 = vmul.f32 %v4215, %v4234
      %v4263 = vmul.f32 %v4218, %v4234
      %v4264 = vmul.f32 %v4221, %v4234
      %v4265 = vmul.f32 %v4224, %v4234
      %v4266 = vmul.f32 %v4227, %v4234
      %v4267 = vmul.f32 %v4230, %v4234
      %v4268 = vld [vmem:[%s6] sm:$0x1]
      %v4270 = vperm.slane %v4268, 0
      %v4272 = vadd.f32 %v4236, %v4270
      %v4273 = vadd.f32 %v4237, %v4270
      %v4274 = vadd.f32 %v4238, %v4270
      %v4275 = vadd.f32 %v4239, %v4270
      %v4276 = vadd.f32 %v4240, %v4270
      %v4277 = vadd.f32 %v4241, %v4270
      %v4278 = vadd.f32 %v4242, %v4270
      %v4279 = vadd.f32 %v4243, %v4270
      %v4280 = vadd.f32 %v4244, %v4270
      %v4281 = vadd.f32 %v4245, %v4270
      %v4282 = vadd.f32 %v4246, %v4270
      %v4283 = vadd.f32 %v4247, %v4270
      %v4284 = vadd.f32 %v4248, %v4270
      %v4285 = vadd.f32 %v4249, %v4270
      %v4286 = vadd.f32 %v4250, %v4270
      %v4287 = vadd.f32 %v4251, %v4270
      %v4288 = vadd.f32 %v4252, %v4270
      %v4289 = vadd.f32 %v4253, %v4270
      %v4290 = vadd.f32 %v4254, %v4270
      %v4291 = vadd.f32 %v4255, %v4270
      %v4292 = vadd.f32 %v4256, %v4270
      %v4293 = vadd.f32 %v4257, %v4270
      %v4294 = vadd.f32 %v4258, %v4270
      %v4295 = vadd.f32 %v4259, %v4270
      %v4296 = vadd.f32 %v4260, %v4270
      %v4297 = vadd.f32 %v4261, %v4270
      %v4298 = vadd.f32 %v4262, %v4270
      %v4299 = vadd.f32 %v4263, %v4270
      %v4300 = vadd.f32 %v4264, %v4270
      %v4301 = vadd.f32 %v4265, %v4270
      %v4302 = vadd.f32 %v4266, %v4270
      %v4303 = vadd.f32 %v4267, %v4270
      %v4304 = vld [vmem:[%s273] sm:$0xff]
      %v4305 = vld [vmem:[%s273 + $0x8] sm:$0xff]
      %v4306 = vld [vmem:[%s273 + $0x10] sm:$0xff]
      %v4307 = vld [vmem:[%s273 + $0x18] sm:$0xff]
      %v4308 = vld [vmem:[%s273 + $0x20] sm:$0xff]
      %v4309 = vld [vmem:[%s273 + $0x28] sm:$0xff]
      %v4310 = vld [vmem:[%s273 + $0x30] sm:$0xff]
      %v4311 = vld [vmem:[%s273 + $0x38] sm:$0xff]
      %v4312 = vld [vmem:[%s273 + $0x40] sm:$0xff]
      %v4313 = vld [vmem:[%s273 + $0x48] sm:$0xff]
      %v4314 = vld [vmem:[%s273 + $0x50] sm:$0xff]
      %v4315 = vld [vmem:[%s273 + $0x58] sm:$0xff]
      %v4316 = vld [vmem:[%s273 + $0x60] sm:$0xff]
      %v4317 = vld [vmem:[%s273 + $0x68] sm:$0xff]
      %v4318 = vld [vmem:[%s273 + $0x70] sm:$0xff]
      %v4319 = vld [vmem:[%s273 + $0x78] sm:$0xff]
      %v4320 = vld [vmem:[%s273 + $0x80] sm:$0xff]
      %v4321 = vld [vmem:[%s273 + $0x88] sm:$0xff]
      %v4322 = vld [vmem:[%s273 + $0x90] sm:$0xff]
      %v4323 = vld [vmem:[%s273 + $0x98] sm:$0xff]
      %v4324 = vld [vmem:[%s273 + $0xa0] sm:$0xff]
      %v4325 = vld [vmem:[%s273 + $0xa8] sm:$0xff]
      %v4326 = vld [vmem:[%s273 + $0xb0] sm:$0xff]
      %v4327 = vld [vmem:[%s273 + $0xb8] sm:$0xff]
      %v4328 = vld [vmem:[%s273 + $0xc0] sm:$0xff]
      %v4329 = vld [vmem:[%s273 + $0xc8] sm:$0xff]
      %v4330 = vld [vmem:[%s273 + $0xd0] sm:$0xff]
      %v4331 = vld [vmem:[%s273 + $0xd8] sm:$0xff]
      %v4332 = vld [vmem:[%s273 + $0xe0] sm:$0xff]
      %v4333 = vld [vmem:[%s273 + $0xe8] sm:$0xff]
      %v4334 = vld [vmem:[%s273 + $0xf0] sm:$0xff]
      %v4335 = vld [vmem:[%s273 + $0xf8] sm:$0xff]
      %v4336 = vadd.f32 %v4272, %v4304
      %v4337 = vadd.f32 %v4273, %v4305
      %v4338 = vadd.f32 %v4274, %v4306
      %v4339 = vadd.f32 %v4275, %v4307
      %v4340 = vadd.f32 %v4276, %v4308
      %v4341 = vadd.f32 %v4277, %v4309
      %v4342 = vadd.f32 %v4278, %v4310
      %v4343 = vadd.f32 %v4279, %v4311
      %v4344 = vadd.f32 %v4280, %v4312
      %v4345 = vadd.f32 %v4281, %v4313
      %v4346 = vadd.f32 %v4282, %v4314
      %v4347 = vadd.f32 %v4283, %v4315
      %v4348 = vadd.f32 %v4284, %v4316
      %v4349 = vadd.f32 %v4285, %v4317
      %v4350 = vadd.f32 %v4286, %v4318
      %v4351 = vadd.f32 %v4287, %v4319
      %v4352 = vadd.f32 %v4288, %v4320
      %v4353 = vadd.f32 %v4289, %v4321
      %v4354 = vadd.f32 %v4290, %v4322
      %v4355 = vadd.f32 %v4291, %v4323
      %v4356 = vadd.f32 %v4292, %v4324
      %v4357 = vadd.f32 %v4293, %v4325
      %v4358 = vadd.f32 %v4294, %v4326
      %v4359 = vadd.f32 %v4295, %v4327
      %v4360 = vadd.f32 %v4296, %v4328
      %v4361 = vadd.f32 %v4297, %v4329
      %v4362 = vadd.f32 %v4298, %v4330
      %v4363 = vadd.f32 %v4299, %v4331
      %v4364 = vadd.f32 %v4300, %v4332
      %v4365 = vadd.f32 %v4301, %v4333
      %v4366 = vadd.f32 %v4302, %v4334
      %v4367 = vadd.f32 %v4303, %v4335
      %v4368 = vmax.f32 %v4336, 0.0
      %v4369 = vmax.f32 %v4337, 0.0
      %v4370 = vmax.f32 %v4338, 0.0
      %v4371 = vmax.f32 %v4339, 0.0
      %v4372 = vmax.f32 %v4340, 0.0
      %v4373 = vmax.f32 %v4341, 0.0
      %v4374 = vmax.f32 %v4342, 0.0
      %v4375 = vmax.f32 %v4343, 0.0
      %v4376 = vmax.f32 %v4344, 0.0
      %v4377 = vmax.f32 %v4345, 0.0
      %v4378 = vmax.f32 %v4346, 0.0
      %v4379 = vmax.f32 %v4347, 0.0
      %v4380 = vmax.f32 %v4348, 0.0
      %v4381 = vmax.f32 %v4349, 0.0
      %v4382 = vmax.f32 %v4350, 0.0
      %v4383 = vmax.f32 %v4351, 0.0
      %v4384 = vmax.f32 %v4352, 0.0
      %v4385 = vmax.f32 %v4353, 0.0
      %v4386 = vmax.f32 %v4354, 0.0
      %v4387 = vmax.f32 %v4355, 0.0
      %v4388 = vmax.f32 %v4356, 0.0
      %v4389 = vmax.f32 %v4357, 0.0
      %v4390 = vmax.f32 %v4358, 0.0
      %v4391 = vmax.f32 %v4359, 0.0
      %v4392 = vmax.f32 %v4360, 0.0
      %v4393 = vmax.f32 %v4361, 0.0
      %v4394 = vmax.f32 %v4362, 0.0
      %v4395 = vmax.f32 %v4363, 0.0
      %v4396 = vmax.f32 %v4364, 0.0
      %v4397 = vmax.f32 %v4365, 0.0
      %v4398 = vmax.f32 %v4366, 0.0
      %v4399 = vmax.f32 %v4367, 0.0
      %4400 = vst.msk [vmem:[%s278] sm:$0xff] %vm279, %v4368
      %4401 = vst.msk [vmem:[%s278 + $0x8] sm:$0xff] %vm279, %v4369
      %4402 = vst.msk [vmem:[%s278 + $0x10] sm:$0xff] %vm279, %v4370
      %4403 = vst.msk [vmem:[%s278 + $0x18] sm:$0xff] %vm279, %v4371
      %4404 = vst.msk [vmem:[%s278 + $0x20] sm:$0xff] %vm279, %v4372
      %4405 = vst.msk [vmem:[%s278 + $0x28] sm:$0xff] %vm279, %v4373
      %4406 = vst.msk [vmem:[%s278 + $0x30] sm:$0xff] %vm279, %v4374
      %4407 = vst.msk [vmem:[%s278 + $0x38] sm:$0xff] %vm279, %v4375
      %4408 = vst.msk [vmem:[%s278 + $0x40] sm:$0xff] %vm279, %v4376
      %4409 = vst.msk [vmem:[%s278 + $0x48] sm:$0xff] %vm279, %v4377
      %4410 = vst.msk [vmem:[%s278 + $0x50] sm:$0xff] %vm279, %v4378
      %4411 = vst.msk [vmem:[%s278 + $0x58] sm:$0xff] %vm279, %v4379
      %4412 = vst.msk [vmem:[%s278 + $0x60] sm:$0xff] %vm279, %v4380
      %4413 = vst.msk [vmem:[%s278 + $0x68] sm:$0xff] %vm279, %v4381
      %4414 = vst.msk [vmem:[%s278 + $0x70] sm:$0xff] %vm279, %v4382
      %4415 = vst.msk [vmem:[%s278 + $0x78] sm:$0xff] %vm279, %v4383
      %4416 = vst.msk [vmem:[%s278 + $0x80] sm:$0xff] %vm279, %v4384
      %4417 = vst.msk [vmem:[%s278 + $0x88] sm:$0xff] %vm279, %v4385
      %4418 = vst.msk [vmem:[%s278 + $0x90] sm:$0xff] %vm279, %v4386
      %4419 = vst.msk [vmem:[%s278 + $0x98] sm:$0xff] %vm279, %v4387
      %4420 = vst.msk [vmem:[%s278 + $0xa0] sm:$0xff] %vm279, %v4388
      %4421 = vst.msk [vmem:[%s278 + $0xa8] sm:$0xff] %vm279, %v4389
      %4422 = vst.msk [vmem:[%s278 + $0xb0] sm:$0xff] %vm279, %v4390
      %4423 = vst.msk [vmem:[%s278 + $0xb8] sm:$0xff] %vm279, %v4391
      %4424 = vst.msk [vmem:[%s278 + $0xc0] sm:$0xff] %vm279, %v4392
      %4425 = vst.msk [vmem:[%s278 + $0xc8] sm:$0xff] %vm279, %v4393
      %4426 = vst.msk [vmem:[%s278 + $0xd0] sm:$0xff] %vm279, %v4394
      %4427 = vst.msk [vmem:[%s278 + $0xd8] sm:$0xff] %vm279, %v4395
      %4428 = vst.msk [vmem:[%s278 + $0xe0] sm:$0xff] %vm279, %v4396
      %4429 = vst.msk [vmem:[%s278 + $0xe8] sm:$0xff] %vm279, %v4397
      %4430 = vst.msk [vmem:[%s278 + $0xf0] sm:$0xff] %vm279, %v4398
      %4431 = vst.msk [vmem:[%s278 + $0xf8] sm:$0xff] %vm279, %v4399
      %p4432 = scmp.lt.s32.totalorder %s18, 1
      %s4433 = scalar_select %p4432, %s18, 1
      %s4434 = smul.addr %s4433, 32
      %s4435 = smul.addr %s4434, 8
      %s4436 = scalar_lea.vmem %s7, %s4435
      // Predicated region
      $region49: #{tpu_custom_call.1} parent=47 // pred_check
        %p4437 = pneg %p188
      $region50: #{tpu_custom_call.1} parent=47 // pred_check_branch
        %4439 = sbr.rel (%p4437) target = $region52
      $region51: #{tpu_custom_call.1} parent=47 // pred_region
        _
      $region52: #{tpu_custom_call.1} parent=47 // pred_fallthru
        _
    $region48: #{tpu_custom_call.1} parent=5 // pred_fallthru
      _
    %p4440 = scmp.le.s32.totalorder 2, %s13
    // Predicated region
    $region53: #{tpu_custom_call.1} parent=5 // pred_check
      %p4441 = pneg %p4440
    $region54: #{tpu_custom_call.1} parent=5 // pred_check_branch
      %4443 = sbr.rel (%p4441) target = $region56
    $region55: #{tpu_custom_call.1} parent=5 // pred_region
      %s4444 = ssub.s32 %s13, 2
      // Predicated region
      $region57: #{tpu_custom_call.1} parent=55 // pred_check
        %p4445 = pneg %p194
      $region58: #{tpu_custom_call.1} parent=55 // pred_check_branch
        %4447 = sbr.rel (%p4445) target = $region60
      $region59: #{tpu_custom_call.1} parent=55 // pred_region
        %p4448 = scmp.lt.s32.totalorder %s19, 1
        %s4449 = scalar_select %p4448, %s19, 1
        %s4450 = smul.addr %s4449, 32
        %s4451 = smul.addr %s4450, 8
        %s4452 = scalar_lea.vmem %s7, %s4451
      $region60: #{tpu_custom_call.1} parent=55 // pred_fallthru
        _
    $region56: #{tpu_custom_call.1} parent=5 // pred_fallthru
      _
  $region6: #{tpu_custom_call.1} parent=0 // loop_footer
    %s17 = sadd.s32 1, %s13
  $region7: #{tpu_custom_call.1} parent=0 // loop_footer_branch
    %12 = sbr.rel target = $region3
  $region8: #{tpu_custom_call.1} parent=0 // loop_exit
    _

</llo_original>
